<compile_context>
chip_gen: v5e
topology: v5e:2x2
jax: 0.10.0
libtpu: 0.0.40
codegen_flags: <defaults>
</compile_context>

<pallas_src>
import jax
import jax.numpy as jnp
from jax.experimental import pallas as pl
from jax.experimental.pallas import tpu as pltpu


def _coattn_kernel(v_ref, q_ref, wb_ref, wvt_ref, wqt_ref, wh_ref, out_ref):
    f32 = jnp.float32
    bt = out_ref.shape[0]                    # batches handled this grid step
    dv = v_ref.shape[1]
    dq = q_ref.shape[1]
    n_v = v_ref.shape[0] // bt
    n_q = q_ref.shape[0] // bt
    k = wvt_ref.shape[1]
    p_out = out_ref.shape[1]

    # f32 values (used for the softmax-weighted pooling); MXU operands get the
    # (possibly bf16) weight dtype.
    v_flat = v_ref[...]                      # (bt*n_v, dv) f32
    q_flat = q_ref[...]                      # (bt*n_q, dq) f32
    mm_dtype = wb_ref.dtype
    v_mm = v_flat.astype(mm_dtype)
    q_mm = q_flat.astype(mm_dtype)

    # ---- shared projections: flat matmuls with M = bt*N rows (fill MXU) ----
    qwb = jnp.dot(q_mm, wb_ref[...], preferred_element_type=f32)    # (bt*n_q, dv)
    vwv = jnp.dot(v_mm, wvt_ref[...], preferred_element_type=f32)   # (bt*n_v, k)
    qwq = jnp.dot(q_mm, wqt_ref[...], preferred_element_type=f32)   # (bt*n_q, k)

    # 3-D views: split the leading (sublane) axis only; n_v / n_q are multiples
    # of 8 at the demo shapes so this is tile-aligned (no relayout copy).
    v3 = v_flat.reshape(bt, n_v, dv)
    q3 = q_flat.reshape(bt, n_q, dq)
    qwb3 = qwb.reshape(bt, n_q, dv)
    vwv3 = vwv.reshape(bt, n_v, k)
    qwq3 = qwq.reshape(bt, n_q, k)

    # ---- affinity C = Q W_b V^T  (bt, n_q, n_v): minor-dim-contraction MXU ----
    c = jnp.einsum('bnd,bmd->bnm', qwb3, v3, preferred_element_type=f32)

    # ---- H_v^T cross term  C^T (Q W_q^T)  (bt, n_v, k) ----
    # No Cv recompute: accumulate on the VPU (broadcast mul + add) over the
    # small n_q axis, which has slack while the MXU runs the other einsums.
    if n_q <= 32:
        cross_v = c[:, 0, :][:, :, None] * qwq3[:, 0, :][:, None, :]
        for n in range(1, n_q):
            cross_v = cross_v + c[:, n, :][:, :, None] * qwq3[:, n, :][:, None, :]
    else:
        # Fallback for long question sequences: validated MXU einsum pair.
        cv = jnp.einsum('bmd,bnd->bmn', v3, qwb3, preferred_element_type=f32)
        cross_v = jnp.einsum('bmn,bnk->bmk', cv, qwq3, preferred_element_type=f32)

    # ---- H_q^T cross term  C (V W_v^T)  (bt, n_q, k): canonical batched MXU ----
    cross_q = jnp.einsum('bnm,bmk->bnk', c, vwv3, preferred_element_type=f32)

    h_v = jnp.tanh(vwv3 + cross_v)           # (bt, n_v, k)  == H_v^T
    h_q = jnp.tanh(qwq3 + cross_q)           # (bt, n_q, k)  == H_q^T

    # ---- attention scores: VPU multiply + lane reduce over k (off the MXU) ----
    wh = wh_ref[...].astype(f32)             # (2, k): row 0 = w_hv^T, row 1 = w_hq^T
    s_v = jnp.sum(h_v * wh[0:1, :][None, :, :], axis=-1)    # (bt, n_v)
    s_q = jnp.sum(h_q * wh[1:2, :][None, :, :], axis=-1)    # (bt, n_q)

    # ---- softmax over tokens (exact reciprocal: outputs must sum to 1) ----
    e_v = jnp.exp(s_v - jnp.max(s_v, axis=-1, keepdims=True))
    a_v = e_v * pl.reciprocal(jnp.sum(e_v, axis=-1, keepdims=True))
    e_q = jnp.exp(s_q - jnp.max(s_q, axis=-1, keepdims=True))
    a_q = e_q * pl.reciprocal(jnp.sum(e_q, axis=-1, keepdims=True))

    # ---- attention-weighted pooling on the f32 values (not the bf16 copies) ----
    v_pool = jnp.sum(v3 * a_v[:, :, None], axis=1)           # (bt, dv)
    q_pool = jnp.sum(q3 * a_q[:, :, None], axis=1)           # (bt, dq)

    # ---- single lane-dense packed block: [a_v | a_q | v | q | zero pad] ----
    col = 0
    out_ref[:, col:col + n_v] = a_v
    col += n_v
    out_ref[:, col:col + n_q] = a_q
    col += n_q
    out_ref[:, col:col + dv] = v_pool
    col += dv
    out_ref[:, col:col + dq] = q_pool
    col += dq
    if col < p_out:
        out_ref[:, col:] = jnp.zeros((bt, p_out - col), f32)


def _default_block_b(batch):
    """grid=1 on single-TC v5e/v6e; 2-step parallel grid on dual-TC v7x."""
    kind = ""
    try:
        kind = jax.devices()[0].device_kind.lower().replace(" ", "")
    except Exception:
        pass
    two_tensorcores = ("v7" in kind) or ("7x" in kind)
    if two_tensorcores and batch % 16 == 0:
        return batch // 2      # both TensorCores get one grid step each
    return batch               # single TensorCore: one step, no loop overhead


def co_attention_forward(V, Q, W_b, W_v, W_q, w_hv, w_hq, *,
                         block_b=None, use_bf16=True):
    """V: (B, Nv, dv), Q: (B, Nq, dq). Returns (a_v, a_q, v, q) like PyTorch."""
    B, Nv, dv = V.shape
    Bq, Nq, dq = Q.shape
    assert B == Bq
    k = W_v.shape[0]

    if block_b is None:
        block_b = _default_block_b(B)
    assert B % block_b == 0, "block_b must divide B"
    assert block_b == B or block_b % 8 == 0, \
        "block_b must be the full batch or a multiple of 8 (sublane tiling)"
    nb = B // block_b

    # Lane-dense packed output row: [a_v | a_q | v | q | pad] per batch element.
    tot = Nv + Nq + dv + dq
    P = ((tot + 127) // 128) * 128

    # Values stay f32 (they feed the pooling); only MXU operands go bf16.
    wdt = jnp.bfloat16 if use_bf16 else jnp.float32
    V2 = V.astype(jnp.float32).reshape(B * Nv, dv)    # flatten in the wrapper
    Q2 = Q.astype(jnp.float32).reshape(B * Nq, dq)
    Wb_in = W_b.astype(wdt)                           # (dq, dv)
    WvT_in = W_v.T.astype(wdt)                        # (dv, k)
    WqT_in = W_q.T.astype(wdt)                        # (dq, k)
    wh_in = jnp.concatenate([w_hv.T, w_hq.T], axis=0).astype(jnp.float32)  # (2, k)

    packed = pl.pallas_call(
        _coattn_kernel,
        out_shape=jax.ShapeDtypeStruct((B, P), jnp.float32),
        grid_spec=pltpu.PrefetchScalarGridSpec(
            num_scalar_prefetch=0,
            grid=(nb,),
            in_specs=[
                pl.BlockSpec((block_b * Nv, dv), lambda b: (b, 0)),   # V (flat)
                pl.BlockSpec((block_b * Nq, dq), lambda b: (b, 0)),   # Q (flat)
                pl.BlockSpec((dq, dv), lambda b: (0, 0)),             # W_b
                pl.BlockSpec((dv, k), lambda b: (0, 0)),              # W_v^T
                pl.BlockSpec((dq, k), lambda b: (0, 0)),              # W_q^T
                pl.BlockSpec((2, k), lambda b: (0, 0)),               # [w_hv^T; w_hq^T]
            ],
            out_specs=pl.BlockSpec((block_b, P), lambda b: (b, 0)),   # packed slab
        ),
        compiler_params=pltpu.CompilerParams(
            dimension_semantics=("parallel",)),
    )(V2, Q2, Wb_in, WvT_in, WqT_in, wh_in)

    # Unpack the slab; match PyTorch output shapes exactly:
    #   a_v: (B, 1, Nv), a_q: (B, 1, Nq)
    #   v, q: torch.squeeze of (B, 1, d) -> (B, d) for B > 1, (d,) for B == 1.
    a_v = packed[:, :Nv][:, None, :]
    a_q = packed[:, Nv:Nv + Nq][:, None, :]
    v_pool = packed[:, Nv + Nq:Nv + Nq + dv]
    q_pool = packed[:, Nv + Nq + dv:Nv + Nq + dv + dq]
    v_out = jnp.squeeze(v_pool[:, None, :])
    q_out = jnp.squeeze(q_pool[:, None, :])
    return a_v, a_q, v_out, q_out


def _reference(V, Q, W_b, W_v, W_q, w_hv, w_hq):
    """Pure-JAX reference mirroring the PyTorch forward."""
    Vp = jnp.transpose(V, (0, 2, 1))                                   # (B, dv, Nv)
    C = jnp.einsum('bnq,bqm->bnm', Q, jnp.einsum('qd,bdm->bqm', W_b, Vp))
    WvV = jnp.einsum('kd,bdm->bkm', W_v, Vp)                           # (B, k, Nv)
    WqQ = jnp.einsum('kq,bqn->bkn', W_q, jnp.transpose(Q, (0, 2, 1)))  # (B, k, Nq)
    H_v = jnp.tanh(WvV + jnp.einsum('bkn,bnm->bkm', WqQ, C))
    H_q = jnp.tanh(WqQ + jnp.einsum('bkm,bnm->bkn', WvV, C))
    a_v = jax.nn.softmax(jnp.einsum('ko,bkm->bom', w_hv, H_v), axis=2)
    a_q = jax.nn.softmax(jnp.einsum('ko,bkn->bon', w_hq, H_q), axis=2)
    v = jnp.squeeze(jnp.einsum('bom,bmd->bod', a_v, V))
    q = jnp.squeeze(jnp.einsum('bon,bnq->boq', a_q, Q))
    return a_v, a_q, v, q


if __name__ == "__main__":
    # Small shapes consistent with the module. B=16 gives grid=1 on v5e/v6e
    # and a 2-step parallel grid on v7x.
    B, Nv, Nq = 16, 16, 8
    hidden_v_dim, hidden_q_dim, co_attention_dim = 32, 32, 32

    key = jax.random.PRNGKey(0)
    kv, kq, k1, k2, k3, k4, k5 = jax.random.split(key, 7)

    V = jax.random.normal(kv, (B, Nv, hidden_v_dim), dtype=jnp.float32)
    Q = jax.random.normal(kq, (B, Nq, hidden_q_dim), dtype=jnp.float32)

    # Deterministic "randn" parameters (same shapes as the nn.Module __init__).
    W_b = jax.random.normal(k1, (hidden_q_dim, hidden_v_dim), dtype=jnp.float32)
    W_v = jax.random.normal(k2, (co_attention_dim, hidden_v_dim), dtype=jnp.float32)
    W_q = jax.random.normal(k3, (co_attention_dim, hidden_q_dim), dtype=jnp.float32)
    w_hv = jax.random.normal(k4, (co_attention_dim, 1), dtype=jnp.float32)
    w_hq = jax.random.normal(k5, (co_attention_dim, 1), dtype=jnp.float32)

    # f32-operand run: checked tightly against the pure-JAX reference.
    a_v, a_q, v_pool, q_pool = co_attention_forward(
        V, Q, W_b, W_v, W_q, w_hv, w_hq, use_bf16=False)
    jax.block_until_ready((a_v, a_q, v_pool, q_pool))

    ra_v, ra_q, rv, rq = _reference(V, Q, W_b, W_v, W_q, w_hv, w_hq)
    assert a_v.shape == ra_v.shape and a_q.shape == ra_q.shape
    assert v_pool.shape == rv.shape and q_pool.shape == rq.shape
    assert jnp.allclose(a_v, ra_v, atol=2e-3, rtol=2e-3)
    assert jnp.allclose(a_q, ra_q, atol=2e-3, rtol=2e-3)
    assert jnp.allclose(v_pool, rv, atol=1e-2, rtol=1e-2)
    assert jnp.allclose(q_pool, rq, atol=1e-2, rtol=1e-2)

    # Default (bf16 MXU-operand) run: exercise the fast path and sanity check
    # shapes / softmax normalization / finiteness.
    b_av, b_aq, b_v, b_q = co_attention_forward(V, Q, W_b, W_v, W_q, w_hv, w_hq)
    jax.block_until_ready((b_av, b_aq, b_v, b_q))
    assert b_av.shape == ra_v.shape and b_aq.shape == ra_q.shape
    assert b_v.shape == rv.shape and b_q.shape == rq.shape
    assert jnp.allclose(jnp.sum(b_av, axis=-1), 1.0, atol=1e-3)
    assert jnp.allclose(jnp.sum(b_aq, axis=-1), 1.0, atol=1e-3)
    assert bool(jnp.all(jnp.isfinite(b_v))) and bool(jnp.all(jnp.isfinite(b_q)))

    print("KERNEL_OK")
</pallas_src>

<mosaic_0001>
module attributes {stable_mosaic.version = 11 : i64} {
  func.func @_coattn_kernel(%arg0: i32, %arg1: memref<256x32xf32, #tpu.memory_space<vmem>>, %arg2: memref<128x32xf32, #tpu.memory_space<vmem>>, %arg3: memref<32x32xf32, #tpu.memory_space<vmem>>, %arg4: memref<32x32xf32, #tpu.memory_space<vmem>>, %arg5: memref<32x32xf32, #tpu.memory_space<vmem>>, %arg6: memref<2x32xf32, #tpu.memory_space<vmem>>, %arg7: memref<16x128xf32, #tpu.memory_space<vmem>>) attributes {dimension_semantics = [#tpu.dimension_semantics<parallel>], iteration_bounds = array<i64: 1>, scalar_prefetch = 0 : i64, scratch_operands = 0 : i64, tpu.core_type = #tpu.core_type<tc>, window_params = [{transform_indices = @transform_0, window_bounds = array<i64: 256, 32>}, {transform_indices = @transform_1, window_bounds = array<i64: 128, 32>}, {pipeline_mode = #tpu.pipeline_mode<synchronous>, transform_indices = @transform_2, window_bounds = array<i64: 32, 32>}, {pipeline_mode = #tpu.pipeline_mode<synchronous>, transform_indices = @transform_3, window_bounds = array<i64: 32, 32>}, {pipeline_mode = #tpu.pipeline_mode<synchronous>, transform_indices = @transform_4, window_bounds = array<i64: 32, 32>}, {pipeline_mode = #tpu.pipeline_mode<synchronous>, transform_indices = @transform_5, window_bounds = array<i64: 2, 32>}, {transform_indices = @transform_6, window_bounds = array<i64: 16, 128>}]} {
    %c0 = arith.constant 0 : index
    %c0_0 = arith.constant 0 : index
    %0 = vector.load %arg1[%c0, %c0_0] : memref<256x32xf32, #tpu.memory_space<vmem>>, vector<256x32xf32>
    %c0_1 = arith.constant 0 : index
    %c0_2 = arith.constant 0 : index
    %1 = vector.load %arg2[%c0_1, %c0_2] : memref<128x32xf32, #tpu.memory_space<vmem>>, vector<128x32xf32>
    %c0_3 = arith.constant 0 : index
    %c0_4 = arith.constant 0 : index
    %2 = vector.load %arg3[%c0_3, %c0_4] : memref<32x32xf32, #tpu.memory_space<vmem>>, vector<32x32xf32>
    %cst = arith.constant dense<0.000000e+00> : vector<128x32xf32>
    %3 = tpu.matmul %1, %2, %cst {dimension_numbers = #tpu.dot_dimension_numbers<[1], [0], [0], [1], [0, 0, 1, 1], [], []>} : vector<128x32xf32>, vector<32x32xf32>, vector<128x32xf32> -> vector<128x32xf32>
    %c0_5 = arith.constant 0 : index
    %c0_6 = arith.constant 0 : index
    %4 = vector.load %arg4[%c0_5, %c0_6] : memref<32x32xf32, #tpu.memory_space<vmem>>, vector<32x32xf32>
    %cst_7 = arith.constant dense<0.000000e+00> : vector<256x32xf32>
    %5 = tpu.matmul %0, %4, %cst_7 {dimension_numbers = #tpu.dot_dimension_numbers<[1], [0], [0], [1], [0, 0, 1, 1], [], []>} : vector<256x32xf32>, vector<32x32xf32>, vector<256x32xf32> -> vector<256x32xf32>
    %c0_8 = arith.constant 0 : index
    %c0_9 = arith.constant 0 : index
    %6 = vector.load %arg5[%c0_8, %c0_9] : memref<32x32xf32, #tpu.memory_space<vmem>>, vector<32x32xf32>
    %cst_10 = arith.constant dense<0.000000e+00> : vector<128x32xf32>
    %7 = tpu.matmul %1, %6, %cst_10 {dimension_numbers = #tpu.dot_dimension_numbers<[1], [0], [0], [1], [0, 0, 1, 1], [], []>} : vector<128x32xf32>, vector<32x32xf32>, vector<128x32xf32> -> vector<128x32xf32>
    %8 = vector.shape_cast %0 : vector<256x32xf32> to vector<16x16x32xf32>
    %9 = vector.shape_cast %1 : vector<128x32xf32> to vector<16x8x32xf32>
    %10 = vector.shape_cast %3 : vector<128x32xf32> to vector<16x8x32xf32>
    %11 = vector.shape_cast %5 : vector<256x32xf32> to vector<16x16x32xf32>
    %12 = vector.shape_cast %7 : vector<128x32xf32> to vector<16x8x32xf32>
    "tpu.trace_start"() <{level = 10 : i32, message = "bnd,bmd->bnm"}> : () -> ()
    %cst_11 = arith.constant dense<0.000000e+00> : vector<16x8x16xf32>
    %13 = tpu.matmul %10, %8, %cst_11 {dimension_numbers = #tpu.dot_dimension_numbers<[2], [2], [1], [1], [0, 0, 0, 1, 1, 1], [0], [0]>} : vector<16x8x32xf32>, vector<16x16x32xf32>, vector<16x8x16xf32> -> vector<16x8x16xf32>
    "tpu.trace_stop"() : () -> ()
    %14 = vector.extract_strided_slice %13 {offsets = [0, 0, 0], sizes = [16, 1, 16], strides = [1, 1, 1]} : vector<16x8x16xf32> to vector<16x1x16xf32>
    %15 = vector.shape_cast %14 : vector<16x1x16xf32> to vector<16x16xf32>
    %16 = vector.shape_cast %15 : vector<16x16xf32> to vector<16x16x1xf32>
    %17 = vector.extract_strided_slice %12 {offsets = [0, 0, 0], sizes = [16, 1, 32], strides = [1, 1, 1]} : vector<16x8x32xf32> to vector<16x1x32xf32>
    %18 = vector.shape_cast %17 : vector<16x1x32xf32> to vector<16x32xf32>
    %19 = vector.shape_cast %18 : vector<16x32xf32> to vector<16x1x32xf32>
    %20 = vector.broadcast %16 : vector<16x16x1xf32> to vector<16x16x32xf32>
    %21 = vector.broadcast %19 : vector<16x1x32xf32> to vector<16x16x32xf32>
    %22 = arith.mulf %20, %21 : vector<16x16x32xf32>
    %23 = vector.extract_strided_slice %13 {offsets = [0, 1, 0], sizes = [16, 1, 16], strides = [1, 1, 1]} : vector<16x8x16xf32> to vector<16x1x16xf32>
    %24 = vector.shape_cast %23 : vector<16x1x16xf32> to vector<16x16xf32>
    %25 = vector.shape_cast %24 : vector<16x16xf32> to vector<16x16x1xf32>
    %26 = vector.extract_strided_slice %12 {offsets = [0, 1, 0], sizes = [16, 1, 32], strides = [1, 1, 1]} : vector<16x8x32xf32> to vector<16x1x32xf32>
    %27 = vector.shape_cast %26 : vector<16x1x32xf32> to vector<16x32xf32>
    %28 = vector.shape_cast %27 : vector<16x32xf32> to vector<16x1x32xf32>
    %29 = vector.broadcast %25 : vector<16x16x1xf32> to vector<16x16x32xf32>
    %30 = vector.broadcast %28 : vector<16x1x32xf32> to vector<16x16x32xf32>
    %31 = arith.mulf %29, %30 : vector<16x16x32xf32>
    %32 = arith.addf %22, %31 : vector<16x16x32xf32>
    %33 = vector.extract_strided_slice %13 {offsets = [0, 2, 0], sizes = [16, 1, 16], strides = [1, 1, 1]} : vector<16x8x16xf32> to vector<16x1x16xf32>
    %34 = vector.shape_cast %33 : vector<16x1x16xf32> to vector<16x16xf32>
    %35 = vector.shape_cast %34 : vector<16x16xf32> to vector<16x16x1xf32>
    %36 = vector.extract_strided_slice %12 {offsets = [0, 2, 0], sizes = [16, 1, 32], strides = [1, 1, 1]} : vector<16x8x32xf32> to vector<16x1x32xf32>
    %37 = vector.shape_cast %36 : vector<16x1x32xf32> to vector<16x32xf32>
    %38 = vector.shape_cast %37 : vector<16x32xf32> to vector<16x1x32xf32>
    %39 = vector.broadcast %35 : vector<16x16x1xf32> to vector<16x16x32xf32>
    %40 = vector.broadcast %38 : vector<16x1x32xf32> to vector<16x16x32xf32>
    %41 = arith.mulf %39, %40 : vector<16x16x32xf32>
    %42 = arith.addf %32, %41 : vector<16x16x32xf32>
    %43 = vector.extract_strided_slice %13 {offsets = [0, 3, 0], sizes = [16, 1, 16], strides = [1, 1, 1]} : vector<16x8x16xf32> to vector<16x1x16xf32>
    %44 = vector.shape_cast %43 : vector<16x1x16xf32> to vector<16x16xf32>
    %45 = vector.shape_cast %44 : vector<16x16xf32> to vector<16x16x1xf32>
    %46 = vector.extract_strided_slice %12 {offsets = [0, 3, 0], sizes = [16, 1, 32], strides = [1, 1, 1]} : vector<16x8x32xf32> to vector<16x1x32xf32>
    %47 = vector.shape_cast %46 : vector<16x1x32xf32> to vector<16x32xf32>
    %48 = vector.shape_cast %47 : vector<16x32xf32> to vector<16x1x32xf32>
    %49 = vector.broadcast %45 : vector<16x16x1xf32> to vector<16x16x32xf32>
    %50 = vector.broadcast %48 : vector<16x1x32xf32> to vector<16x16x32xf32>
    %51 = arith.mulf %49, %50 : vector<16x16x32xf32>
    %52 = arith.addf %42, %51 : vector<16x16x32xf32>
    %53 = vector.extract_strided_slice %13 {offsets = [0, 4, 0], sizes = [16, 1, 16], strides = [1, 1, 1]} : vector<16x8x16xf32> to vector<16x1x16xf32>
    %54 = vector.shape_cast %53 : vector<16x1x16xf32> to vector<16x16xf32>
    %55 = vector.shape_cast %54 : vector<16x16xf32> to vector<16x16x1xf32>
    %56 = vector.extract_strided_slice %12 {offsets = [0, 4, 0], sizes = [16, 1, 32], strides = [1, 1, 1]} : vector<16x8x32xf32> to vector<16x1x32xf32>
    %57 = vector.shape_cast %56 : vector<16x1x32xf32> to vector<16x32xf32>
    %58 = vector.shape_cast %57 : vector<16x32xf32> to vector<16x1x32xf32>
    %59 = vector.broadcast %55 : vector<16x16x1xf32> to vector<16x16x32xf32>
    %60 = vector.broadcast %58 : vector<16x1x32xf32> to vector<16x16x32xf32>
    %61 = arith.mulf %59, %60 : vector<16x16x32xf32>
    %62 = arith.addf %52, %61 : vector<16x16x32xf32>
    %63 = vector.extract_strided_slice %13 {offsets = [0, 5, 0], sizes = [16, 1, 16], strides = [1, 1, 1]} : vector<16x8x16xf32> to vector<16x1x16xf32>
    %64 = vector.shape_cast %63 : vector<16x1x16xf32> to vector<16x16xf32>
    %65 = vector.shape_cast %64 : vector<16x16xf32> to vector<16x16x1xf32>
    %66 = vector.extract_strided_slice %12 {offsets = [0, 5, 0], sizes = [16, 1, 32], strides = [1, 1, 1]} : vector<16x8x32xf32> to vector<16x1x32xf32>
    %67 = vector.shape_cast %66 : vector<16x1x32xf32> to vector<16x32xf32>
    %68 = vector.shape_cast %67 : vector<16x32xf32> to vector<16x1x32xf32>
    %69 = vector.broadcast %65 : vector<16x16x1xf32> to vector<16x16x32xf32>
    %70 = vector.broadcast %68 : vector<16x1x32xf32> to vector<16x16x32xf32>
    %71 = arith.mulf %69, %70 : vector<16x16x32xf32>
    %72 = arith.addf %62, %71 : vector<16x16x32xf32>
    %73 = vector.extract_strided_slice %13 {offsets = [0, 6, 0], sizes = [16, 1, 16], strides = [1, 1, 1]} : vector<16x8x16xf32> to vector<16x1x16xf32>
    %74 = vector.shape_cast %73 : vector<16x1x16xf32> to vector<16x16xf32>
    %75 = vector.shape_cast %74 : vector<16x16xf32> to vector<16x16x1xf32>
    %76 = vector.extract_strided_slice %12 {offsets = [0, 6, 0], sizes = [16, 1, 32], strides = [1, 1, 1]} : vector<16x8x32xf32> to vector<16x1x32xf32>
    %77 = vector.shape_cast %76 : vector<16x1x32xf32> to vector<16x32xf32>
    %78 = vector.shape_cast %77 : vector<16x32xf32> to vector<16x1x32xf32>
    %79 = vector.broadcast %75 : vector<16x16x1xf32> to vector<16x16x32xf32>
    %80 = vector.broadcast %78 : vector<16x1x32xf32> to vector<16x16x32xf32>
    %81 = arith.mulf %79, %80 : vector<16x16x32xf32>
    %82 = arith.addf %72, %81 : vector<16x16x32xf32>
    %83 = vector.extract_strided_slice %13 {offsets = [0, 7, 0], sizes = [16, 1, 16], strides = [1, 1, 1]} : vector<16x8x16xf32> to vector<16x1x16xf32>
    %84 = vector.shape_cast %83 : vector<16x1x16xf32> to vector<16x16xf32>
    %85 = vector.shape_cast %84 : vector<16x16xf32> to vector<16x16x1xf32>
    %86 = vector.extract_strided_slice %12 {offsets = [0, 7, 0], sizes = [16, 1, 32], strides = [1, 1, 1]} : vector<16x8x32xf32> to vector<16x1x32xf32>
    %87 = vector.shape_cast %86 : vector<16x1x32xf32> to vector<16x32xf32>
    %88 = vector.shape_cast %87 : vector<16x32xf32> to vector<16x1x32xf32>
    %89 = vector.broadcast %85 : vector<16x16x1xf32> to vector<16x16x32xf32>
    %90 = vector.broadcast %88 : vector<16x1x32xf32> to vector<16x16x32xf32>
    %91 = arith.mulf %89, %90 : vector<16x16x32xf32>
    %92 = arith.addf %82, %91 : vector<16x16x32xf32>
    "tpu.trace_start"() <{level = 10 : i32, message = "bnm,bmk->bnk"}> : () -> ()
    %cst_12 = arith.constant dense<0.000000e+00> : vector<16x8x32xf32>
    %93 = tpu.matmul %13, %11, %cst_12 {dimension_numbers = #tpu.dot_dimension_numbers<[2], [1], [1], [2], [0, 0, 0, 1, 1, 2], [0], [0]>} : vector<16x8x16xf32>, vector<16x16x32xf32>, vector<16x8x32xf32> -> vector<16x8x32xf32>
    "tpu.trace_stop"() : () -> ()
    %94 = arith.addf %11, %92 : vector<16x16x32xf32>
    %95 = math.tanh %94 : vector<16x16x32xf32>
    %96 = arith.addf %12, %93 : vector<16x8x32xf32>
    %97 = math.tanh %96 : vector<16x8x32xf32>
    %c0_13 = arith.constant 0 : index
    %c0_14 = arith.constant 0 : index
    %98 = vector.load %arg6[%c0_13, %c0_14] : memref<2x32xf32, #tpu.memory_space<vmem>>, vector<2x32xf32>
    %99 = vector.extract_strided_slice %98 {offsets = [0, 0], sizes = [1, 32], strides = [1, 1]} : vector<2x32xf32> to vector<1x32xf32>
    %100 = vector.shape_cast %99 : vector<1x32xf32> to vector<1x1x32xf32>
    %101 = vector.broadcast %100 : vector<1x1x32xf32> to vector<16x16x32xf32>
    %102 = arith.mulf %95, %101 : vector<16x16x32xf32>
    %cst_15 = arith.constant dense<0.000000e+00> : vector<16x16xf32>
    %103 = vector.multi_reduction <add>, %102, %cst_15 [2] : vector<16x16x32xf32> to vector<16x16xf32>
    %104 = vector.extract_strided_slice %98 {offsets = [1, 0], sizes = [1, 32], strides = [1, 1]} : vector<2x32xf32> to vector<1x32xf32>
    %105 = vector.shape_cast %104 : vector<1x32xf32> to vector<1x1x32xf32>
    %106 = vector.broadcast %105 : vector<1x1x32xf32> to vector<16x8x32xf32>
    %107 = arith.mulf %97, %106 : vector<16x8x32xf32>
    %cst_16 = arith.constant dense<0.000000e+00> : vector<16x8xf32>
    %108 = vector.multi_reduction <add>, %107, %cst_16 [2] : vector<16x8x32xf32> to vector<16x8xf32>
    %cst_17 = arith.constant dense<0xFF800000> : vector<16xf32>
    %109 = vector.multi_reduction <maximumf>, %103, %cst_17 [1] : vector<16x16xf32> to vector<16xf32>
    %110 = vector.shape_cast %109 : vector<16xf32> to vector<16x1xf32>
    %111 = vector.broadcast %110 : vector<16x1xf32> to vector<16x16xf32>
    %112 = arith.subf %103, %111 : vector<16x16xf32>
    %113 = math.exp %112 : vector<16x16xf32>
    %cst_18 = arith.constant dense<0.000000e+00> : vector<16xf32>
    %114 = vector.multi_reduction <add>, %113, %cst_18 [1] : vector<16x16xf32> to vector<16xf32>
    %115 = vector.shape_cast %114 : vector<16xf32> to vector<16x1xf32>
    %116 = tpu.reciprocal %115 : vector<16x1xf32> -> vector<16x1xf32>
    %117 = vector.broadcast %116 : vector<16x1xf32> to vector<16x16xf32>
    %118 = arith.mulf %113, %117 : vector<16x16xf32>
    %cst_19 = arith.constant dense<0xFF800000> : vector<16xf32>
    %119 = vector.multi_reduction <maximumf>, %108, %cst_19 [1] : vector<16x8xf32> to vector<16xf32>
    %120 = vector.shape_cast %119 : vector<16xf32> to vector<16x1xf32>
    %121 = vector.broadcast %120 : vector<16x1xf32> to vector<16x8xf32>
    %122 = arith.subf %108, %121 : vector<16x8xf32>
    %123 = math.exp %122 : vector<16x8xf32>
    %cst_20 = arith.constant dense<0.000000e+00> : vector<16xf32>
    %124 = vector.multi_reduction <add>, %123, %cst_20 [1] : vector<16x8xf32> to vector<16xf32>
    %125 = vector.shape_cast %124 : vector<16xf32> to vector<16x1xf32>
    %126 = tpu.reciprocal %125 : vector<16x1xf32> -> vector<16x1xf32>
    %127 = vector.broadcast %126 : vector<16x1xf32> to vector<16x8xf32>
    %128 = arith.mulf %123, %127 : vector<16x8xf32>
    %129 = vector.shape_cast %118 : vector<16x16xf32> to vector<16x16x1xf32>
    %130 = vector.broadcast %129 : vector<16x16x1xf32> to vector<16x16x32xf32>
    %131 = arith.mulf %8, %130 : vector<16x16x32xf32>
    %cst_21 = arith.constant dense<0.000000e+00> : vector<16x32xf32>
    %132 = vector.multi_reduction <add>, %131, %cst_21 [1] : vector<16x16x32xf32> to vector<16x32xf32>
    %133 = vector.shape_cast %128 : vector<16x8xf32> to vector<16x8x1xf32>
    %134 = vector.broadcast %133 : vector<16x8x1xf32> to vector<16x8x32xf32>
    %135 = arith.mulf %9, %134 : vector<16x8x32xf32>
    %cst_22 = arith.constant dense<0.000000e+00> : vector<16x32xf32>
    %136 = vector.multi_reduction <add>, %135, %cst_22 [1] : vector<16x8x32xf32> to vector<16x32xf32>
    %c0_23 = arith.constant 0 : index
    %c0_24 = arith.constant 0 : index
    %137 = vector.load %arg7[%c0_23, %c0_24] : memref<16x128xf32, #tpu.memory_space<vmem>>, vector<16x16xf32>
    tpu.vector_store %arg7[%c0_23, %c0_24], %118 {strides = array<i32>} : memref<16x128xf32, #tpu.memory_space<vmem>>, vector<16x16xf32>,
    %c0_25 = arith.constant 0 : index
    %c16 = arith.constant 16 : index
    %138 = vector.load %arg7[%c0_25, %c16] : memref<16x128xf32, #tpu.memory_space<vmem>>, vector<16x8xf32>
    tpu.vector_store %arg7[%c0_25, %c16], %128 {strides = array<i32>} : memref<16x128xf32, #tpu.memory_space<vmem>>, vector<16x8xf32>,
    %c0_26 = arith.constant 0 : index
    %c24 = arith.constant 24 : index
    %139 = vector.load %arg7[%c0_26, %c24] : memref<16x128xf32, #tpu.memory_space<vmem>>, vector<16x32xf32>
    tpu.vector_store %arg7[%c0_26, %c24], %132 {strides = array<i32>} : memref<16x128xf32, #tpu.memory_space<vmem>>, vector<16x32xf32>,
    %c0_27 = arith.constant 0 : index
    %c56 = arith.constant 56 : index
    %140 = vector.load %arg7[%c0_27, %c56] : memref<16x128xf32, #tpu.memory_space<vmem>>, vector<16x32xf32>
    tpu.vector_store %arg7[%c0_27, %c56], %136 {strides = array<i32>} : memref<16x128xf32, #tpu.memory_space<vmem>>, vector<16x32xf32>,
    %cst_28 = arith.constant 0.000000e+00 : f32
    %141 = vector.broadcast %cst_28 : f32 to vector<16x40xf32>
    %c0_29 = arith.constant 0 : index
    %c88 = arith.constant 88 : index
    %142 = vector.load %arg7[%c0_29, %c88] : memref<16x128xf32, #tpu.memory_space<vmem>>, vector<16x40xf32>
    tpu.vector_store %arg7[%c0_29, %c88], %141 {strides = array<i32>} : memref<16x128xf32, #tpu.memory_space<vmem>>, vector<16x40xf32>,
    return
  }
  func.func @transform_0(%arg0: i32) -> (i32, i32) {
    %c0_i32 = arith.constant 0 : i32
    %c0_i32_0 = arith.constant 0 : i32
    return %arg0, %c0_i32 : i32, i32
  }
  func.func @transform_1(%arg0: i32) -> (i32, i32) {
    %c0_i32 = arith.constant 0 : i32
    %c0_i32_0 = arith.constant 0 : i32
    return %arg0, %c0_i32 : i32, i32
  }
  func.func @transform_2(%arg0: i32) -> (i32, i32) {
    %c0_i32 = arith.constant 0 : i32
    %c0_i32_0 = arith.constant 0 : i32
    %c0_i32_1 = arith.constant 0 : i32
    return %c0_i32, %c0_i32_0 : i32, i32
  }
  func.func @transform_3(%arg0: i32) -> (i32, i32) {
    %c0_i32 = arith.constant 0 : i32
    %c0_i32_0 = arith.constant 0 : i32
    %c0_i32_1 = arith.constant 0 : i32
    return %c0_i32, %c0_i32_0 : i32, i32
  }
  func.func @transform_4(%arg0: i32) -> (i32, i32) {
    %c0_i32 = arith.constant 0 : i32
    %c0_i32_0 = arith.constant 0 : i32
    %c0_i32_1 = arith.constant 0 : i32
    return %c0_i32, %c0_i32_0 : i32, i32
  }
  func.func @transform_5(%arg0: i32) -> (i32, i32) {
    %c0_i32 = arith.constant 0 : i32
    %c0_i32_0 = arith.constant 0 : i32
    %c0_i32_1 = arith.constant 0 : i32
    return %c0_i32, %c0_i32_0 : i32, i32
  }
  func.func @transform_6(%arg0: i32) -> (i32, i32) {
    %c0_i32 = arith.constant 0 : i32
    %c0_i32_0 = arith.constant 0 : i32
    return %arg0, %c0_i32 : i32, i32
  }
}

</mosaic_0001>

<llo_original>
// kernel: tpu_custom_call.1
$region0: #{tpu_custom_call.1}
  #allocation0 [shape = 'u32[]', space=smem, size = 0x4, offset = 0x4, fixed_abs, tag = 'smem constant byte address 0x4 - core index']
  #allocation1 [shape = 'u32[72,128]{1,0:T(1,128)}', space=vmem, size = 0x9000, scoped, tag = 'internal scratch']
  %s0 = inlined_call_operand.vmem [shape: f32[256,32], index: 0, kind: input, shape index: {}]
  %s1 = inlined_call_operand.vmem [shape: f32[128,32], index: 1, kind: input, shape index: {}]
  %s2 = inlined_call_operand.vmem [shape: f32[32,32], index: 2, kind: input, shape index: {}]
  %s3 = inlined_call_operand.vmem [shape: f32[32,32], index: 3, kind: input, shape index: {}]
  %s4 = inlined_call_operand.vmem [shape: f32[32,32], index: 4, kind: input, shape index: {}]
  %s5 = inlined_call_operand.vmem [shape: f32[2,32], index: 5, kind: input, shape index: {}]
  %s6 = inlined_call_operand.hbm [shape: f32[16,128], index: 6, kind: output, shape index: {}]
  %s7 = sld [smem:[#allocation0]]
  $region34: #{tpu_custom_call.1} parent=0
    _
  %s9 = ssub.s32 1, %s7
  %s10 = scalar_select 0, %s9, %s7
  $region1: #{tpu_custom_call.1} parent=0
    #allocation2 [shape = 'u8[8192]{0}', space=vmem, size = 0x2000, scoped, tag = 'output window, operand 0, single buffered']
    #allocation3 [shape = 's32[1]{0}', space=sflag, size = 0x4, scoped, tag = 'scoped memory for tpu_custom_call.1']
    %11 = vsyncpa [#allocation3], 0
    // Predicated region
    $region2: #{tpu_custom_call.1} parent=1 // pred_check
      _
    $region3: #{tpu_custom_call.1} parent=1 // pred_check_branch
      %13 = sbr.rel (0) target = $region5
    $region4: #{tpu_custom_call.1} parent=1 // pred_region
      _
    $region5: #{tpu_custom_call.1} parent=1 // pred_fallthru
      _
    // Predicated region
    $region6: #{tpu_custom_call.1} parent=1 // pred_check
      _
    $region7: #{tpu_custom_call.1} parent=1 // pred_check_branch
      %15 = sbr.rel (0) target = $region9
    $region8: #{tpu_custom_call.1} parent=1 // pred_region
      _
    $region9: #{tpu_custom_call.1} parent=1 // pred_fallthru
      _
    // Predicated region
    $region10: #{tpu_custom_call.1} parent=1 // pred_check
      _
    $region11: #{tpu_custom_call.1} parent=1 // pred_check_branch
      %17 = sbr.rel (0) target = $region13
    $region12: #{tpu_custom_call.1} parent=1 // pred_region
      _
    $region13: #{tpu_custom_call.1} parent=1 // pred_fallthru
      _
    // Predicated region
    $region14: #{tpu_custom_call.1} parent=1 // pred_check
      _
    $region15: #{tpu_custom_call.1} parent=1 // pred_check_branch
      %19 = sbr.rel (0) target = $region17
    $region16: #{tpu_custom_call.1} parent=1 // pred_region
      _
    $region17: #{tpu_custom_call.1} parent=1 // pred_fallthru
      _
    // Predicated region
    $region18: #{tpu_custom_call.1} parent=1 // pred_check
      _
    $region19: #{tpu_custom_call.1} parent=1 // pred_check_branch
      %21 = sbr.rel (0) target = $region21
    $region20: #{tpu_custom_call.1} parent=1 // pred_region
      _
    $region21: #{tpu_custom_call.1} parent=1 // pred_fallthru
      _
    // Predicated region
    $region22: #{tpu_custom_call.1} parent=1 // pred_check
      _
    $region23: #{tpu_custom_call.1} parent=1 // pred_check_branch
      %23 = sbr.rel (0) target = $region25
    $region24: #{tpu_custom_call.1} parent=1 // pred_region
      _
    $region25: #{tpu_custom_call.1} parent=1 // pred_fallthru
      _
    %v24 = vld [vmem:[%s0] sm:$0xff]
    %v25 = vld [vmem:[%s0 + $0x8] sm:$0xff]
    %v26 = vld [vmem:[%s0 + $0x10] sm:$0xff]
    %v27 = vld [vmem:[%s0 + $0x18] sm:$0xff]
    %v28 = vld [vmem:[%s0 + $0x20] sm:$0xff]
    %v29 = vld [vmem:[%s0 + $0x28] sm:$0xff]
    %v30 = vld [vmem:[%s0 + $0x30] sm:$0xff]
    %v31 = vld [vmem:[%s0 + $0x38] sm:$0xff]
    %v32 = vld [vmem:[%s0 + $0x40] sm:$0xff]
    %v33 = vld [vmem:[%s0 + $0x48] sm:$0xff]
    %v34 = vld [vmem:[%s0 + $0x50] sm:$0xff]
    %v35 = vld [vmem:[%s0 + $0x58] sm:$0xff]
    %v36 = vld [vmem:[%s0 + $0x60] sm:$0xff]
    %v37 = vld [vmem:[%s0 + $0x68] sm:$0xff]
    %v38 = vld [vmem:[%s0 + $0x70] sm:$0xff]
    %v39 = vld [vmem:[%s0 + $0x78] sm:$0xff]
    %v40 = vld [vmem:[%s0 + $0x80] sm:$0xff]
    %v41 = vld [vmem:[%s0 + $0x88] sm:$0xff]
    %v42 = vld [vmem:[%s0 + $0x90] sm:$0xff]
    %v43 = vld [vmem:[%s0 + $0x98] sm:$0xff]
    %v44 = vld [vmem:[%s0 + $0xa0] sm:$0xff]
    %v45 = vld [vmem:[%s0 + $0xa8] sm:$0xff]
    %v46 = vld [vmem:[%s0 + $0xb0] sm:$0xff]
    %v47 = vld [vmem:[%s0 + $0xb8] sm:$0xff]
    %v48 = vld [vmem:[%s0 + $0xc0] sm:$0xff]
    %v49 = vld [vmem:[%s0 + $0xc8] sm:$0xff]
    %v50 = vld [vmem:[%s0 + $0xd0] sm:$0xff]
    %v51 = vld [vmem:[%s0 + $0xd8] sm:$0xff]
    %v52 = vld [vmem:[%s0 + $0xe0] sm:$0xff]
    %v53 = vld [vmem:[%s0 + $0xe8] sm:$0xff]
    %v54 = vld [vmem:[%s0 + $0xf0] sm:$0xff]
    %v55 = vld [vmem:[%s0 + $0xf8] sm:$0xff]
    %v56 = vld [vmem:[%s1] sm:$0xff]
    %v57 = vld [vmem:[%s1 + $0x8] sm:$0xff]
    %v58 = vld [vmem:[%s1 + $0x10] sm:$0xff]
    %v59 = vld [vmem:[%s1 + $0x18] sm:$0xff]
    %v60 = vld [vmem:[%s1 + $0x20] sm:$0xff]
    %v61 = vld [vmem:[%s1 + $0x28] sm:$0xff]
    %v62 = vld [vmem:[%s1 + $0x30] sm:$0xff]
    %v63 = vld [vmem:[%s1 + $0x38] sm:$0xff]
    %v64 = vld [vmem:[%s1 + $0x40] sm:$0xff]
    %v65 = vld [vmem:[%s1 + $0x48] sm:$0xff]
    %v66 = vld [vmem:[%s1 + $0x50] sm:$0xff]
    %v67 = vld [vmem:[%s1 + $0x58] sm:$0xff]
    %v68 = vld [vmem:[%s1 + $0x60] sm:$0xff]
    %v69 = vld [vmem:[%s1 + $0x68] sm:$0xff]
    %v70 = vld [vmem:[%s1 + $0x70] sm:$0xff]
    %v71 = vld [vmem:[%s1 + $0x78] sm:$0xff]
    %v72 = vld [vmem:[%s2] sm:$0xff]
    %v73 = vld [vmem:[%s2 + $0x8] sm:$0xff]
    %v74 = vld [vmem:[%s2 + $0x10] sm:$0xff]
    %v75 = vld [vmem:[%s2 + $0x18] sm:$0xff]
    %vm76 = vcmask 261120
    %v78 = vsel %vm76, %v56, 0
    %v81 = vsel %vm76, %v57, 0
    %v84 = vsel %vm76, %v58, 0
    %v87 = vsel %vm76, %v59, 0
    %v90 = vsel %vm76, %v60, 0
    %v93 = vsel %vm76, %v61, 0
    %v96 = vsel %vm76, %v62, 0
    %v99 = vsel %vm76, %v63, 0
    %v102 = vsel %vm76, %v64, 0
    %v105 = vsel %vm76, %v65, 0
    %v108 = vsel %vm76, %v66, 0
    %v111 = vsel %vm76, %v67, 0
    %v114 = vsel %vm76, %v68, 0
    %v117 = vsel %vm76, %v69, 0
    %v120 = vsel %vm76, %v70, 0
    %v123 = vsel %vm76, %v71, 0
    %125 = vmatpush.msra.mxu0 0.0
    %126 = vmatpush.msra.mxu0 0.0
    %127 = vmatpush.msra.mxu0 0.0
    %128 = vmatpush.msra.mxu0 0.0
    %129 = vmatpush.msra.mxu0 0.0
    %130 = vmatpush.msra.mxu0 0.0
    %131 = vmatpush.msra.mxu0 0.0
    %132 = vmatpush.msra.mxu0 0.0
    %133 = vmatpush.msra.mxu0 0.0
    %134 = vmatpush.msra.mxu0 0.0
    %135 = vmatpush.msra.mxu0 0.0
    %136 = vmatpush.msra.mxu0 0.0
    %137 = vmatpush.msra.mxu0 %v75
    %138 = vmatpush.msra.mxu0 %v74
    %139 = vmatpush.msra.mxu0 %v73
    %140 = vmatpush.msra.mxu0 %v72
    %141 = vmatmul.f32.gmra.mxu0 %v78
    %v142 = vpop.f32.mrf.mxu0
    %v143 = vadd.f32 0.0, %v142
    %144 = vmatmul.f32.gmra.mxu0 %v81
    %v145 = vpop.f32.mrf.mxu0
    %v146 = vadd.f32 0.0, %v145
    %147 = vmatmul.f32.gmra.mxu0 %v84
    %v148 = vpop.f32.mrf.mxu0
    %v149 = vadd.f32 0.0, %v148
    %150 = vmatmul.f32.gmra.mxu0 %v87
    %v151 = vpop.f32.mrf.mxu0
    %v152 = vadd.f32 0.0, %v151
    %153 = vmatmul.f32.gmra.mxu0 %v90
    %v154 = vpop.f32.mrf.mxu0
    %v155 = vadd.f32 0.0, %v154
    %156 = vmatmul.f32.gmra.mxu0 %v93
    %v157 = vpop.f32.mrf.mxu0
    %v158 = vadd.f32 0.0, %v157
    %159 = vmatmul.f32.gmra.mxu0 %v96
    %v160 = vpop.f32.mrf.mxu0
    %v161 = vadd.f32 0.0, %v160
    %162 = vmatmul.f32.gmra.mxu0 %v99
    %v163 = vpop.f32.mrf.mxu0
    %v164 = vadd.f32 0.0, %v163
    %165 = vmatmul.f32.gmra.mxu0 %v102
    %v166 = vpop.f32.mrf.mxu0
    %v167 = vadd.f32 0.0, %v166
    %168 = vmatmul.f32.gmra.mxu0 %v105
    %v169 = vpop.f32.mrf.mxu0
    %v170 = vadd.f32 0.0, %v169
    %171 = vmatmul.f32.gmra.mxu0 %v108
    %v172 = vpop.f32.mrf.mxu0
    %v173 = vadd.f32 0.0, %v172
    %174 = vmatmul.f32.gmra.mxu0 %v111
    %v175 = vpop.f32.mrf.mxu0
    %v176 = vadd.f32 0.0, %v175
    %177 = vmatmul.f32.gmra.mxu0 %v114
    %v178 = vpop.f32.mrf.mxu0
    %v179 = vadd.f32 0.0, %v178
    %180 = vmatmul.f32.gmra.mxu0 %v117
    %v181 = vpop.f32.mrf.mxu0
    %v182 = vadd.f32 0.0, %v181
    %183 = vmatmul.f32.gmra.mxu0 %v120
    %v184 = vpop.f32.mrf.mxu0
    %v185 = vadd.f32 0.0, %v184
    %186 = vmatmul.f32.gmra.mxu0 %v123
    %v187 = vpop.f32.mrf.mxu0
    %v188 = vadd.f32 0.0, %v187
    %189 = vdwg.mxu0
    %v190 = vld [vmem:[%s3] sm:$0xff]
    %v191 = vld [vmem:[%s3 + $0x8] sm:$0xff]
    %v192 = vld [vmem:[%s3 + $0x10] sm:$0xff]
    %v193 = vld [vmem:[%s3 + $0x18] sm:$0xff]
    %v195 = vsel %vm76, %v24, 0
    %v198 = vsel %vm76, %v25, 0
    %v201 = vsel %vm76, %v26, 0
    %v204 = vsel %vm76, %v27, 0
    %v207 = vsel %vm76, %v28, 0
    %v210 = vsel %vm76, %v29, 0
    %v213 = vsel %vm76, %v30, 0
    %v216 = vsel %vm76, %v31, 0
    %v219 = vsel %vm76, %v32, 0
    %v222 = vsel %vm76, %v33, 0
    %v225 = vsel %vm76, %v34, 0
    %v228 = vsel %vm76, %v35, 0
    %v231 = vsel %vm76, %v36, 0
    %v234 = vsel %vm76, %v37, 0
    %v237 = vsel %vm76, %v38, 0
    %v240 = vsel %vm76, %v39, 0
    %v243 = vsel %vm76, %v40, 0
    %v246 = vsel %vm76, %v41, 0
    %v249 = vsel %vm76, %v42, 0
    %v252 = vsel %vm76, %v43, 0
    %v255 = vsel %vm76, %v44, 0
    %v258 = vsel %vm76, %v45, 0
    %v261 = vsel %vm76, %v46, 0
    %v264 = vsel %vm76, %v47, 0
    %v267 = vsel %vm76, %v48, 0
    %v270 = vsel %vm76, %v49, 0
    %v273 = vsel %vm76, %v50, 0
    %v276 = vsel %vm76, %v51, 0
    %v279 = vsel %vm76, %v52, 0
    %v282 = vsel %vm76, %v53, 0
    %v285 = vsel %vm76, %v54, 0
    %v288 = vsel %vm76, %v55, 0
    %290 = vmatpush.msra.mxu0 0.0
    %291 = vmatpush.msra.mxu0 0.0
    %292 = vmatpush.msra.mxu0 0.0
    %293 = vmatpush.msra.mxu0 0.0
    %294 = vmatpush.msra.mxu0 0.0
    %295 = vmatpush.msra.mxu0 0.0
    %296 = vmatpush.msra.mxu0 0.0
    %297 = vmatpush.msra.mxu0 0.0
    %298 = vmatpush.msra.mxu0 0.0
    %299 = vmatpush.msra.mxu0 0.0
    %300 = vmatpush.msra.mxu0 0.0
    %301 = vmatpush.msra.mxu0 0.0
    %302 = vmatpush.msra.mxu0 %v193
    %303 = vmatpush.msra.mxu0 %v192
    %304 = vmatpush.msra.mxu0 %v191
    %305 = vmatpush.msra.mxu0 %v190
    %306 = vmatmul.f32.gmra.mxu0 %v195
    %v307 = vpop.f32.mrf.mxu0
    %v308 = vadd.f32 0.0, %v307
    %309 = vmatmul.f32.gmra.mxu0 %v198
    %v310 = vpop.f32.mrf.mxu0
    %v311 = vadd.f32 0.0, %v310
    %312 = vmatmul.f32.gmra.mxu0 %v201
    %v313 = vpop.f32.mrf.mxu0
    %v314 = vadd.f32 0.0, %v313
    %315 = vmatmul.f32.gmra.mxu0 %v204
    %v316 = vpop.f32.mrf.mxu0
    %v317 = vadd.f32 0.0, %v316
    %318 = vmatmul.f32.gmra.mxu0 %v207
    %v319 = vpop.f32.mrf.mxu0
    %v320 = vadd.f32 0.0, %v319
    %321 = vmatmul.f32.gmra.mxu0 %v210
    %v322 = vpop.f32.mrf.mxu0
    %v323 = vadd.f32 0.0, %v322
    %324 = vmatmul.f32.gmra.mxu0 %v213
    %v325 = vpop.f32.mrf.mxu0
    %v326 = vadd.f32 0.0, %v325
    %327 = vmatmul.f32.gmra.mxu0 %v216
    %v328 = vpop.f32.mrf.mxu0
    %v329 = vadd.f32 0.0, %v328
    %330 = vmatmul.f32.gmra.mxu0 %v219
    %v331 = vpop.f32.mrf.mxu0
    %v332 = vadd.f32 0.0, %v331
    %333 = vmatmul.f32.gmra.mxu0 %v222
    %v334 = vpop.f32.mrf.mxu0
    %v335 = vadd.f32 0.0, %v334
    %336 = vmatmul.f32.gmra.mxu0 %v225
    %v337 = vpop.f32.mrf.mxu0
    %v338 = vadd.f32 0.0, %v337
    %339 = vmatmul.f32.gmra.mxu0 %v228
    %v340 = vpop.f32.mrf.mxu0
    %v341 = vadd.f32 0.0, %v340
    %342 = vmatmul.f32.gmra.mxu0 %v231
    %v343 = vpop.f32.mrf.mxu0
    %v344 = vadd.f32 0.0, %v343
    %345 = vmatmul.f32.gmra.mxu0 %v234
    %v346 = vpop.f32.mrf.mxu0
    %v347 = vadd.f32 0.0, %v346
    %348 = vmatmul.f32.gmra.mxu0 %v237
    %v349 = vpop.f32.mrf.mxu0
    %v350 = vadd.f32 0.0, %v349
    %351 = vmatmul.f32.gmra.mxu0 %v240
    %v352 = vpop.f32.mrf.mxu0
    %v353 = vadd.f32 0.0, %v352
    %354 = vmatmul.f32.gmra.mxu0 %v243
    %v355 = vpop.f32.mrf.mxu0
    %v356 = vadd.f32 0.0, %v355
    %357 = vmatmul.f32.gmra.mxu0 %v246
    %v358 = vpop.f32.mrf.mxu0
    %v359 = vadd.f32 0.0, %v358
    %360 = vmatmul.f32.gmra.mxu0 %v249
    %v361 = vpop.f32.mrf.mxu0
    %v362 = vadd.f32 0.0, %v361
    %363 = vmatmul.f32.gmra.mxu0 %v252
    %v364 = vpop.f32.mrf.mxu0
    %v365 = vadd.f32 0.0, %v364
    %366 = vmatmul.f32.gmra.mxu0 %v255
    %v367 = vpop.f32.mrf.mxu0
    %v368 = vadd.f32 0.0, %v367
    %369 = vmatmul.f32.gmra.mxu0 %v258
    %v370 = vpop.f32.mrf.mxu0
    %v371 = vadd.f32 0.0, %v370
    %372 = vmatmul.f32.gmra.mxu0 %v261
    %v373 = vpop.f32.mrf.mxu0
    %v374 = vadd.f32 0.0, %v373
    %375 = vmatmul.f32.gmra.mxu0 %v264
    %v376 = vpop.f32.mrf.mxu0
    %v377 = vadd.f32 0.0, %v376
    %378 = vmatmul.f32.gmra.mxu0 %v267
    %v379 = vpop.f32.mrf.mxu0
    %v380 = vadd.f32 0.0, %v379
    %381 = vmatmul.f32.gmra.mxu0 %v270
    %v382 = vpop.f32.mrf.mxu0
    %v383 = vadd.f32 0.0, %v382
    %384 = vmatmul.f32.gmra.mxu0 %v273
    %v385 = vpop.f32.mrf.mxu0
    %v386 = vadd.f32 0.0, %v385
    %387 = vmatmul.f32.gmra.mxu0 %v276
    %v388 = vpop.f32.mrf.mxu0
    %v389 = vadd.f32 0.0, %v388
    %390 = vmatmul.f32.gmra.mxu0 %v279
    %v391 = vpop.f32.mrf.mxu0
    %v392 = vadd.f32 0.0, %v391
    %393 = vmatmul.f32.gmra.mxu0 %v282
    %v394 = vpop.f32.mrf.mxu0
    %v395 = vadd.f32 0.0, %v394
    %396 = vmatmul.f32.gmra.mxu0 %v285
    %v397 = vpop.f32.mrf.mxu0
    %v398 = vadd.f32 0.0, %v397
    %399 = vmatmul.f32.gmra.mxu0 %v288
    %v400 = vpop.f32.mrf.mxu0
    %v401 = vadd.f32 0.0, %v400
    %402 = vdwg.mxu0
    %v403 = vld [vmem:[%s4] sm:$0xff]
    %v404 = vld [vmem:[%s4 + $0x8] sm:$0xff]
    %v405 = vld [vmem:[%s4 + $0x10] sm:$0xff]
    %v406 = vld [vmem:[%s4 + $0x18] sm:$0xff]
    %407 = vmatpush.msra.mxu0 0.0
    %408 = vmatpush.msra.mxu0 0.0
    %409 = vmatpush.msra.mxu0 0.0
    %410 = vmatpush.msra.mxu0 0.0
    %411 = vmatpush.msra.mxu0 0.0
    %412 = vmatpush.msra.mxu0 0.0
    %413 = vmatpush.msra.mxu0 0.0
    %414 = vmatpush.msra.mxu0 0.0
    %415 = vmatpush.msra.mxu0 0.0
    %416 = vmatpush.msra.mxu0 0.0
    %417 = vmatpush.msra.mxu0 0.0
    %418 = vmatpush.msra.mxu0 0.0
    %419 = vmatpush.msra.mxu0 %v406
    %420 = vmatpush.msra.mxu0 %v405
    %421 = vmatpush.msra.mxu0 %v404
    %422 = vmatpush.msra.mxu0 %v403
    %423 = vmatmul.f32.gmra.mxu0 %v78
    %v424 = vpop.f32.mrf.mxu0
    %v425 = vadd.f32 0.0, %v424
    %426 = vmatmul.f32.gmra.mxu0 %v81
    %v427 = vpop.f32.mrf.mxu0
    %v428 = vadd.f32 0.0, %v427
    %429 = vmatmul.f32.gmra.mxu0 %v84
    %v430 = vpop.f32.mrf.mxu0
    %v431 = vadd.f32 0.0, %v430
    %432 = vmatmul.f32.gmra.mxu0 %v87
    %v433 = vpop.f32.mrf.mxu0
    %v434 = vadd.f32 0.0, %v433
    %435 = vmatmul.f32.gmra.mxu0 %v90
    %v436 = vpop.f32.mrf.mxu0
    %v437 = vadd.f32 0.0, %v436
    %438 = vmatmul.f32.gmra.mxu0 %v93
    %v439 = vpop.f32.mrf.mxu0
    %v440 = vadd.f32 0.0, %v439
    %441 = vmatmul.f32.gmra.mxu0 %v96
    %v442 = vpop.f32.mrf.mxu0
    %v443 = vadd.f32 0.0, %v442
    %444 = vmatmul.f32.gmra.mxu0 %v99
    %v445 = vpop.f32.mrf.mxu0
    %v446 = vadd.f32 0.0, %v445
    %447 = vmatmul.f32.gmra.mxu0 %v102
    %v448 = vpop.f32.mrf.mxu0
    %v449 = vadd.f32 0.0, %v448
    %450 = vmatmul.f32.gmra.mxu0 %v105
    %v451 = vpop.f32.mrf.mxu0
    %v452 = vadd.f32 0.0, %v451
    %453 = vmatmul.f32.gmra.mxu0 %v108
    %v454 = vpop.f32.mrf.mxu0
    %v455 = vadd.f32 0.0, %v454
    %456 = vmatmul.f32.gmra.mxu0 %v111
    %v457 = vpop.f32.mrf.mxu0
    %v458 = vadd.f32 0.0, %v457
    %459 = vmatmul.f32.gmra.mxu0 %v114
    %v460 = vpop.f32.mrf.mxu0
    %v461 = vadd.f32 0.0, %v460
    %462 = vmatmul.f32.gmra.mxu0 %v117
    %v463 = vpop.f32.mrf.mxu0
    %v464 = vadd.f32 0.0, %v463
    %465 = vmatmul.f32.gmra.mxu0 %v120
    %v466 = vpop.f32.mrf.mxu0
    %v467 = vadd.f32 0.0, %v466
    %468 = vmatmul.f32.gmra.mxu0 %v123
    %v469 = vpop.f32.mrf.mxu0
    %v470 = vadd.f32 0.0, %v469
    %471 = vdwg.mxu0
    %v473 = vsel %vm76, %v143, 0
    %475 = vmatpush.xpose.msra.mxu0 0.0
    %476 = vmatpush.xpose.msra.mxu0 0.0
    %477 = vmatpush.xpose.msra.mxu0 0.0
    %478 = vmatpush.xpose.msra.mxu0 0.0
    %479 = vmatpush.xpose.msra.mxu0 0.0
    %480 = vmatpush.xpose.msra.mxu0 0.0
    %481 = vmatpush.xpose.msra.mxu0 0.0
    %482 = vmatpush.xpose.msra.mxu0 0.0
    %483 = vmatpush.xpose.msra.mxu0 0.0
    %484 = vmatpush.xpose.msra.mxu0 0.0
    %485 = vmatpush.xpose.msra.mxu0 0.0
    %486 = vmatpush.xpose.msra.mxu0 0.0
    %487 = vmatpush.xpose.msra.mxu0 0.0
    %488 = vmatpush.xpose.msra.mxu0 0.0
    %489 = vmatpush.xpose.msra.mxu0 %v198
    %490 = vmatpush.xpose.msra.mxu0 %v195
    %491 = vmatmul.f32.gmra.mxu0 %v473
    %v492 = vpop.f32.mrf.mxu0
    %v493 = vadd.f32 0.0, %v492
    %494 = vdwg.mxu0
    %v496 = vsel %vm76, %v146, 0
    %498 = vmatpush.xpose.msra.mxu0 0.0
    %499 = vmatpush.xpose.msra.mxu0 0.0
    %500 = vmatpush.xpose.msra.mxu0 0.0
    %501 = vmatpush.xpose.msra.mxu0 0.0
    %502 = vmatpush.xpose.msra.mxu0 0.0
    %503 = vmatpush.xpose.msra.mxu0 0.0
    %504 = vmatpush.xpose.msra.mxu0 0.0
    %505 = vmatpush.xpose.msra.mxu0 0.0
    %506 = vmatpush.xpose.msra.mxu0 0.0
    %507 = vmatpush.xpose.msra.mxu0 0.0
    %508 = vmatpush.xpose.msra.mxu0 0.0
    %509 = vmatpush.xpose.msra.mxu0 0.0
    %510 = vmatpush.xpose.msra.mxu0 0.0
    %511 = vmatpush.xpose.msra.mxu0 0.0
    %512 = vmatpush.xpose.msra.mxu0 %v204
    %513 = vmatpush.xpose.msra.mxu0 %v201
    %514 = vmatmul.f32.gmra.mxu0 %v496
    %v515 = vpop.f32.mrf.mxu0
    %v516 = vadd.f32 0.0, %v515
    %517 = vdwg.mxu0
    %v519 = vsel %vm76, %v149, 0
    %521 = vmatpush.xpose.msra.mxu0 0.0
    %522 = vmatpush.xpose.msra.mxu0 0.0
    %523 = vmatpush.xpose.msra.mxu0 0.0
    %524 = vmatpush.xpose.msra.mxu0 0.0
    %525 = vmatpush.xpose.msra.mxu0 0.0
    %526 = vmatpush.xpose.msra.mxu0 0.0
    %527 = vmatpush.xpose.msra.mxu0 0.0
    %528 = vmatpush.xpose.msra.mxu0 0.0
    %529 = vmatpush.xpose.msra.mxu0 0.0
    %530 = vmatpush.xpose.msra.mxu0 0.0
    %531 = vmatpush.xpose.msra.mxu0 0.0
    %532 = vmatpush.xpose.msra.mxu0 0.0
    %533 = vmatpush.xpose.msra.mxu0 0.0
    %534 = vmatpush.xpose.msra.mxu0 0.0
    %535 = vmatpush.xpose.msra.mxu0 %v210
    %536 = vmatpush.xpose.msra.mxu0 %v207
    %537 = vmatmul.f32.gmra.mxu0 %v519
    %v538 = vpop.f32.mrf.mxu0
    %v539 = vadd.f32 0.0, %v538
    %540 = vdwg.mxu0
    %v542 = vsel %vm76, %v152, 0
    %544 = vmatpush.xpose.msra.mxu0 0.0
    %545 = vmatpush.xpose.msra.mxu0 0.0
    %546 = vmatpush.xpose.msra.mxu0 0.0
    %547 = vmatpush.xpose.msra.mxu0 0.0
    %548 = vmatpush.xpose.msra.mxu0 0.0
    %549 = vmatpush.xpose.msra.mxu0 0.0
    %550 = vmatpush.xpose.msra.mxu0 0.0
    %551 = vmatpush.xpose.msra.mxu0 0.0
    %552 = vmatpush.xpose.msra.mxu0 0.0
    %553 = vmatpush.xpose.msra.mxu0 0.0
    %554 = vmatpush.xpose.msra.mxu0 0.0
    %555 = vmatpush.xpose.msra.mxu0 0.0
    %556 = vmatpush.xpose.msra.mxu0 0.0
    %557 = vmatpush.xpose.msra.mxu0 0.0
    %558 = vmatpush.xpose.msra.mxu0 %v216
    %559 = vmatpush.xpose.msra.mxu0 %v213
    %560 = vmatmul.f32.gmra.mxu0 %v542
    %v561 = vpop.f32.mrf.mxu0
    %v562 = vadd.f32 0.0, %v561
    %563 = vdwg.mxu0
    %v565 = vsel %vm76, %v155, 0
    %567 = vmatpush.xpose.msra.mxu0 0.0
    %568 = vmatpush.xpose.msra.mxu0 0.0
    %569 = vmatpush.xpose.msra.mxu0 0.0
    %570 = vmatpush.xpose.msra.mxu0 0.0
    %571 = vmatpush.xpose.msra.mxu0 0.0
    %572 = vmatpush.xpose.msra.mxu0 0.0
    %573 = vmatpush.xpose.msra.mxu0 0.0
    %574 = vmatpush.xpose.msra.mxu0 0.0
    %575 = vmatpush.xpose.msra.mxu0 0.0
    %576 = vmatpush.xpose.msra.mxu0 0.0
    %577 = vmatpush.xpose.msra.mxu0 0.0
    %578 = vmatpush.xpose.msra.mxu0 0.0
    %579 = vmatpush.xpose.msra.mxu0 0.0
    %580 = vmatpush.xpose.msra.mxu0 0.0
    %581 = vmatpush.xpose.msra.mxu0 %v222
    %582 = vmatpush.xpose.msra.mxu0 %v219
    %583 = vmatmul.f32.gmra.mxu0 %v565
    %v584 = vpop.f32.mrf.mxu0
    %v585 = vadd.f32 0.0, %v584
    %586 = vdwg.mxu0
    %v588 = vsel %vm76, %v158, 0
    %590 = vmatpush.xpose.msra.mxu0 0.0
    %591 = vmatpush.xpose.msra.mxu0 0.0
    %592 = vmatpush.xpose.msra.mxu0 0.0
    %593 = vmatpush.xpose.msra.mxu0 0.0
    %594 = vmatpush.xpose.msra.mxu0 0.0
    %595 = vmatpush.xpose.msra.mxu0 0.0
    %596 = vmatpush.xpose.msra.mxu0 0.0
    %597 = vmatpush.xpose.msra.mxu0 0.0
    %598 = vmatpush.xpose.msra.mxu0 0.0
    %599 = vmatpush.xpose.msra.mxu0 0.0
    %600 = vmatpush.xpose.msra.mxu0 0.0
    %601 = vmatpush.xpose.msra.mxu0 0.0
    %602 = vmatpush.xpose.msra.mxu0 0.0
    %603 = vmatpush.xpose.msra.mxu0 0.0
    %604 = vmatpush.xpose.msra.mxu0 %v228
    %605 = vmatpush.xpose.msra.mxu0 %v225
    %606 = vmatmul.f32.gmra.mxu0 %v588
    %v607 = vpop.f32.mrf.mxu0
    %v608 = vadd.f32 0.0, %v607
    %609 = vdwg.mxu0
    %v611 = vsel %vm76, %v161, 0
    %613 = vmatpush.xpose.msra.mxu0 0.0
    %614 = vmatpush.xpose.msra.mxu0 0.0
    %615 = vmatpush.xpose.msra.mxu0 0.0
    %616 = vmatpush.xpose.msra.mxu0 0.0
    %617 = vmatpush.xpose.msra.mxu0 0.0
    %618 = vmatpush.xpose.msra.mxu0 0.0
    %619 = vmatpush.xpose.msra.mxu0 0.0
    %620 = vmatpush.xpose.msra.mxu0 0.0
    %621 = vmatpush.xpose.msra.mxu0 0.0
    %622 = vmatpush.xpose.msra.mxu0 0.0
    %623 = vmatpush.xpose.msra.mxu0 0.0
    %624 = vmatpush.xpose.msra.mxu0 0.0
    %625 = vmatpush.xpose.msra.mxu0 0.0
    %626 = vmatpush.xpose.msra.mxu0 0.0
    %627 = vmatpush.xpose.msra.mxu0 %v234
    %628 = vmatpush.xpose.msra.mxu0 %v231
    %629 = vmatmul.f32.gmra.mxu0 %v611
    %v630 = vpop.f32.mrf.mxu0
    %v631 = vadd.f32 0.0, %v630
    %632 = vdwg.mxu0
    %v634 = vsel %vm76, %v164, 0
    %636 = vmatpush.xpose.msra.mxu0 0.0
    %637 = vmatpush.xpose.msra.mxu0 0.0
    %638 = vmatpush.xpose.msra.mxu0 0.0
    %639 = vmatpush.xpose.msra.mxu0 0.0
    %640 = vmatpush.xpose.msra.mxu0 0.0
    %641 = vmatpush.xpose.msra.mxu0 0.0
    %642 = vmatpush.xpose.msra.mxu0 0.0
    %643 = vmatpush.xpose.msra.mxu0 0.0
    %644 = vmatpush.xpose.msra.mxu0 0.0
    %645 = vmatpush.xpose.msra.mxu0 0.0
    %646 = vmatpush.xpose.msra.mxu0 0.0
    %647 = vmatpush.xpose.msra.mxu0 0.0
    %648 = vmatpush.xpose.msra.mxu0 0.0
    %649 = vmatpush.xpose.msra.mxu0 0.0
    %650 = vmatpush.xpose.msra.mxu0 %v240
    %651 = vmatpush.xpose.msra.mxu0 %v237
    %652 = vmatmul.f32.gmra.mxu0 %v634
    %v653 = vpop.f32.mrf.mxu0
    %v654 = vadd.f32 0.0, %v653
    %655 = vdwg.mxu0
    %v657 = vsel %vm76, %v167, 0
    %659 = vmatpush.xpose.msra.mxu0 0.0
    %660 = vmatpush.xpose.msra.mxu0 0.0
    %661 = vmatpush.xpose.msra.mxu0 0.0
    %662 = vmatpush.xpose.msra.mxu0 0.0
    %663 = vmatpush.xpose.msra.mxu0 0.0
    %664 = vmatpush.xpose.msra.mxu0 0.0
    %665 = vmatpush.xpose.msra.mxu0 0.0
    %666 = vmatpush.xpose.msra.mxu0 0.0
    %667 = vmatpush.xpose.msra.mxu0 0.0
    %668 = vmatpush.xpose.msra.mxu0 0.0
    %669 = vmatpush.xpose.msra.mxu0 0.0
    %670 = vmatpush.xpose.msra.mxu0 0.0
    %671 = vmatpush.xpose.msra.mxu0 0.0
    %672 = vmatpush.xpose.msra.mxu0 0.0
    %673 = vmatpush.xpose.msra.mxu0 %v246
    %674 = vmatpush.xpose.msra.mxu0 %v243
    %675 = vmatmul.f32.gmra.mxu0 %v657
    %v676 = vpop.f32.mrf.mxu0
    %v677 = vadd.f32 0.0, %v676
    %678 = vdwg.mxu0
    %v680 = vsel %vm76, %v170, 0
    %682 = vmatpush.xpose.msra.mxu0 0.0
    %683 = vmatpush.xpose.msra.mxu0 0.0
    %684 = vmatpush.xpose.msra.mxu0 0.0
    %685 = vmatpush.xpose.msra.mxu0 0.0
    %686 = vmatpush.xpose.msra.mxu0 0.0
    %687 = vmatpush.xpose.msra.mxu0 0.0
    %688 = vmatpush.xpose.msra.mxu0 0.0
    %689 = vmatpush.xpose.msra.mxu0 0.0
    %690 = vmatpush.xpose.msra.mxu0 0.0
    %691 = vmatpush.xpose.msra.mxu0 0.0
    %692 = vmatpush.xpose.msra.mxu0 0.0
    %693 = vmatpush.xpose.msra.mxu0 0.0
    %694 = vmatpush.xpose.msra.mxu0 0.0
    %695 = vmatpush.xpose.msra.mxu0 0.0
    %696 = vmatpush.xpose.msra.mxu0 %v252
    %697 = vmatpush.xpose.msra.mxu0 %v249
    %698 = vmatmul.f32.gmra.mxu0 %v680
    %v699 = vpop.f32.mrf.mxu0
    %v700 = vadd.f32 0.0, %v699
    %701 = vdwg.mxu0
    %v703 = vsel %vm76, %v173, 0
    %705 = vmatpush.xpose.msra.mxu0 0.0
    %706 = vmatpush.xpose.msra.mxu0 0.0
    %707 = vmatpush.xpose.msra.mxu0 0.0
    %708 = vmatpush.xpose.msra.mxu0 0.0
    %709 = vmatpush.xpose.msra.mxu0 0.0
    %710 = vmatpush.xpose.msra.mxu0 0.0
    %711 = vmatpush.xpose.msra.mxu0 0.0
    %712 = vmatpush.xpose.msra.mxu0 0.0
    %713 = vmatpush.xpose.msra.mxu0 0.0
    %714 = vmatpush.xpose.msra.mxu0 0.0
    %715 = vmatpush.xpose.msra.mxu0 0.0
    %716 = vmatpush.xpose.msra.mxu0 0.0
    %717 = vmatpush.xpose.msra.mxu0 0.0
    %718 = vmatpush.xpose.msra.mxu0 0.0
    %719 = vmatpush.xpose.msra.mxu0 %v258
    %720 = vmatpush.xpose.msra.mxu0 %v255
    %721 = vmatmul.f32.gmra.mxu0 %v703
    %v722 = vpop.f32.mrf.mxu0
    %v723 = vadd.f32 0.0, %v722
    %724 = vdwg.mxu0
    %v726 = vsel %vm76, %v176, 0
    %728 = vmatpush.xpose.msra.mxu0 0.0
    %729 = vmatpush.xpose.msra.mxu0 0.0
    %730 = vmatpush.xpose.msra.mxu0 0.0
    %731 = vmatpush.xpose.msra.mxu0 0.0
    %732 = vmatpush.xpose.msra.mxu0 0.0
    %733 = vmatpush.xpose.msra.mxu0 0.0
    %734 = vmatpush.xpose.msra.mxu0 0.0
    %735 = vmatpush.xpose.msra.mxu0 0.0
    %736 = vmatpush.xpose.msra.mxu0 0.0
    %737 = vmatpush.xpose.msra.mxu0 0.0
    %738 = vmatpush.xpose.msra.mxu0 0.0
    %739 = vmatpush.xpose.msra.mxu0 0.0
    %740 = vmatpush.xpose.msra.mxu0 0.0
    %741 = vmatpush.xpose.msra.mxu0 0.0
    %742 = vmatpush.xpose.msra.mxu0 %v264
    %743 = vmatpush.xpose.msra.mxu0 %v261
    %744 = vmatmul.f32.gmra.mxu0 %v726
    %v745 = vpop.f32.mrf.mxu0
    %v746 = vadd.f32 0.0, %v745
    %747 = vdwg.mxu0
    %v749 = vsel %vm76, %v179, 0
    %751 = vmatpush.xpose.msra.mxu0 0.0
    %752 = vmatpush.xpose.msra.mxu0 0.0
    %753 = vmatpush.xpose.msra.mxu0 0.0
    %754 = vmatpush.xpose.msra.mxu0 0.0
    %755 = vmatpush.xpose.msra.mxu0 0.0
    %756 = vmatpush.xpose.msra.mxu0 0.0
    %757 = vmatpush.xpose.msra.mxu0 0.0
    %758 = vmatpush.xpose.msra.mxu0 0.0
    %759 = vmatpush.xpose.msra.mxu0 0.0
    %760 = vmatpush.xpose.msra.mxu0 0.0
    %761 = vmatpush.xpose.msra.mxu0 0.0
    %762 = vmatpush.xpose.msra.mxu0 0.0
    %763 = vmatpush.xpose.msra.mxu0 0.0
    %764 = vmatpush.xpose.msra.mxu0 0.0
    %765 = vmatpush.xpose.msra.mxu0 %v270
    %766 = vmatpush.xpose.msra.mxu0 %v267
    %767 = vmatmul.f32.gmra.mxu0 %v749
    %v768 = vpop.f32.mrf.mxu0
    %v769 = vadd.f32 0.0, %v768
    %770 = vdwg.mxu0
    %v772 = vsel %vm76, %v182, 0
    %774 = vmatpush.xpose.msra.mxu0 0.0
    %775 = vmatpush.xpose.msra.mxu0 0.0
    %776 = vmatpush.xpose.msra.mxu0 0.0
    %777 = vmatpush.xpose.msra.mxu0 0.0
    %778 = vmatpush.xpose.msra.mxu0 0.0
    %779 = vmatpush.xpose.msra.mxu0 0.0
    %780 = vmatpush.xpose.msra.mxu0 0.0
    %781 = vmatpush.xpose.msra.mxu0 0.0
    %782 = vmatpush.xpose.msra.mxu0 0.0
    %783 = vmatpush.xpose.msra.mxu0 0.0
    %784 = vmatpush.xpose.msra.mxu0 0.0
    %785 = vmatpush.xpose.msra.mxu0 0.0
    %786 = vmatpush.xpose.msra.mxu0 0.0
    %787 = vmatpush.xpose.msra.mxu0 0.0
    %788 = vmatpush.xpose.msra.mxu0 %v276
    %789 = vmatpush.xpose.msra.mxu0 %v273
    %790 = vmatmul.f32.gmra.mxu0 %v772
    %v791 = vpop.f32.mrf.mxu0
    %v792 = vadd.f32 0.0, %v791
    %793 = vdwg.mxu0
    %v795 = vsel %vm76, %v185, 0
    %797 = vmatpush.xpose.msra.mxu0 0.0
    %798 = vmatpush.xpose.msra.mxu0 0.0
    %799 = vmatpush.xpose.msra.mxu0 0.0
    %800 = vmatpush.xpose.msra.mxu0 0.0
    %801 = vmatpush.xpose.msra.mxu0 0.0
    %802 = vmatpush.xpose.msra.mxu0 0.0
    %803 = vmatpush.xpose.msra.mxu0 0.0
    %804 = vmatpush.xpose.msra.mxu0 0.0
    %805 = vmatpush.xpose.msra.mxu0 0.0
    %806 = vmatpush.xpose.msra.mxu0 0.0
    %807 = vmatpush.xpose.msra.mxu0 0.0
    %808 = vmatpush.xpose.msra.mxu0 0.0
    %809 = vmatpush.xpose.msra.mxu0 0.0
    %810 = vmatpush.xpose.msra.mxu0 0.0
    %811 = vmatpush.xpose.msra.mxu0 %v282
    %812 = vmatpush.xpose.msra.mxu0 %v279
    %813 = vmatmul.f32.gmra.mxu0 %v795
    %v814 = vpop.f32.mrf.mxu0
    %v815 = vadd.f32 0.0, %v814
    %816 = vdwg.mxu0
    %v818 = vsel %vm76, %v188, 0
    %820 = vmatpush.xpose.msra.mxu0 0.0
    %821 = vmatpush.xpose.msra.mxu0 0.0
    %822 = vmatpush.xpose.msra.mxu0 0.0
    %823 = vmatpush.xpose.msra.mxu0 0.0
    %824 = vmatpush.xpose.msra.mxu0 0.0
    %825 = vmatpush.xpose.msra.mxu0 0.0
    %826 = vmatpush.xpose.msra.mxu0 0.0
    %827 = vmatpush.xpose.msra.mxu0 0.0
    %828 = vmatpush.xpose.msra.mxu0 0.0
    %829 = vmatpush.xpose.msra.mxu0 0.0
    %830 = vmatpush.xpose.msra.mxu0 0.0
    %831 = vmatpush.xpose.msra.mxu0 0.0
    %832 = vmatpush.xpose.msra.mxu0 0.0
    %833 = vmatpush.xpose.msra.mxu0 0.0
    %834 = vmatpush.xpose.msra.mxu0 %v288
    %835 = vmatpush.xpose.msra.mxu0 %v285
    %836 = vmatmul.f32.gmra.mxu0 %v818
    %v837 = vpop.f32.mrf.mxu0
    %v838 = vadd.f32 0.0, %v837
    %839 = vdwg.mxu0
    %v840 = vperm.slane %v493, 0
    %v841 = vlaneseq
    %v842 = vshrl.u32 %v841, 7
    %844 = vset.pattern.permute.xlu0 %v842
    %845 = vperm.xlu0 %844, %v840
    %v846 = vpop.permute.xlu0 %845
    %v847 = vlaneseq
    %v848 = vshrl.u32 %v847, 7
    %v849 = vadd.s32 %v848, 8
    %850 = vset.pattern.permute.xlu0 %v849
    %851 = vperm.xlu0 %850, %v840
    %v852 = vpop.permute.xlu0 %851
    %v853 = vperm.slane %v516, 0
    %v854 = vlaneseq
    %v855 = vshrl.u32 %v854, 7
    %857 = vset.pattern.permute.xlu0 %v855
    %858 = vperm.xlu0 %857, %v853
    %v859 = vpop.permute.xlu0 %858
    %v860 = vlaneseq
    %v861 = vshrl.u32 %v860, 7
    %v862 = vadd.s32 %v861, 8
    %863 = vset.pattern.permute.xlu0 %v862
    %864 = vperm.xlu0 %863, %v853
    %v865 = vpop.permute.xlu0 %864
    %v866 = vperm.slane %v539, 0
    %v867 = vlaneseq
    %v868 = vshrl.u32 %v867, 7
    %870 = vset.pattern.permute.xlu0 %v868
    %871 = vperm.xlu0 %870, %v866
    %v872 = vpop.permute.xlu0 %871
    %v873 = vlaneseq
    %v874 = vshrl.u32 %v873, 7
    %v875 = vadd.s32 %v874, 8
    %876 = vset.pattern.permute.xlu0 %v875
    %877 = vperm.xlu0 %876, %v866
    %v878 = vpop.permute.xlu0 %877
    %v879 = vperm.slane %v562, 0
    %v880 = vlaneseq
    %v881 = vshrl.u32 %v880, 7
    %883 = vset.pattern.permute.xlu0 %v881
    %884 = vperm.xlu0 %883, %v879
    %v885 = vpop.permute.xlu0 %884
    %v886 = vlaneseq
    %v887 = vshrl.u32 %v886, 7
    %v888 = vadd.s32 %v887, 8
    %889 = vset.pattern.permute.xlu0 %v888
    %890 = vperm.xlu0 %889, %v879
    %v891 = vpop.permute.xlu0 %890
    %v892 = vperm.slane %v585, 0
    %v893 = vlaneseq
    %v894 = vshrl.u32 %v893, 7
    %896 = vset.pattern.permute.xlu0 %v894
    %897 = vperm.xlu0 %896, %v892
    %v898 = vpop.permute.xlu0 %897
    %v899 = vlaneseq
    %v900 = vshrl.u32 %v899, 7
    %v901 = vadd.s32 %v900, 8
    %902 = vset.pattern.permute.xlu0 %v901
    %903 = vperm.xlu0 %902, %v892
    %v904 = vpop.permute.xlu0 %903
    %v905 = vperm.slane %v608, 0
    %v906 = vlaneseq
    %v907 = vshrl.u32 %v906, 7
    %909 = vset.pattern.permute.xlu0 %v907
    %910 = vperm.xlu0 %909, %v905
    %v911 = vpop.permute.xlu0 %910
    %v912 = vlaneseq
    %v913 = vshrl.u32 %v912, 7
    %v914 = vadd.s32 %v913, 8
    %915 = vset.pattern.permute.xlu0 %v914
    %916 = vperm.xlu0 %915, %v905
    %v917 = vpop.permute.xlu0 %916
    %v918 = vperm.slane %v631, 0
    %v919 = vlaneseq
    %v920 = vshrl.u32 %v919, 7
    %922 = vset.pattern.permute.xlu0 %v920
    %923 = vperm.xlu0 %922, %v918
    %v924 = vpop.permute.xlu0 %923
    %v925 = vlaneseq
    %v926 = vshrl.u32 %v925, 7
    %v927 = vadd.s32 %v926, 8
    %928 = vset.pattern.permute.xlu0 %v927
    %929 = vperm.xlu0 %928, %v918
    %v930 = vpop.permute.xlu0 %929
    %v931 = vperm.slane %v654, 0
    %v932 = vlaneseq
    %v933 = vshrl.u32 %v932, 7
    %935 = vset.pattern.permute.xlu0 %v933
    %936 = vperm.xlu0 %935, %v931
    %v937 = vpop.permute.xlu0 %936
    %v938 = vlaneseq
    %v939 = vshrl.u32 %v938, 7
    %v940 = vadd.s32 %v939, 8
    %941 = vset.pattern.permute.xlu0 %v940
    %942 = vperm.xlu0 %941, %v931
    %v943 = vpop.permute.xlu0 %942
    %v944 = vperm.slane %v677, 0
    %v945 = vlaneseq
    %v946 = vshrl.u32 %v945, 7
    %948 = vset.pattern.permute.xlu0 %v946
    %949 = vperm.xlu0 %948, %v944
    %v950 = vpop.permute.xlu0 %949
    %v951 = vlaneseq
    %v952 = vshrl.u32 %v951, 7
    %v953 = vadd.s32 %v952, 8
    %954 = vset.pattern.permute.xlu0 %v953
    %955 = vperm.xlu0 %954, %v944
    %v956 = vpop.permute.xlu0 %955
    %v957 = vperm.slane %v700, 0
    %v958 = vlaneseq
    %v959 = vshrl.u32 %v958, 7
    %961 = vset.pattern.permute.xlu0 %v959
    %962 = vperm.xlu0 %961, %v957
    %v963 = vpop.permute.xlu0 %962
    %v964 = vlaneseq
    %v965 = vshrl.u32 %v964, 7
    %v966 = vadd.s32 %v965, 8
    %967 = vset.pattern.permute.xlu0 %v966
    %968 = vperm.xlu0 %967, %v957
    %v969 = vpop.permute.xlu0 %968
    %v970 = vperm.slane %v723, 0
    %v971 = vlaneseq
    %v972 = vshrl.u32 %v971, 7
    %974 = vset.pattern.permute.xlu0 %v972
    %975 = vperm.xlu0 %974, %v970
    %v976 = vpop.permute.xlu0 %975
    %v977 = vlaneseq
    %v978 = vshrl.u32 %v977, 7
    %v979 = vadd.s32 %v978, 8
    %980 = vset.pattern.permute.xlu0 %v979
    %981 = vperm.xlu0 %980, %v970
    %v982 = vpop.permute.xlu0 %981
    %v983 = vperm.slane %v746, 0
    %v984 = vlaneseq
    %v985 = vshrl.u32 %v984, 7
    %987 = vset.pattern.permute.xlu0 %v985
    %988 = vperm.xlu0 %987, %v983
    %v989 = vpop.permute.xlu0 %988
    %v990 = vlaneseq
    %v991 = vshrl.u32 %v990, 7
    %v992 = vadd.s32 %v991, 8
    %993 = vset.pattern.permute.xlu0 %v992
    %994 = vperm.xlu0 %993, %v983
    %v995 = vpop.permute.xlu0 %994
    %v996 = vperm.slane %v769, 0
    %v997 = vlaneseq
    %v998 = vshrl.u32 %v997, 7
    %1000 = vset.pattern.permute.xlu0 %v998
    %1001 = vperm.xlu0 %1000, %v996
    %v1002 = vpop.permute.xlu0 %1001
    %v1003 = vlaneseq
    %v1004 = vshrl.u32 %v1003, 7
    %v1005 = vadd.s32 %v1004, 8
    %1006 = vset.pattern.permute.xlu0 %v1005
    %1007 = vperm.xlu0 %1006, %v996
    %v1008 = vpop.permute.xlu0 %1007
    %v1009 = vperm.slane %v792, 0
    %v1010 = vlaneseq
    %v1011 = vshrl.u32 %v1010, 7
    %1013 = vset.pattern.permute.xlu0 %v1011
    %1014 = vperm.xlu0 %1013, %v1009
    %v1015 = vpop.permute.xlu0 %1014
    %v1016 = vlaneseq
    %v1017 = vshrl.u32 %v1016, 7
    %v1018 = vadd.s32 %v1017, 8
    %1019 = vset.pattern.permute.xlu0 %v1018
    %1020 = vperm.xlu0 %1019, %v1009
    %v1021 = vpop.permute.xlu0 %1020
    %v1022 = vperm.slane %v815, 0
    %v1023 = vlaneseq
    %v1024 = vshrl.u32 %v1023, 7
    %1026 = vset.pattern.permute.xlu0 %v1024
    %1027 = vperm.xlu0 %1026, %v1022
    %v1028 = vpop.permute.xlu0 %1027
    %v1029 = vlaneseq
    %v1030 = vshrl.u32 %v1029, 7
    %v1031 = vadd.s32 %v1030, 8
    %1032 = vset.pattern.permute.xlu0 %v1031
    %1033 = vperm.xlu0 %1032, %v1022
    %v1034 = vpop.permute.xlu0 %1033
    %v1035 = vperm.slane %v838, 0
    %v1036 = vlaneseq
    %v1037 = vshrl.u32 %v1036, 7
    %1039 = vset.pattern.permute.xlu0 %v1037
    %1040 = vperm.xlu0 %1039, %v1035
    %v1041 = vpop.permute.xlu0 %1040
    %v1042 = vlaneseq
    %v1043 = vshrl.u32 %v1042, 7
    %v1044 = vadd.s32 %v1043, 8
    %1045 = vset.pattern.permute.xlu0 %v1044
    %1046 = vperm.xlu0 %1045, %v1035
    %v1047 = vpop.permute.xlu0 %1046
    %v1048 = vperm.slane %v425, 0
    %v1049 = vperm.slane %v428, 0
    %v1050 = vperm.slane %v431, 0
    %v1051 = vperm.slane %v434, 0
    %v1052 = vperm.slane %v437, 0
    %v1053 = vperm.slane %v440, 0
    %v1054 = vperm.slane %v443, 0
    %v1055 = vperm.slane %v446, 0
    %v1056 = vperm.slane %v449, 0
    %v1057 = vperm.slane %v452, 0
    %v1058 = vperm.slane %v455, 0
    %v1059 = vperm.slane %v458, 0
    %v1060 = vperm.slane %v461, 0
    %v1061 = vperm.slane %v464, 0
    %v1062 = vperm.slane %v467, 0
    %v1063 = vperm.slane %v470, 0
    %v1064 = vmul.f32 %v846, %v1048
    %v1065 = vmul.f32 %v852, %v1048
    %v1066 = vmul.f32 %v859, %v1049
    %v1067 = vmul.f32 %v865, %v1049
    %v1068 = vmul.f32 %v872, %v1050
    %v1069 = vmul.f32 %v878, %v1050
    %v1070 = vmul.f32 %v885, %v1051
    %v1071 = vmul.f32 %v891, %v1051
    %v1072 = vmul.f32 %v898, %v1052
    %v1073 = vmul.f32 %v904, %v1052
    %v1074 = vmul.f32 %v911, %v1053
    %v1075 = vmul.f32 %v917, %v1053
    %v1076 = vmul.f32 %v924, %v1054
    %v1077 = vmul.f32 %v930, %v1054
    %v1078 = vmul.f32 %v937, %v1055
    %v1079 = vmul.f32 %v943, %v1055
    %v1080 = vmul.f32 %v950, %v1056
    %v1081 = vmul.f32 %v956, %v1056
    %v1082 = vmul.f32 %v963, %v1057
    %v1083 = vmul.f32 %v969, %v1057
    %v1084 = vmul.f32 %v976, %v1058
    %v1085 = vmul.f32 %v982, %v1058
    %v1086 = vmul.f32 %v989, %v1059
    %v1087 = vmul.f32 %v995, %v1059
    %v1088 = vmul.f32 %v1002, %v1060
    %v1089 = vmul.f32 %v1008, %v1060
    %v1090 = vmul.f32 %v1015, %v1061
    %v1091 = vmul.f32 %v1021, %v1061
    %v1092 = vmul.f32 %v1028, %v1062
    %v1093 = vmul.f32 %v1034, %v1062
    %v1094 = vmul.f32 %v1041, %v1063
    %v1095 = vmul.f32 %v1047, %v1063
    %v1096 = vperm.slane %v493, 1
    %v1097 = vlaneseq
    %v1098 = vshrl.u32 %v1097, 7
    %1100 = vset.pattern.permute.xlu0 %v1098
    %1101 = vperm.xlu0 %1100, %v1096
    %v1102 = vpop.permute.xlu0 %1101
    %v1103 = vlaneseq
    %v1104 = vshrl.u32 %v1103, 7
    %v1105 = vadd.s32 %v1104, 8
    %1106 = vset.pattern.permute.xlu0 %v1105
    %1107 = vperm.xlu0 %1106, %v1096
    %v1108 = vpop.permute.xlu0 %1107
    %v1109 = vperm.slane %v516, 1
    %v1110 = vlaneseq
    %v1111 = vshrl.u32 %v1110, 7
    %1113 = vset.pattern.permute.xlu0 %v1111
    %1114 = vperm.xlu0 %1113, %v1109
    %v1115 = vpop.permute.xlu0 %1114
    %v1116 = vlaneseq
    %v1117 = vshrl.u32 %v1116, 7
    %v1118 = vadd.s32 %v1117, 8
    %1119 = vset.pattern.permute.xlu0 %v1118
    %1120 = vperm.xlu0 %1119, %v1109
    %v1121 = vpop.permute.xlu0 %1120
    %v1122 = vperm.slane %v539, 1
    %v1123 = vlaneseq
    %v1124 = vshrl.u32 %v1123, 7
    %1126 = vset.pattern.permute.xlu0 %v1124
    %1127 = vperm.xlu0 %1126, %v1122
    %v1128 = vpop.permute.xlu0 %1127
    %v1129 = vlaneseq
    %v1130 = vshrl.u32 %v1129, 7
    %v1131 = vadd.s32 %v1130, 8
    %1132 = vset.pattern.permute.xlu0 %v1131
    %1133 = vperm.xlu0 %1132, %v1122
    %v1134 = vpop.permute.xlu0 %1133
    %v1135 = vperm.slane %v562, 1
    %v1136 = vlaneseq
    %v1137 = vshrl.u32 %v1136, 7
    %1139 = vset.pattern.permute.xlu0 %v1137
    %1140 = vperm.xlu0 %1139, %v1135
    %v1141 = vpop.permute.xlu0 %1140
    %v1142 = vlaneseq
    %v1143 = vshrl.u32 %v1142, 7
    %v1144 = vadd.s32 %v1143, 8
    %1145 = vset.pattern.permute.xlu0 %v1144
    %1146 = vperm.xlu0 %1145, %v1135
    %v1147 = vpop.permute.xlu0 %1146
    %v1148 = vperm.slane %v585, 1
    %v1149 = vlaneseq
    %v1150 = vshrl.u32 %v1149, 7
    %1152 = vset.pattern.permute.xlu0 %v1150
    %1153 = vperm.xlu0 %1152, %v1148
    %v1154 = vpop.permute.xlu0 %1153
    %v1155 = vlaneseq
    %v1156 = vshrl.u32 %v1155, 7
    %v1157 = vadd.s32 %v1156, 8
    %1158 = vset.pattern.permute.xlu0 %v1157
    %1159 = vperm.xlu0 %1158, %v1148
    %v1160 = vpop.permute.xlu0 %1159
    %v1161 = vperm.slane %v608, 1
    %v1162 = vlaneseq
    %v1163 = vshrl.u32 %v1162, 7
    %1165 = vset.pattern.permute.xlu0 %v1163
    %1166 = vperm.xlu0 %1165, %v1161
    %v1167 = vpop.permute.xlu0 %1166
    %v1168 = vlaneseq
    %v1169 = vshrl.u32 %v1168, 7
    %v1170 = vadd.s32 %v1169, 8
    %1171 = vset.pattern.permute.xlu0 %v1170
    %1172 = vperm.xlu0 %1171, %v1161
    %v1173 = vpop.permute.xlu0 %1172
    %v1174 = vperm.slane %v631, 1
    %v1175 = vlaneseq
    %v1176 = vshrl.u32 %v1175, 7
    %1178 = vset.pattern.permute.xlu0 %v1176
    %1179 = vperm.xlu0 %1178, %v1174
    %v1180 = vpop.permute.xlu0 %1179
    %v1181 = vlaneseq
    %v1182 = vshrl.u32 %v1181, 7
    %v1183 = vadd.s32 %v1182, 8
    %1184 = vset.pattern.permute.xlu0 %v1183
    %1185 = vperm.xlu0 %1184, %v1174
    %v1186 = vpop.permute.xlu0 %1185
    %v1187 = vperm.slane %v654, 1
    %v1188 = vlaneseq
    %v1189 = vshrl.u32 %v1188, 7
    %1191 = vset.pattern.permute.xlu0 %v1189
    %1192 = vperm.xlu0 %1191, %v1187
    %v1193 = vpop.permute.xlu0 %1192
    %v1194 = vlaneseq
    %v1195 = vshrl.u32 %v1194, 7
    %v1196 = vadd.s32 %v1195, 8
    %1197 = vset.pattern.permute.xlu0 %v1196
    %1198 = vperm.xlu0 %1197, %v1187
    %v1199 = vpop.permute.xlu0 %1198
    %v1200 = vperm.slane %v677, 1
    %v1201 = vlaneseq
    %v1202 = vshrl.u32 %v1201, 7
    %1204 = vset.pattern.permute.xlu0 %v1202
    %1205 = vperm.xlu0 %1204, %v1200
    %v1206 = vpop.permute.xlu0 %1205
    %v1207 = vlaneseq
    %v1208 = vshrl.u32 %v1207, 7
    %v1209 = vadd.s32 %v1208, 8
    %1210 = vset.pattern.permute.xlu0 %v1209
    %1211 = vperm.xlu0 %1210, %v1200
    %v1212 = vpop.permute.xlu0 %1211
    %v1213 = vperm.slane %v700, 1
    %v1214 = vlaneseq
    %v1215 = vshrl.u32 %v1214, 7
    %1217 = vset.pattern.permute.xlu0 %v1215
    %1218 = vperm.xlu0 %1217, %v1213
    %v1219 = vpop.permute.xlu0 %1218
    %v1220 = vlaneseq
    %v1221 = vshrl.u32 %v1220, 7
    %v1222 = vadd.s32 %v1221, 8
    %1223 = vset.pattern.permute.xlu0 %v1222
    %1224 = vperm.xlu0 %1223, %v1213
    %v1225 = vpop.permute.xlu0 %1224
    %v1226 = vperm.slane %v723, 1
    %v1227 = vlaneseq
    %v1228 = vshrl.u32 %v1227, 7
    %1230 = vset.pattern.permute.xlu0 %v1228
    %1231 = vperm.xlu0 %1230, %v1226
    %v1232 = vpop.permute.xlu0 %1231
    %v1233 = vlaneseq
    %v1234 = vshrl.u32 %v1233, 7
    %v1235 = vadd.s32 %v1234, 8
    %1236 = vset.pattern.permute.xlu0 %v1235
    %1237 = vperm.xlu0 %1236, %v1226
    %v1238 = vpop.permute.xlu0 %1237
    %v1239 = vperm.slane %v746, 1
    %v1240 = vlaneseq
    %v1241 = vshrl.u32 %v1240, 7
    %1243 = vset.pattern.permute.xlu0 %v1241
    %1244 = vperm.xlu0 %1243, %v1239
    %v1245 = vpop.permute.xlu0 %1244
    %v1246 = vlaneseq
    %v1247 = vshrl.u32 %v1246, 7
    %v1248 = vadd.s32 %v1247, 8
    %1249 = vset.pattern.permute.xlu0 %v1248
    %1250 = vperm.xlu0 %1249, %v1239
    %v1251 = vpop.permute.xlu0 %1250
    %v1252 = vperm.slane %v769, 1
    %v1253 = vlaneseq
    %v1254 = vshrl.u32 %v1253, 7
    %1256 = vset.pattern.permute.xlu0 %v1254
    %1257 = vperm.xlu0 %1256, %v1252
    %v1258 = vpop.permute.xlu0 %1257
    %v1259 = vlaneseq
    %v1260 = vshrl.u32 %v1259, 7
    %v1261 = vadd.s32 %v1260, 8
    %1262 = vset.pattern.permute.xlu0 %v1261
    %1263 = vperm.xlu0 %1262, %v1252
    %v1264 = vpop.permute.xlu0 %1263
    %v1265 = vperm.slane %v792, 1
    %v1266 = vlaneseq
    %v1267 = vshrl.u32 %v1266, 7
    %1269 = vset.pattern.permute.xlu0 %v1267
    %1270 = vperm.xlu0 %1269, %v1265
    %v1271 = vpop.permute.xlu0 %1270
    %v1272 = vlaneseq
    %v1273 = vshrl.u32 %v1272, 7
    %v1274 = vadd.s32 %v1273, 8
    %1275 = vset.pattern.permute.xlu0 %v1274
    %1276 = vperm.xlu0 %1275, %v1265
    %v1277 = vpop.permute.xlu0 %1276
    %v1278 = vperm.slane %v815, 1
    %v1279 = vlaneseq
    %v1280 = vshrl.u32 %v1279, 7
    %1282 = vset.pattern.permute.xlu0 %v1280
    %1283 = vperm.xlu0 %1282, %v1278
    %v1284 = vpop.permute.xlu0 %1283
    %v1285 = vlaneseq
    %v1286 = vshrl.u32 %v1285, 7
    %v1287 = vadd.s32 %v1286, 8
    %1288 = vset.pattern.permute.xlu0 %v1287
    %1289 = vperm.xlu0 %1288, %v1278
    %v1290 = vpop.permute.xlu0 %1289
    %v1291 = vperm.slane %v838, 1
    %v1292 = vlaneseq
    %v1293 = vshrl.u32 %v1292, 7
    %1295 = vset.pattern.permute.xlu0 %v1293
    %1296 = vperm.xlu0 %1295, %v1291
    %v1297 = vpop.permute.xlu0 %1296
    %v1298 = vlaneseq
    %v1299 = vshrl.u32 %v1298, 7
    %v1300 = vadd.s32 %v1299, 8
    %1301 = vset.pattern.permute.xlu0 %v1300
    %1302 = vperm.xlu0 %1301, %v1291
    %v1303 = vpop.permute.xlu0 %1302
    %v1304 = vperm.slane %v425, 1
    %v1305 = vperm.slane %v428, 1
    %v1306 = vperm.slane %v431, 1
    %v1307 = vperm.slane %v434, 1
    %v1308 = vperm.slane %v437, 1
    %v1309 = vperm.slane %v440, 1
    %v1310 = vperm.slane %v443, 1
    %v1311 = vperm.slane %v446, 1
    %v1312 = vperm.slane %v449, 1
    %v1313 = vperm.slane %v452, 1
    %v1314 = vperm.slane %v455, 1
    %v1315 = vperm.slane %v458, 1
    %v1316 = vperm.slane %v461, 1
    %v1317 = vperm.slane %v464, 1
    %v1318 = vperm.slane %v467, 1
    %v1319 = vperm.slane %v470, 1
    %v1320 = vmul.f32 %v1102, %v1304
    %v1321 = vmul.f32 %v1108, %v1304
    %v1322 = vmul.f32 %v1115, %v1305
    %v1323 = vmul.f32 %v1121, %v1305
    %v1324 = vmul.f32 %v1128, %v1306
    %v1325 = vmul.f32 %v1134, %v1306
    %v1326 = vmul.f32 %v1141, %v1307
    %v1327 = vmul.f32 %v1147, %v1307
    %v1328 = vmul.f32 %v1154, %v1308
    %v1329 = vmul.f32 %v1160, %v1308
    %v1330 = vmul.f32 %v1167, %v1309
    %v1331 = vmul.f32 %v1173, %v1309
    %v1332 = vmul.f32 %v1180, %v1310
    %v1333 = vmul.f32 %v1186, %v1310
    %v1334 = vmul.f32 %v1193, %v1311
    %v1335 = vmul.f32 %v1199, %v1311
    %v1336 = vmul.f32 %v1206, %v1312
    %v1337 = vmul.f32 %v1212, %v1312
    %v1338 = vmul.f32 %v1219, %v1313
    %v1339 = vmul.f32 %v1225, %v1313
    %v1340 = vmul.f32 %v1232, %v1314
    %v1341 = vmul.f32 %v1238, %v1314
    %v1342 = vmul.f32 %v1245, %v1315
    %v1343 = vmul.f32 %v1251, %v1315
    %v1344 = vmul.f32 %v1258, %v1316
    %v1345 = vmul.f32 %v1264, %v1316
    %v1346 = vmul.f32 %v1271, %v1317
    %v1347 = vmul.f32 %v1277, %v1317
    %v1348 = vmul.f32 %v1284, %v1318
    %v1349 = vmul.f32 %v1290, %v1318
    %v1350 = vmul.f32 %v1297, %v1319
    %v1351 = vmul.f32 %v1303, %v1319
    %v1352 = vadd.f32 %v1064, %v1320
    %v1353 = vadd.f32 %v1065, %v1321
    %v1354 = vadd.f32 %v1066, %v1322
    %v1355 = vadd.f32 %v1067, %v1323
    %v1356 = vadd.f32 %v1068, %v1324
    %v1357 = vadd.f32 %v1069, %v1325
    %v1358 = vadd.f32 %v1070, %v1326
    %v1359 = vadd.f32 %v1071, %v1327
    %v1360 = vadd.f32 %v1072, %v1328
    %v1361 = vadd.f32 %v1073, %v1329
    %v1362 = vadd.f32 %v1074, %v1330
    %v1363 = vadd.f32 %v1075, %v1331
    %v1364 = vadd.f32 %v1076, %v1332
    %v1365 = vadd.f32 %v1077, %v1333
    %v1366 = vadd.f32 %v1078, %v1334
    %v1367 = vadd.f32 %v1079, %v1335
    %v1368 = vadd.f32 %v1080, %v1336
    %v1369 = vadd.f32 %v1081, %v1337
    %v1370 = vadd.f32 %v1082, %v1338
    %v1371 = vadd.f32 %v1083, %v1339
    %v1372 = vadd.f32 %v1084, %v1340
    %v1373 = vadd.f32 %v1085, %v1341
    %v1374 = vadd.f32 %v1086, %v1342
    %v1375 = vadd.f32 %v1087, %v1343
    %v1376 = vadd.f32 %v1088, %v1344
    %v1377 = vadd.f32 %v1089, %v1345
    %v1378 = vadd.f32 %v1090, %v1346
    %v1379 = vadd.f32 %v1091, %v1347
    %v1380 = vadd.f32 %v1092, %v1348
    %v1381 = vadd.f32 %v1093, %v1349
    %v1382 = vadd.f32 %v1094, %v1350
    %v1383 = vadd.f32 %v1095, %v1351
    %v1384 = vperm.slane %v493, 2
    %v1385 = vlaneseq
    %v1386 = vshrl.u32 %v1385, 7
    %1388 = vset.pattern.permute.xlu0 %v1386
    %1389 = vperm.xlu0 %1388, %v1384
    %v1390 = vpop.permute.xlu0 %1389
    %v1391 = vlaneseq
    %v1392 = vshrl.u32 %v1391, 7
    %v1393 = vadd.s32 %v1392, 8
    %1394 = vset.pattern.permute.xlu0 %v1393
    %1395 = vperm.xlu0 %1394, %v1384
    %v1396 = vpop.permute.xlu0 %1395
    %v1397 = vperm.slane %v516, 2
    %v1398 = vlaneseq
    %v1399 = vshrl.u32 %v1398, 7
    %1401 = vset.pattern.permute.xlu0 %v1399
    %1402 = vperm.xlu0 %1401, %v1397
    %v1403 = vpop.permute.xlu0 %1402
    %v1404 = vlaneseq
    %v1405 = vshrl.u32 %v1404, 7
    %v1406 = vadd.s32 %v1405, 8
    %1407 = vset.pattern.permute.xlu0 %v1406
    %1408 = vperm.xlu0 %1407, %v1397
    %v1409 = vpop.permute.xlu0 %1408
    %v1410 = vperm.slane %v539, 2
    %v1411 = vlaneseq
    %v1412 = vshrl.u32 %v1411, 7
    %1414 = vset.pattern.permute.xlu0 %v1412
    %1415 = vperm.xlu0 %1414, %v1410
    %v1416 = vpop.permute.xlu0 %1415
    %v1417 = vlaneseq
    %v1418 = vshrl.u32 %v1417, 7
    %v1419 = vadd.s32 %v1418, 8
    %1420 = vset.pattern.permute.xlu0 %v1419
    %1421 = vperm.xlu0 %1420, %v1410
    %v1422 = vpop.permute.xlu0 %1421
    %v1423 = vperm.slane %v562, 2
    %v1424 = vlaneseq
    %v1425 = vshrl.u32 %v1424, 7
    %1427 = vset.pattern.permute.xlu0 %v1425
    %1428 = vperm.xlu0 %1427, %v1423
    %v1429 = vpop.permute.xlu0 %1428
    %v1430 = vlaneseq
    %v1431 = vshrl.u32 %v1430, 7
    %v1432 = vadd.s32 %v1431, 8
    %1433 = vset.pattern.permute.xlu0 %v1432
    %1434 = vperm.xlu0 %1433, %v1423
    %v1435 = vpop.permute.xlu0 %1434
    %v1436 = vperm.slane %v585, 2
    %v1437 = vlaneseq
    %v1438 = vshrl.u32 %v1437, 7
    %1440 = vset.pattern.permute.xlu0 %v1438
    %1441 = vperm.xlu0 %1440, %v1436
    %v1442 = vpop.permute.xlu0 %1441
    %v1443 = vlaneseq
    %v1444 = vshrl.u32 %v1443, 7
    %v1445 = vadd.s32 %v1444, 8
    %1446 = vset.pattern.permute.xlu0 %v1445
    %1447 = vperm.xlu0 %1446, %v1436
    %v1448 = vpop.permute.xlu0 %1447
    %v1449 = vperm.slane %v608, 2
    %v1450 = vlaneseq
    %v1451 = vshrl.u32 %v1450, 7
    %1453 = vset.pattern.permute.xlu0 %v1451
    %1454 = vperm.xlu0 %1453, %v1449
    %v1455 = vpop.permute.xlu0 %1454
    %v1456 = vlaneseq
    %v1457 = vshrl.u32 %v1456, 7
    %v1458 = vadd.s32 %v1457, 8
    %1459 = vset.pattern.permute.xlu0 %v1458
    %1460 = vperm.xlu0 %1459, %v1449
    %v1461 = vpop.permute.xlu0 %1460
    %v1462 = vperm.slane %v631, 2
    %v1463 = vlaneseq
    %v1464 = vshrl.u32 %v1463, 7
    %1466 = vset.pattern.permute.xlu0 %v1464
    %1467 = vperm.xlu0 %1466, %v1462
    %v1468 = vpop.permute.xlu0 %1467
    %v1469 = vlaneseq
    %v1470 = vshrl.u32 %v1469, 7
    %v1471 = vadd.s32 %v1470, 8
    %1472 = vset.pattern.permute.xlu0 %v1471
    %1473 = vperm.xlu0 %1472, %v1462
    %v1474 = vpop.permute.xlu0 %1473
    %v1475 = vperm.slane %v654, 2
    %v1476 = vlaneseq
    %v1477 = vshrl.u32 %v1476, 7
    %1479 = vset.pattern.permute.xlu0 %v1477
    %1480 = vperm.xlu0 %1479, %v1475
    %v1481 = vpop.permute.xlu0 %1480
    %v1482 = vlaneseq
    %v1483 = vshrl.u32 %v1482, 7
    %v1484 = vadd.s32 %v1483, 8
    %1485 = vset.pattern.permute.xlu0 %v1484
    %1486 = vperm.xlu0 %1485, %v1475
    %v1487 = vpop.permute.xlu0 %1486
    %v1488 = vperm.slane %v677, 2
    %v1489 = vlaneseq
    %v1490 = vshrl.u32 %v1489, 7
    %1492 = vset.pattern.permute.xlu0 %v1490
    %1493 = vperm.xlu0 %1492, %v1488
    %v1494 = vpop.permute.xlu0 %1493
    %v1495 = vlaneseq
    %v1496 = vshrl.u32 %v1495, 7
    %v1497 = vadd.s32 %v1496, 8
    %1498 = vset.pattern.permute.xlu0 %v1497
    %1499 = vperm.xlu0 %1498, %v1488
    %v1500 = vpop.permute.xlu0 %1499
    %v1501 = vperm.slane %v700, 2
    %v1502 = vlaneseq
    %v1503 = vshrl.u32 %v1502, 7
    %1505 = vset.pattern.permute.xlu0 %v1503
    %1506 = vperm.xlu0 %1505, %v1501
    %v1507 = vpop.permute.xlu0 %1506
    %v1508 = vlaneseq
    %v1509 = vshrl.u32 %v1508, 7
    %v1510 = vadd.s32 %v1509, 8
    %1511 = vset.pattern.permute.xlu0 %v1510
    %1512 = vperm.xlu0 %1511, %v1501
    %v1513 = vpop.permute.xlu0 %1512
    %v1514 = vperm.slane %v723, 2
    %v1515 = vlaneseq
    %v1516 = vshrl.u32 %v1515, 7
    %1518 = vset.pattern.permute.xlu0 %v1516
    %1519 = vperm.xlu0 %1518, %v1514
    %v1520 = vpop.permute.xlu0 %1519
    %v1521 = vlaneseq
    %v1522 = vshrl.u32 %v1521, 7
    %v1523 = vadd.s32 %v1522, 8
    %1524 = vset.pattern.permute.xlu0 %v1523
    %1525 = vperm.xlu0 %1524, %v1514
    %v1526 = vpop.permute.xlu0 %1525
    %v1527 = vperm.slane %v746, 2
    %v1528 = vlaneseq
    %v1529 = vshrl.u32 %v1528, 7
    %1531 = vset.pattern.permute.xlu0 %v1529
    %1532 = vperm.xlu0 %1531, %v1527
    %v1533 = vpop.permute.xlu0 %1532
    %v1534 = vlaneseq
    %v1535 = vshrl.u32 %v1534, 7
    %v1536 = vadd.s32 %v1535, 8
    %1537 = vset.pattern.permute.xlu0 %v1536
    %1538 = vperm.xlu0 %1537, %v1527
    %v1539 = vpop.permute.xlu0 %1538
    %v1540 = vperm.slane %v769, 2
    %v1541 = vlaneseq
    %v1542 = vshrl.u32 %v1541, 7
    %1544 = vset.pattern.permute.xlu0 %v1542
    %1545 = vperm.xlu0 %1544, %v1540
    %v1546 = vpop.permute.xlu0 %1545
    %v1547 = vlaneseq
    %v1548 = vshrl.u32 %v1547, 7
    %v1549 = vadd.s32 %v1548, 8
    %1550 = vset.pattern.permute.xlu0 %v1549
    %1551 = vperm.xlu0 %1550, %v1540
    %v1552 = vpop.permute.xlu0 %1551
    %v1553 = vperm.slane %v792, 2
    %v1554 = vlaneseq
    %v1555 = vshrl.u32 %v1554, 7
    %1557 = vset.pattern.permute.xlu0 %v1555
    %1558 = vperm.xlu0 %1557, %v1553
    %v1559 = vpop.permute.xlu0 %1558
    %v1560 = vlaneseq
    %v1561 = vshrl.u32 %v1560, 7
    %v1562 = vadd.s32 %v1561, 8
    %1563 = vset.pattern.permute.xlu0 %v1562
    %1564 = vperm.xlu0 %1563, %v1553
    %v1565 = vpop.permute.xlu0 %1564
    %v1566 = vperm.slane %v815, 2
    %v1567 = vlaneseq
    %v1568 = vshrl.u32 %v1567, 7
    %1570 = vset.pattern.permute.xlu0 %v1568
    %1571 = vperm.xlu0 %1570, %v1566
    %v1572 = vpop.permute.xlu0 %1571
    %v1573 = vlaneseq
    %v1574 = vshrl.u32 %v1573, 7
    %v1575 = vadd.s32 %v1574, 8
    %1576 = vset.pattern.permute.xlu0 %v1575
    %1577 = vperm.xlu0 %1576, %v1566
    %v1578 = vpop.permute.xlu0 %1577
    %v1579 = vperm.slane %v838, 2
    %v1580 = vlaneseq
    %v1581 = vshrl.u32 %v1580, 7
    %1583 = vset.pattern.permute.xlu0 %v1581
    %1584 = vperm.xlu0 %1583, %v1579
    %v1585 = vpop.permute.xlu0 %1584
    %v1586 = vlaneseq
    %v1587 = vshrl.u32 %v1586, 7
    %v1588 = vadd.s32 %v1587, 8
    %1589 = vset.pattern.permute.xlu0 %v1588
    %1590 = vperm.xlu0 %1589, %v1579
    %v1591 = vpop.permute.xlu0 %1590
    %v1592 = vperm.slane %v425, 2
    %v1593 = vperm.slane %v428, 2
    %v1594 = vperm.slane %v431, 2
    %v1595 = vperm.slane %v434, 2
    %v1596 = vperm.slane %v437, 2
    %v1597 = vperm.slane %v440, 2
    %v1598 = vperm.slane %v443, 2
    %v1599 = vperm.slane %v446, 2
    %v1600 = vperm.slane %v449, 2
    %v1601 = vperm.slane %v452, 2
    %v1602 = vperm.slane %v455, 2
    %v1603 = vperm.slane %v458, 2
    %v1604 = vperm.slane %v461, 2
    %v1605 = vperm.slane %v464, 2
    %v1606 = vperm.slane %v467, 2
    %v1607 = vperm.slane %v470, 2
    %v1608 = vmul.f32 %v1390, %v1592
    %v1609 = vmul.f32 %v1396, %v1592
    %v1610 = vmul.f32 %v1403, %v1593
    %v1611 = vmul.f32 %v1409, %v1593
    %v1612 = vmul.f32 %v1416, %v1594
    %v1613 = vmul.f32 %v1422, %v1594
    %v1614 = vmul.f32 %v1429, %v1595
    %v1615 = vmul.f32 %v1435, %v1595
    %v1616 = vmul.f32 %v1442, %v1596
    %v1617 = vmul.f32 %v1448, %v1596
    %v1618 = vmul.f32 %v1455, %v1597
    %v1619 = vmul.f32 %v1461, %v1597
    %v1620 = vmul.f32 %v1468, %v1598
    %v1621 = vmul.f32 %v1474, %v1598
    %v1622 = vmul.f32 %v1481, %v1599
    %v1623 = vmul.f32 %v1487, %v1599
    %v1624 = vmul.f32 %v1494, %v1600
    %v1625 = vmul.f32 %v1500, %v1600
    %v1626 = vmul.f32 %v1507, %v1601
    %v1627 = vmul.f32 %v1513, %v1601
    %v1628 = vmul.f32 %v1520, %v1602
    %v1629 = vmul.f32 %v1526, %v1602
    %v1630 = vmul.f32 %v1533, %v1603
    %v1631 = vmul.f32 %v1539, %v1603
    %v1632 = vmul.f32 %v1546, %v1604
    %v1633 = vmul.f32 %v1552, %v1604
    %v1634 = vmul.f32 %v1559, %v1605
    %v1635 = vmul.f32 %v1565, %v1605
    %v1636 = vmul.f32 %v1572, %v1606
    %v1637 = vmul.f32 %v1578, %v1606
    %v1638 = vmul.f32 %v1585, %v1607
    %v1639 = vmul.f32 %v1591, %v1607
    %v1640 = vadd.f32 %v1352, %v1608
    %v1641 = vadd.f32 %v1353, %v1609
    %v1642 = vadd.f32 %v1354, %v1610
    %v1643 = vadd.f32 %v1355, %v1611
    %v1644 = vadd.f32 %v1356, %v1612
    %v1645 = vadd.f32 %v1357, %v1613
    %v1646 = vadd.f32 %v1358, %v1614
    %v1647 = vadd.f32 %v1359, %v1615
    %v1648 = vadd.f32 %v1360, %v1616
    %v1649 = vadd.f32 %v1361, %v1617
    %v1650 = vadd.f32 %v1362, %v1618
    %v1651 = vadd.f32 %v1363, %v1619
    %v1652 = vadd.f32 %v1364, %v1620
    %v1653 = vadd.f32 %v1365, %v1621
    %v1654 = vadd.f32 %v1366, %v1622
    %v1655 = vadd.f32 %v1367, %v1623
    %v1656 = vadd.f32 %v1368, %v1624
    %v1657 = vadd.f32 %v1369, %v1625
    %v1658 = vadd.f32 %v1370, %v1626
    %v1659 = vadd.f32 %v1371, %v1627
    %v1660 = vadd.f32 %v1372, %v1628
    %v1661 = vadd.f32 %v1373, %v1629
    %v1662 = vadd.f32 %v1374, %v1630
    %v1663 = vadd.f32 %v1375, %v1631
    %v1664 = vadd.f32 %v1376, %v1632
    %v1665 = vadd.f32 %v1377, %v1633
    %v1666 = vadd.f32 %v1378, %v1634
    %v1667 = vadd.f32 %v1379, %v1635
    %v1668 = vadd.f32 %v1380, %v1636
    %v1669 = vadd.f32 %v1381, %v1637
    %v1670 = vadd.f32 %v1382, %v1638
    %v1671 = vadd.f32 %v1383, %v1639
    %v1672 = vperm.slane %v493, 3
    %v1673 = vlaneseq
    %v1674 = vshrl.u32 %v1673, 7
    %1676 = vset.pattern.permute.xlu0 %v1674
    %1677 = vperm.xlu0 %1676, %v1672
    %v1678 = vpop.permute.xlu0 %1677
    %v1679 = vlaneseq
    %v1680 = vshrl.u32 %v1679, 7
    %v1681 = vadd.s32 %v1680, 8
    %1682 = vset.pattern.permute.xlu0 %v1681
    %1683 = vperm.xlu0 %1682, %v1672
    %v1684 = vpop.permute.xlu0 %1683
    %v1685 = vperm.slane %v516, 3
    %v1686 = vlaneseq
    %v1687 = vshrl.u32 %v1686, 7
    %1689 = vset.pattern.permute.xlu0 %v1687
    %1690 = vperm.xlu0 %1689, %v1685
    %v1691 = vpop.permute.xlu0 %1690
    %v1692 = vlaneseq
    %v1693 = vshrl.u32 %v1692, 7
    %v1694 = vadd.s32 %v1693, 8
    %1695 = vset.pattern.permute.xlu0 %v1694
    %1696 = vperm.xlu0 %1695, %v1685
    %v1697 = vpop.permute.xlu0 %1696
    %v1698 = vperm.slane %v539, 3
    %v1699 = vlaneseq
    %v1700 = vshrl.u32 %v1699, 7
    %1702 = vset.pattern.permute.xlu0 %v1700
    %1703 = vperm.xlu0 %1702, %v1698
    %v1704 = vpop.permute.xlu0 %1703
    %v1705 = vlaneseq
    %v1706 = vshrl.u32 %v1705, 7
    %v1707 = vadd.s32 %v1706, 8
    %1708 = vset.pattern.permute.xlu0 %v1707
    %1709 = vperm.xlu0 %1708, %v1698
    %v1710 = vpop.permute.xlu0 %1709
    %v1711 = vperm.slane %v562, 3
    %v1712 = vlaneseq
    %v1713 = vshrl.u32 %v1712, 7
    %1715 = vset.pattern.permute.xlu0 %v1713
    %1716 = vperm.xlu0 %1715, %v1711
    %v1717 = vpop.permute.xlu0 %1716
    %v1718 = vlaneseq
    %v1719 = vshrl.u32 %v1718, 7
    %v1720 = vadd.s32 %v1719, 8
    %1721 = vset.pattern.permute.xlu0 %v1720
    %1722 = vperm.xlu0 %1721, %v1711
    %v1723 = vpop.permute.xlu0 %1722
    %v1724 = vperm.slane %v585, 3
    %v1725 = vlaneseq
    %v1726 = vshrl.u32 %v1725, 7
    %1728 = vset.pattern.permute.xlu0 %v1726
    %1729 = vperm.xlu0 %1728, %v1724
    %v1730 = vpop.permute.xlu0 %1729
    %v1731 = vlaneseq
    %v1732 = vshrl.u32 %v1731, 7
    %v1733 = vadd.s32 %v1732, 8
    %1734 = vset.pattern.permute.xlu0 %v1733
    %1735 = vperm.xlu0 %1734, %v1724
    %v1736 = vpop.permute.xlu0 %1735
    %v1737 = vperm.slane %v608, 3
    %v1738 = vlaneseq
    %v1739 = vshrl.u32 %v1738, 7
    %1741 = vset.pattern.permute.xlu0 %v1739
    %1742 = vperm.xlu0 %1741, %v1737
    %v1743 = vpop.permute.xlu0 %1742
    %v1744 = vlaneseq
    %v1745 = vshrl.u32 %v1744, 7
    %v1746 = vadd.s32 %v1745, 8
    %1747 = vset.pattern.permute.xlu0 %v1746
    %1748 = vperm.xlu0 %1747, %v1737
    %v1749 = vpop.permute.xlu0 %1748
    %v1750 = vperm.slane %v631, 3
    %v1751 = vlaneseq
    %v1752 = vshrl.u32 %v1751, 7
    %1754 = vset.pattern.permute.xlu0 %v1752
    %1755 = vperm.xlu0 %1754, %v1750
    %v1756 = vpop.permute.xlu0 %1755
    %v1757 = vlaneseq
    %v1758 = vshrl.u32 %v1757, 7
    %v1759 = vadd.s32 %v1758, 8
    %1760 = vset.pattern.permute.xlu0 %v1759
    %1761 = vperm.xlu0 %1760, %v1750
    %v1762 = vpop.permute.xlu0 %1761
    %v1763 = vperm.slane %v654, 3
    %v1764 = vlaneseq
    %v1765 = vshrl.u32 %v1764, 7
    %1767 = vset.pattern.permute.xlu0 %v1765
    %1768 = vperm.xlu0 %1767, %v1763
    %v1769 = vpop.permute.xlu0 %1768
    %v1770 = vlaneseq
    %v1771 = vshrl.u32 %v1770, 7
    %v1772 = vadd.s32 %v1771, 8
    %1773 = vset.pattern.permute.xlu0 %v1772
    %1774 = vperm.xlu0 %1773, %v1763
    %v1775 = vpop.permute.xlu0 %1774
    %v1776 = vperm.slane %v677, 3
    %v1777 = vlaneseq
    %v1778 = vshrl.u32 %v1777, 7
    %1780 = vset.pattern.permute.xlu0 %v1778
    %1781 = vperm.xlu0 %1780, %v1776
    %v1782 = vpop.permute.xlu0 %1781
    %v1783 = vlaneseq
    %v1784 = vshrl.u32 %v1783, 7
    %v1785 = vadd.s32 %v1784, 8
    %1786 = vset.pattern.permute.xlu0 %v1785
    %1787 = vperm.xlu0 %1786, %v1776
    %v1788 = vpop.permute.xlu0 %1787
    %v1789 = vperm.slane %v700, 3
    %v1790 = vlaneseq
    %v1791 = vshrl.u32 %v1790, 7
    %1793 = vset.pattern.permute.xlu0 %v1791
    %1794 = vperm.xlu0 %1793, %v1789
    %v1795 = vpop.permute.xlu0 %1794
    %v1796 = vlaneseq
    %v1797 = vshrl.u32 %v1796, 7
    %v1798 = vadd.s32 %v1797, 8
    %1799 = vset.pattern.permute.xlu0 %v1798
    %1800 = vperm.xlu0 %1799, %v1789
    %v1801 = vpop.permute.xlu0 %1800
    %v1802 = vperm.slane %v723, 3
    %v1803 = vlaneseq
    %v1804 = vshrl.u32 %v1803, 7
    %1806 = vset.pattern.permute.xlu0 %v1804
    %1807 = vperm.xlu0 %1806, %v1802
    %v1808 = vpop.permute.xlu0 %1807
    %v1809 = vlaneseq
    %v1810 = vshrl.u32 %v1809, 7
    %v1811 = vadd.s32 %v1810, 8
    %1812 = vset.pattern.permute.xlu0 %v1811
    %1813 = vperm.xlu0 %1812, %v1802
    %v1814 = vpop.permute.xlu0 %1813
    %v1815 = vperm.slane %v746, 3
    %v1816 = vlaneseq
    %v1817 = vshrl.u32 %v1816, 7
    %1819 = vset.pattern.permute.xlu0 %v1817
    %1820 = vperm.xlu0 %1819, %v1815
    %v1821 = vpop.permute.xlu0 %1820
    %v1822 = vlaneseq
    %v1823 = vshrl.u32 %v1822, 7
    %v1824 = vadd.s32 %v1823, 8
    %1825 = vset.pattern.permute.xlu0 %v1824
    %1826 = vperm.xlu0 %1825, %v1815
    %v1827 = vpop.permute.xlu0 %1826
    %v1828 = vperm.slane %v769, 3
    %v1829 = vlaneseq
    %v1830 = vshrl.u32 %v1829, 7
    %1832 = vset.pattern.permute.xlu0 %v1830
    %1833 = vperm.xlu0 %1832, %v1828
    %v1834 = vpop.permute.xlu0 %1833
    %v1835 = vlaneseq
    %v1836 = vshrl.u32 %v1835, 7
    %v1837 = vadd.s32 %v1836, 8
    %1838 = vset.pattern.permute.xlu0 %v1837
    %1839 = vperm.xlu0 %1838, %v1828
    %v1840 = vpop.permute.xlu0 %1839
    %v1841 = vperm.slane %v792, 3
    %v1842 = vlaneseq
    %v1843 = vshrl.u32 %v1842, 7
    %1845 = vset.pattern.permute.xlu0 %v1843
    %1846 = vperm.xlu0 %1845, %v1841
    %v1847 = vpop.permute.xlu0 %1846
    %v1848 = vlaneseq
    %v1849 = vshrl.u32 %v1848, 7
    %v1850 = vadd.s32 %v1849, 8
    %1851 = vset.pattern.permute.xlu0 %v1850
    %1852 = vperm.xlu0 %1851, %v1841
    %v1853 = vpop.permute.xlu0 %1852
    %v1854 = vperm.slane %v815, 3
    %v1855 = vlaneseq
    %v1856 = vshrl.u32 %v1855, 7
    %1858 = vset.pattern.permute.xlu0 %v1856
    %1859 = vperm.xlu0 %1858, %v1854
    %v1860 = vpop.permute.xlu0 %1859
    %v1861 = vlaneseq
    %v1862 = vshrl.u32 %v1861, 7
    %v1863 = vadd.s32 %v1862, 8
    %1864 = vset.pattern.permute.xlu0 %v1863
    %1865 = vperm.xlu0 %1864, %v1854
    %v1866 = vpop.permute.xlu0 %1865
    %v1867 = vperm.slane %v838, 3
    %v1868 = vlaneseq
    %v1869 = vshrl.u32 %v1868, 7
    %1871 = vset.pattern.permute.xlu0 %v1869
    %1872 = vperm.xlu0 %1871, %v1867
    %v1873 = vpop.permute.xlu0 %1872
    %v1874 = vlaneseq
    %v1875 = vshrl.u32 %v1874, 7
    %v1876 = vadd.s32 %v1875, 8
    %1877 = vset.pattern.permute.xlu0 %v1876
    %1878 = vperm.xlu0 %1877, %v1867
    %v1879 = vpop.permute.xlu0 %1878
    %v1880 = vperm.slane %v425, 3
    %v1881 = vperm.slane %v428, 3
    %v1882 = vperm.slane %v431, 3
    %v1883 = vperm.slane %v434, 3
    %v1884 = vperm.slane %v437, 3
    %v1885 = vperm.slane %v440, 3
    %v1886 = vperm.slane %v443, 3
    %v1887 = vperm.slane %v446, 3
    %v1888 = vperm.slane %v449, 3
    %v1889 = vperm.slane %v452, 3
    %v1890 = vperm.slane %v455, 3
    %v1891 = vperm.slane %v458, 3
    %v1892 = vperm.slane %v461, 3
    %v1893 = vperm.slane %v464, 3
    %v1894 = vperm.slane %v467, 3
    %v1895 = vperm.slane %v470, 3
    %v1896 = vmul.f32 %v1678, %v1880
    %v1897 = vmul.f32 %v1684, %v1880
    %v1898 = vmul.f32 %v1691, %v1881
    %v1899 = vmul.f32 %v1697, %v1881
    %v1900 = vmul.f32 %v1704, %v1882
    %v1901 = vmul.f32 %v1710, %v1882
    %v1902 = vmul.f32 %v1717, %v1883
    %v1903 = vmul.f32 %v1723, %v1883
    %v1904 = vmul.f32 %v1730, %v1884
    %v1905 = vmul.f32 %v1736, %v1884
    %v1906 = vmul.f32 %v1743, %v1885
    %v1907 = vmul.f32 %v1749, %v1885
    %v1908 = vmul.f32 %v1756, %v1886
    %v1909 = vmul.f32 %v1762, %v1886
    %v1910 = vmul.f32 %v1769, %v1887
    %v1911 = vmul.f32 %v1775, %v1887
    %v1912 = vmul.f32 %v1782, %v1888
    %v1913 = vmul.f32 %v1788, %v1888
    %v1914 = vmul.f32 %v1795, %v1889
    %v1915 = vmul.f32 %v1801, %v1889
    %v1916 = vmul.f32 %v1808, %v1890
    %v1917 = vmul.f32 %v1814, %v1890
    %v1918 = vmul.f32 %v1821, %v1891
    %v1919 = vmul.f32 %v1827, %v1891
    %v1920 = vmul.f32 %v1834, %v1892
    %v1921 = vmul.f32 %v1840, %v1892
    %v1922 = vmul.f32 %v1847, %v1893
    %v1923 = vmul.f32 %v1853, %v1893
    %v1924 = vmul.f32 %v1860, %v1894
    %v1925 = vmul.f32 %v1866, %v1894
    %v1926 = vmul.f32 %v1873, %v1895
    %v1927 = vmul.f32 %v1879, %v1895
    %v1928 = vadd.f32 %v1640, %v1896
    %v1929 = vadd.f32 %v1641, %v1897
    %v1930 = vadd.f32 %v1642, %v1898
    %v1931 = vadd.f32 %v1643, %v1899
    %v1932 = vadd.f32 %v1644, %v1900
    %v1933 = vadd.f32 %v1645, %v1901
    %v1934 = vadd.f32 %v1646, %v1902
    %v1935 = vadd.f32 %v1647, %v1903
    %v1936 = vadd.f32 %v1648, %v1904
    %v1937 = vadd.f32 %v1649, %v1905
    %v1938 = vadd.f32 %v1650, %v1906
    %v1939 = vadd.f32 %v1651, %v1907
    %v1940 = vadd.f32 %v1652, %v1908
    %v1941 = vadd.f32 %v1653, %v1909
    %v1942 = vadd.f32 %v1654, %v1910
    %v1943 = vadd.f32 %v1655, %v1911
    %v1944 = vadd.f32 %v1656, %v1912
    %v1945 = vadd.f32 %v1657, %v1913
    %v1946 = vadd.f32 %v1658, %v1914
    %v1947 = vadd.f32 %v1659, %v1915
    %v1948 = vadd.f32 %v1660, %v1916
    %v1949 = vadd.f32 %v1661, %v1917
    %v1950 = vadd.f32 %v1662, %v1918
    %v1951 = vadd.f32 %v1663, %v1919
    %v1952 = vadd.f32 %v1664, %v1920
    %v1953 = vadd.f32 %v1665, %v1921
    %v1954 = vadd.f32 %v1666, %v1922
    %v1955 = vadd.f32 %v1667, %v1923
    %v1956 = vadd.f32 %v1668, %v1924
    %v1957 = vadd.f32 %v1669, %v1925
    %v1958 = vadd.f32 %v1670, %v1926
    %v1959 = vadd.f32 %v1671, %v1927
    %v1960 = vperm.slane %v493, 4
    %v1961 = vlaneseq
    %v1962 = vshrl.u32 %v1961, 7
    %1964 = vset.pattern.permute.xlu0 %v1962
    %1965 = vperm.xlu0 %1964, %v1960
    %v1966 = vpop.permute.xlu0 %1965
    %v1967 = vlaneseq
    %v1968 = vshrl.u32 %v1967, 7
    %v1969 = vadd.s32 %v1968, 8
    %1970 = vset.pattern.permute.xlu0 %v1969
    %1971 = vperm.xlu0 %1970, %v1960
    %v1972 = vpop.permute.xlu0 %1971
    %v1973 = vperm.slane %v516, 4
    %v1974 = vlaneseq
    %v1975 = vshrl.u32 %v1974, 7
    %1977 = vset.pattern.permute.xlu0 %v1975
    %1978 = vperm.xlu0 %1977, %v1973
    %v1979 = vpop.permute.xlu0 %1978
    %v1980 = vlaneseq
    %v1981 = vshrl.u32 %v1980, 7
    %v1982 = vadd.s32 %v1981, 8
    %1983 = vset.pattern.permute.xlu0 %v1982
    %1984 = vperm.xlu0 %1983, %v1973
    %v1985 = vpop.permute.xlu0 %1984
    %v1986 = vperm.slane %v539, 4
    %v1987 = vlaneseq
    %v1988 = vshrl.u32 %v1987, 7
    %1990 = vset.pattern.permute.xlu0 %v1988
    %1991 = vperm.xlu0 %1990, %v1986
    %v1992 = vpop.permute.xlu0 %1991
    %v1993 = vlaneseq
    %v1994 = vshrl.u32 %v1993, 7
    %v1995 = vadd.s32 %v1994, 8
    %1996 = vset.pattern.permute.xlu0 %v1995
    %1997 = vperm.xlu0 %1996, %v1986
    %v1998 = vpop.permute.xlu0 %1997
    %v1999 = vperm.slane %v562, 4
    %v2000 = vlaneseq
    %v2001 = vshrl.u32 %v2000, 7
    %2003 = vset.pattern.permute.xlu0 %v2001
    %2004 = vperm.xlu0 %2003, %v1999
    %v2005 = vpop.permute.xlu0 %2004
    %v2006 = vlaneseq
    %v2007 = vshrl.u32 %v2006, 7
    %v2008 = vadd.s32 %v2007, 8
    %2009 = vset.pattern.permute.xlu0 %v2008
    %2010 = vperm.xlu0 %2009, %v1999
    %v2011 = vpop.permute.xlu0 %2010
    %v2012 = vperm.slane %v585, 4
    %v2013 = vlaneseq
    %v2014 = vshrl.u32 %v2013, 7
    %2016 = vset.pattern.permute.xlu0 %v2014
    %2017 = vperm.xlu0 %2016, %v2012
    %v2018 = vpop.permute.xlu0 %2017
    %v2019 = vlaneseq
    %v2020 = vshrl.u32 %v2019, 7
    %v2021 = vadd.s32 %v2020, 8
    %2022 = vset.pattern.permute.xlu0 %v2021
    %2023 = vperm.xlu0 %2022, %v2012
    %v2024 = vpop.permute.xlu0 %2023
    %v2025 = vperm.slane %v608, 4
    %v2026 = vlaneseq
    %v2027 = vshrl.u32 %v2026, 7
    %2029 = vset.pattern.permute.xlu0 %v2027
    %2030 = vperm.xlu0 %2029, %v2025
    %v2031 = vpop.permute.xlu0 %2030
    %v2032 = vlaneseq
    %v2033 = vshrl.u32 %v2032, 7
    %v2034 = vadd.s32 %v2033, 8
    %2035 = vset.pattern.permute.xlu0 %v2034
    %2036 = vperm.xlu0 %2035, %v2025
    %v2037 = vpop.permute.xlu0 %2036
    %v2038 = vperm.slane %v631, 4
    %v2039 = vlaneseq
    %v2040 = vshrl.u32 %v2039, 7
    %2042 = vset.pattern.permute.xlu0 %v2040
    %2043 = vperm.xlu0 %2042, %v2038
    %v2044 = vpop.permute.xlu0 %2043
    %v2045 = vlaneseq
    %v2046 = vshrl.u32 %v2045, 7
    %v2047 = vadd.s32 %v2046, 8
    %2048 = vset.pattern.permute.xlu0 %v2047
    %2049 = vperm.xlu0 %2048, %v2038
    %v2050 = vpop.permute.xlu0 %2049
    %v2051 = vperm.slane %v654, 4
    %v2052 = vlaneseq
    %v2053 = vshrl.u32 %v2052, 7
    %2055 = vset.pattern.permute.xlu0 %v2053
    %2056 = vperm.xlu0 %2055, %v2051
    %v2057 = vpop.permute.xlu0 %2056
    %v2058 = vlaneseq
    %v2059 = vshrl.u32 %v2058, 7
    %v2060 = vadd.s32 %v2059, 8
    %2061 = vset.pattern.permute.xlu0 %v2060
    %2062 = vperm.xlu0 %2061, %v2051
    %v2063 = vpop.permute.xlu0 %2062
    %v2064 = vperm.slane %v677, 4
    %v2065 = vlaneseq
    %v2066 = vshrl.u32 %v2065, 7
    %2068 = vset.pattern.permute.xlu0 %v2066
    %2069 = vperm.xlu0 %2068, %v2064
    %v2070 = vpop.permute.xlu0 %2069
    %v2071 = vlaneseq
    %v2072 = vshrl.u32 %v2071, 7
    %v2073 = vadd.s32 %v2072, 8
    %2074 = vset.pattern.permute.xlu0 %v2073
    %2075 = vperm.xlu0 %2074, %v2064
    %v2076 = vpop.permute.xlu0 %2075
    %v2077 = vperm.slane %v700, 4
    %v2078 = vlaneseq
    %v2079 = vshrl.u32 %v2078, 7
    %2081 = vset.pattern.permute.xlu0 %v2079
    %2082 = vperm.xlu0 %2081, %v2077
    %v2083 = vpop.permute.xlu0 %2082
    %v2084 = vlaneseq
    %v2085 = vshrl.u32 %v2084, 7
    %v2086 = vadd.s32 %v2085, 8
    %2087 = vset.pattern.permute.xlu0 %v2086
    %2088 = vperm.xlu0 %2087, %v2077
    %v2089 = vpop.permute.xlu0 %2088
    %v2090 = vperm.slane %v723, 4
    %v2091 = vlaneseq
    %v2092 = vshrl.u32 %v2091, 7
    %2094 = vset.pattern.permute.xlu0 %v2092
    %2095 = vperm.xlu0 %2094, %v2090
    %v2096 = vpop.permute.xlu0 %2095
    %v2097 = vlaneseq
    %v2098 = vshrl.u32 %v2097, 7
    %v2099 = vadd.s32 %v2098, 8
    %2100 = vset.pattern.permute.xlu0 %v2099
    %2101 = vperm.xlu0 %2100, %v2090
    %v2102 = vpop.permute.xlu0 %2101
    %v2103 = vperm.slane %v746, 4
    %v2104 = vlaneseq
    %v2105 = vshrl.u32 %v2104, 7
    %2107 = vset.pattern.permute.xlu0 %v2105
    %2108 = vperm.xlu0 %2107, %v2103
    %v2109 = vpop.permute.xlu0 %2108
    %v2110 = vlaneseq
    %v2111 = vshrl.u32 %v2110, 7
    %v2112 = vadd.s32 %v2111, 8
    %2113 = vset.pattern.permute.xlu0 %v2112
    %2114 = vperm.xlu0 %2113, %v2103
    %v2115 = vpop.permute.xlu0 %2114
    %v2116 = vperm.slane %v769, 4
    %v2117 = vlaneseq
    %v2118 = vshrl.u32 %v2117, 7
    %2120 = vset.pattern.permute.xlu0 %v2118
    %2121 = vperm.xlu0 %2120, %v2116
    %v2122 = vpop.permute.xlu0 %2121
    %v2123 = vlaneseq
    %v2124 = vshrl.u32 %v2123, 7
    %v2125 = vadd.s32 %v2124, 8
    %2126 = vset.pattern.permute.xlu0 %v2125
    %2127 = vperm.xlu0 %2126, %v2116
    %v2128 = vpop.permute.xlu0 %2127
    %v2129 = vperm.slane %v792, 4
    %v2130 = vlaneseq
    %v2131 = vshrl.u32 %v2130, 7
    %2133 = vset.pattern.permute.xlu0 %v2131
    %2134 = vperm.xlu0 %2133, %v2129
    %v2135 = vpop.permute.xlu0 %2134
    %v2136 = vlaneseq
    %v2137 = vshrl.u32 %v2136, 7
    %v2138 = vadd.s32 %v2137, 8
    %2139 = vset.pattern.permute.xlu0 %v2138
    %2140 = vperm.xlu0 %2139, %v2129
    %v2141 = vpop.permute.xlu0 %2140
    %v2142 = vperm.slane %v815, 4
    %v2143 = vlaneseq
    %v2144 = vshrl.u32 %v2143, 7
    %2146 = vset.pattern.permute.xlu0 %v2144
    %2147 = vperm.xlu0 %2146, %v2142
    %v2148 = vpop.permute.xlu0 %2147
    %v2149 = vlaneseq
    %v2150 = vshrl.u32 %v2149, 7
    %v2151 = vadd.s32 %v2150, 8
    %2152 = vset.pattern.permute.xlu0 %v2151
    %2153 = vperm.xlu0 %2152, %v2142
    %v2154 = vpop.permute.xlu0 %2153
    %v2155 = vperm.slane %v838, 4
    %v2156 = vlaneseq
    %v2157 = vshrl.u32 %v2156, 7
    %2159 = vset.pattern.permute.xlu0 %v2157
    %2160 = vperm.xlu0 %2159, %v2155
    %v2161 = vpop.permute.xlu0 %2160
    %v2162 = vlaneseq
    %v2163 = vshrl.u32 %v2162, 7
    %v2164 = vadd.s32 %v2163, 8
    %2165 = vset.pattern.permute.xlu0 %v2164
    %2166 = vperm.xlu0 %2165, %v2155
    %v2167 = vpop.permute.xlu0 %2166
    %v2168 = vperm.slane %v425, 4
    %v2169 = vperm.slane %v428, 4
    %v2170 = vperm.slane %v431, 4
    %v2171 = vperm.slane %v434, 4
    %v2172 = vperm.slane %v437, 4
    %v2173 = vperm.slane %v440, 4
    %v2174 = vperm.slane %v443, 4
    %v2175 = vperm.slane %v446, 4
    %v2176 = vperm.slane %v449, 4
    %v2177 = vperm.slane %v452, 4
    %v2178 = vperm.slane %v455, 4
    %v2179 = vperm.slane %v458, 4
    %v2180 = vperm.slane %v461, 4
    %v2181 = vperm.slane %v464, 4
    %v2182 = vperm.slane %v467, 4
    %v2183 = vperm.slane %v470, 4
    %v2184 = vmul.f32 %v1966, %v2168
    %v2185 = vmul.f32 %v1972, %v2168
    %v2186 = vmul.f32 %v1979, %v2169
    %v2187 = vmul.f32 %v1985, %v2169
    %v2188 = vmul.f32 %v1992, %v2170
    %v2189 = vmul.f32 %v1998, %v2170
    %v2190 = vmul.f32 %v2005, %v2171
    %v2191 = vmul.f32 %v2011, %v2171
    %v2192 = vmul.f32 %v2018, %v2172
    %v2193 = vmul.f32 %v2024, %v2172
    %v2194 = vmul.f32 %v2031, %v2173
    %v2195 = vmul.f32 %v2037, %v2173
    %v2196 = vmul.f32 %v2044, %v2174
    %v2197 = vmul.f32 %v2050, %v2174
    %v2198 = vmul.f32 %v2057, %v2175
    %v2199 = vmul.f32 %v2063, %v2175
    %v2200 = vmul.f32 %v2070, %v2176
    %v2201 = vmul.f32 %v2076, %v2176
    %v2202 = vmul.f32 %v2083, %v2177
    %v2203 = vmul.f32 %v2089, %v2177
    %v2204 = vmul.f32 %v2096, %v2178
    %v2205 = vmul.f32 %v2102, %v2178
    %v2206 = vmul.f32 %v2109, %v2179
    %v2207 = vmul.f32 %v2115, %v2179
    %v2208 = vmul.f32 %v2122, %v2180
    %v2209 = vmul.f32 %v2128, %v2180
    %v2210 = vmul.f32 %v2135, %v2181
    %v2211 = vmul.f32 %v2141, %v2181
    %v2212 = vmul.f32 %v2148, %v2182
    %v2213 = vmul.f32 %v2154, %v2182
    %v2214 = vmul.f32 %v2161, %v2183
    %v2215 = vmul.f32 %v2167, %v2183
    %v2216 = vadd.f32 %v1928, %v2184
    %v2217 = vadd.f32 %v1929, %v2185
    %v2218 = vadd.f32 %v1930, %v2186
    %v2219 = vadd.f32 %v1931, %v2187
    %v2220 = vadd.f32 %v1932, %v2188
    %v2221 = vadd.f32 %v1933, %v2189
    %v2222 = vadd.f32 %v1934, %v2190
    %v2223 = vadd.f32 %v1935, %v2191
    %v2224 = vadd.f32 %v1936, %v2192
    %v2225 = vadd.f32 %v1937, %v2193
    %v2226 = vadd.f32 %v1938, %v2194
    %v2227 = vadd.f32 %v1939, %v2195
    %v2228 = vadd.f32 %v1940, %v2196
    %v2229 = vadd.f32 %v1941, %v2197
    %v2230 = vadd.f32 %v1942, %v2198
    %v2231 = vadd.f32 %v1943, %v2199
    %v2232 = vadd.f32 %v1944, %v2200
    %v2233 = vadd.f32 %v1945, %v2201
    %v2234 = vadd.f32 %v1946, %v2202
    %v2235 = vadd.f32 %v1947, %v2203
    %v2236 = vadd.f32 %v1948, %v2204
    %v2237 = vadd.f32 %v1949, %v2205
    %v2238 = vadd.f32 %v1950, %v2206
    %v2239 = vadd.f32 %v1951, %v2207
    %v2240 = vadd.f32 %v1952, %v2208
    %v2241 = vadd.f32 %v1953, %v2209
    %v2242 = vadd.f32 %v1954, %v2210
    %v2243 = vadd.f32 %v1955, %v2211
    %v2244 = vadd.f32 %v1956, %v2212
    %v2245 = vadd.f32 %v1957, %v2213
    %v2246 = vadd.f32 %v1958, %v2214
    %v2247 = vadd.f32 %v1959, %v2215
    %v2248 = vperm.slane %v493, 5
    %v2249 = vlaneseq
    %v2250 = vshrl.u32 %v2249, 7
    %2252 = vset.pattern.permute.xlu0 %v2250
    %2253 = vperm.xlu0 %2252, %v2248
    %v2254 = vpop.permute.xlu0 %2253
    %v2255 = vlaneseq
    %v2256 = vshrl.u32 %v2255, 7
    %v2257 = vadd.s32 %v2256, 8
    %2258 = vset.pattern.permute.xlu0 %v2257
    %2259 = vperm.xlu0 %2258, %v2248
    %v2260 = vpop.permute.xlu0 %2259
    %v2261 = vperm.slane %v516, 5
    %v2262 = vlaneseq
    %v2263 = vshrl.u32 %v2262, 7
    %2265 = vset.pattern.permute.xlu0 %v2263
    %2266 = vperm.xlu0 %2265, %v2261
    %v2267 = vpop.permute.xlu0 %2266
    %v2268 = vlaneseq
    %v2269 = vshrl.u32 %v2268, 7
    %v2270 = vadd.s32 %v2269, 8
    %2271 = vset.pattern.permute.xlu0 %v2270
    %2272 = vperm.xlu0 %2271, %v2261
    %v2273 = vpop.permute.xlu0 %2272
    %v2274 = vperm.slane %v539, 5
    %v2275 = vlaneseq
    %v2276 = vshrl.u32 %v2275, 7
    %2278 = vset.pattern.permute.xlu0 %v2276
    %2279 = vperm.xlu0 %2278, %v2274
    %v2280 = vpop.permute.xlu0 %2279
    %v2281 = vlaneseq
    %v2282 = vshrl.u32 %v2281, 7
    %v2283 = vadd.s32 %v2282, 8
    %2284 = vset.pattern.permute.xlu0 %v2283
    %2285 = vperm.xlu0 %2284, %v2274
    %v2286 = vpop.permute.xlu0 %2285
    %v2287 = vperm.slane %v562, 5
    %v2288 = vlaneseq
    %v2289 = vshrl.u32 %v2288, 7
    %2291 = vset.pattern.permute.xlu0 %v2289
    %2292 = vperm.xlu0 %2291, %v2287
    %v2293 = vpop.permute.xlu0 %2292
    %v2294 = vlaneseq
    %v2295 = vshrl.u32 %v2294, 7
    %v2296 = vadd.s32 %v2295, 8
    %2297 = vset.pattern.permute.xlu0 %v2296
    %2298 = vperm.xlu0 %2297, %v2287
    %v2299 = vpop.permute.xlu0 %2298
    %v2300 = vperm.slane %v585, 5
    %v2301 = vlaneseq
    %v2302 = vshrl.u32 %v2301, 7
    %2304 = vset.pattern.permute.xlu0 %v2302
    %2305 = vperm.xlu0 %2304, %v2300
    %v2306 = vpop.permute.xlu0 %2305
    %v2307 = vlaneseq
    %v2308 = vshrl.u32 %v2307, 7
    %v2309 = vadd.s32 %v2308, 8
    %2310 = vset.pattern.permute.xlu0 %v2309
    %2311 = vperm.xlu0 %2310, %v2300
    %v2312 = vpop.permute.xlu0 %2311
    %v2313 = vperm.slane %v608, 5
    %v2314 = vlaneseq
    %v2315 = vshrl.u32 %v2314, 7
    %2317 = vset.pattern.permute.xlu0 %v2315
    %2318 = vperm.xlu0 %2317, %v2313
    %v2319 = vpop.permute.xlu0 %2318
    %v2320 = vlaneseq
    %v2321 = vshrl.u32 %v2320, 7
    %v2322 = vadd.s32 %v2321, 8
    %2323 = vset.pattern.permute.xlu0 %v2322
    %2324 = vperm.xlu0 %2323, %v2313
    %v2325 = vpop.permute.xlu0 %2324
    %v2326 = vperm.slane %v631, 5
    %v2327 = vlaneseq
    %v2328 = vshrl.u32 %v2327, 7
    %2330 = vset.pattern.permute.xlu0 %v2328
    %2331 = vperm.xlu0 %2330, %v2326
    %v2332 = vpop.permute.xlu0 %2331
    %v2333 = vlaneseq
    %v2334 = vshrl.u32 %v2333, 7
    %v2335 = vadd.s32 %v2334, 8
    %2336 = vset.pattern.permute.xlu0 %v2335
    %2337 = vperm.xlu0 %2336, %v2326
    %v2338 = vpop.permute.xlu0 %2337
    %v2339 = vperm.slane %v654, 5
    %v2340 = vlaneseq
    %v2341 = vshrl.u32 %v2340, 7
    %2343 = vset.pattern.permute.xlu0 %v2341
    %2344 = vperm.xlu0 %2343, %v2339
    %v2345 = vpop.permute.xlu0 %2344
    %v2346 = vlaneseq
    %v2347 = vshrl.u32 %v2346, 7
    %v2348 = vadd.s32 %v2347, 8
    %2349 = vset.pattern.permute.xlu0 %v2348
    %2350 = vperm.xlu0 %2349, %v2339
    %v2351 = vpop.permute.xlu0 %2350
    %v2352 = vperm.slane %v677, 5
    %v2353 = vlaneseq
    %v2354 = vshrl.u32 %v2353, 7
    %2356 = vset.pattern.permute.xlu0 %v2354
    %2357 = vperm.xlu0 %2356, %v2352
    %v2358 = vpop.permute.xlu0 %2357
    %v2359 = vlaneseq
    %v2360 = vshrl.u32 %v2359, 7
    %v2361 = vadd.s32 %v2360, 8
    %2362 = vset.pattern.permute.xlu0 %v2361
    %2363 = vperm.xlu0 %2362, %v2352
    %v2364 = vpop.permute.xlu0 %2363
    %v2365 = vperm.slane %v700, 5
    %v2366 = vlaneseq
    %v2367 = vshrl.u32 %v2366, 7
    %2369 = vset.pattern.permute.xlu0 %v2367
    %2370 = vperm.xlu0 %2369, %v2365
    %v2371 = vpop.permute.xlu0 %2370
    %v2372 = vlaneseq
    %v2373 = vshrl.u32 %v2372, 7
    %v2374 = vadd.s32 %v2373, 8
    %2375 = vset.pattern.permute.xlu0 %v2374
    %2376 = vperm.xlu0 %2375, %v2365
    %v2377 = vpop.permute.xlu0 %2376
    %v2378 = vperm.slane %v723, 5
    %v2379 = vlaneseq
    %v2380 = vshrl.u32 %v2379, 7
    %2382 = vset.pattern.permute.xlu0 %v2380
    %2383 = vperm.xlu0 %2382, %v2378
    %v2384 = vpop.permute.xlu0 %2383
    %v2385 = vlaneseq
    %v2386 = vshrl.u32 %v2385, 7
    %v2387 = vadd.s32 %v2386, 8
    %2388 = vset.pattern.permute.xlu0 %v2387
    %2389 = vperm.xlu0 %2388, %v2378
    %v2390 = vpop.permute.xlu0 %2389
    %v2391 = vperm.slane %v746, 5
    %v2392 = vlaneseq
    %v2393 = vshrl.u32 %v2392, 7
    %2395 = vset.pattern.permute.xlu0 %v2393
    %2396 = vperm.xlu0 %2395, %v2391
    %v2397 = vpop.permute.xlu0 %2396
    %v2398 = vlaneseq
    %v2399 = vshrl.u32 %v2398, 7
    %v2400 = vadd.s32 %v2399, 8
    %2401 = vset.pattern.permute.xlu0 %v2400
    %2402 = vperm.xlu0 %2401, %v2391
    %v2403 = vpop.permute.xlu0 %2402
    %v2404 = vperm.slane %v769, 5
    %v2405 = vlaneseq
    %v2406 = vshrl.u32 %v2405, 7
    %2408 = vset.pattern.permute.xlu0 %v2406
    %2409 = vperm.xlu0 %2408, %v2404
    %v2410 = vpop.permute.xlu0 %2409
    %v2411 = vlaneseq
    %v2412 = vshrl.u32 %v2411, 7
    %v2413 = vadd.s32 %v2412, 8
    %2414 = vset.pattern.permute.xlu0 %v2413
    %2415 = vperm.xlu0 %2414, %v2404
    %v2416 = vpop.permute.xlu0 %2415
    %v2417 = vperm.slane %v792, 5
    %v2418 = vlaneseq
    %v2419 = vshrl.u32 %v2418, 7
    %2421 = vset.pattern.permute.xlu0 %v2419
    %2422 = vperm.xlu0 %2421, %v2417
    %v2423 = vpop.permute.xlu0 %2422
    %v2424 = vlaneseq
    %v2425 = vshrl.u32 %v2424, 7
    %v2426 = vadd.s32 %v2425, 8
    %2427 = vset.pattern.permute.xlu0 %v2426
    %2428 = vperm.xlu0 %2427, %v2417
    %v2429 = vpop.permute.xlu0 %2428
    %v2430 = vperm.slane %v815, 5
    %v2431 = vlaneseq
    %v2432 = vshrl.u32 %v2431, 7
    %2434 = vset.pattern.permute.xlu0 %v2432
    %2435 = vperm.xlu0 %2434, %v2430
    %v2436 = vpop.permute.xlu0 %2435
    %v2437 = vlaneseq
    %v2438 = vshrl.u32 %v2437, 7
    %v2439 = vadd.s32 %v2438, 8
    %2440 = vset.pattern.permute.xlu0 %v2439
    %2441 = vperm.xlu0 %2440, %v2430
    %v2442 = vpop.permute.xlu0 %2441
    %v2443 = vperm.slane %v838, 5
    %v2444 = vlaneseq
    %v2445 = vshrl.u32 %v2444, 7
    %2447 = vset.pattern.permute.xlu0 %v2445
    %2448 = vperm.xlu0 %2447, %v2443
    %v2449 = vpop.permute.xlu0 %2448
    %v2450 = vlaneseq
    %v2451 = vshrl.u32 %v2450, 7
    %v2452 = vadd.s32 %v2451, 8
    %2453 = vset.pattern.permute.xlu0 %v2452
    %2454 = vperm.xlu0 %2453, %v2443
    %v2455 = vpop.permute.xlu0 %2454
    %v2456 = vperm.slane %v425, 5
    %v2457 = vperm.slane %v428, 5
    %v2458 = vperm.slane %v431, 5
    %v2459 = vperm.slane %v434, 5
    %v2460 = vperm.slane %v437, 5
    %v2461 = vperm.slane %v440, 5
    %v2462 = vperm.slane %v443, 5
    %v2463 = vperm.slane %v446, 5
    %v2464 = vperm.slane %v449, 5
    %v2465 = vperm.slane %v452, 5
    %v2466 = vperm.slane %v455, 5
    %v2467 = vperm.slane %v458, 5
    %v2468 = vperm.slane %v461, 5
    %v2469 = vperm.slane %v464, 5
    %v2470 = vperm.slane %v467, 5
    %v2471 = vperm.slane %v470, 5
    %v2472 = vmul.f32 %v2254, %v2456
    %v2473 = vmul.f32 %v2260, %v2456
    %v2474 = vmul.f32 %v2267, %v2457
    %v2475 = vmul.f32 %v2273, %v2457
    %v2476 = vmul.f32 %v2280, %v2458
    %v2477 = vmul.f32 %v2286, %v2458
    %v2478 = vmul.f32 %v2293, %v2459
    %v2479 = vmul.f32 %v2299, %v2459
    %v2480 = vmul.f32 %v2306, %v2460
    %v2481 = vmul.f32 %v2312, %v2460
    %v2482 = vmul.f32 %v2319, %v2461
    %v2483 = vmul.f32 %v2325, %v2461
    %v2484 = vmul.f32 %v2332, %v2462
    %v2485 = vmul.f32 %v2338, %v2462
    %v2486 = vmul.f32 %v2345, %v2463
    %v2487 = vmul.f32 %v2351, %v2463
    %v2488 = vmul.f32 %v2358, %v2464
    %v2489 = vmul.f32 %v2364, %v2464
    %v2490 = vmul.f32 %v2371, %v2465
    %v2491 = vmul.f32 %v2377, %v2465
    %v2492 = vmul.f32 %v2384, %v2466
    %v2493 = vmul.f32 %v2390, %v2466
    %v2494 = vmul.f32 %v2397, %v2467
    %v2495 = vmul.f32 %v2403, %v2467
    %v2496 = vmul.f32 %v2410, %v2468
    %v2497 = vmul.f32 %v2416, %v2468
    %v2498 = vmul.f32 %v2423, %v2469
    %v2499 = vmul.f32 %v2429, %v2469
    %v2500 = vmul.f32 %v2436, %v2470
    %v2501 = vmul.f32 %v2442, %v2470
    %v2502 = vmul.f32 %v2449, %v2471
    %v2503 = vmul.f32 %v2455, %v2471
    %v2504 = vadd.f32 %v2216, %v2472
    %v2505 = vadd.f32 %v2217, %v2473
    %v2506 = vadd.f32 %v2218, %v2474
    %v2507 = vadd.f32 %v2219, %v2475
    %v2508 = vadd.f32 %v2220, %v2476
    %v2509 = vadd.f32 %v2221, %v2477
    %v2510 = vadd.f32 %v2222, %v2478
    %v2511 = vadd.f32 %v2223, %v2479
    %v2512 = vadd.f32 %v2224, %v2480
    %v2513 = vadd.f32 %v2225, %v2481
    %v2514 = vadd.f32 %v2226, %v2482
    %v2515 = vadd.f32 %v2227, %v2483
    %v2516 = vadd.f32 %v2228, %v2484
    %v2517 = vadd.f32 %v2229, %v2485
    %v2518 = vadd.f32 %v2230, %v2486
    %v2519 = vadd.f32 %v2231, %v2487
    %v2520 = vadd.f32 %v2232, %v2488
    %v2521 = vadd.f32 %v2233, %v2489
    %v2522 = vadd.f32 %v2234, %v2490
    %v2523 = vadd.f32 %v2235, %v2491
    %v2524 = vadd.f32 %v2236, %v2492
    %v2525 = vadd.f32 %v2237, %v2493
    %v2526 = vadd.f32 %v2238, %v2494
    %v2527 = vadd.f32 %v2239, %v2495
    %v2528 = vadd.f32 %v2240, %v2496
    %v2529 = vadd.f32 %v2241, %v2497
    %v2530 = vadd.f32 %v2242, %v2498
    %v2531 = vadd.f32 %v2243, %v2499
    %v2532 = vadd.f32 %v2244, %v2500
    %v2533 = vadd.f32 %v2245, %v2501
    %v2534 = vadd.f32 %v2246, %v2502
    %v2535 = vadd.f32 %v2247, %v2503
    %v2536 = vperm.slane %v493, 6
    %v2537 = vlaneseq
    %v2538 = vshrl.u32 %v2537, 7
    %2540 = vset.pattern.permute.xlu0 %v2538
    %2541 = vperm.xlu0 %2540, %v2536
    %v2542 = vpop.permute.xlu0 %2541
    %v2543 = vlaneseq
    %v2544 = vshrl.u32 %v2543, 7
    %v2545 = vadd.s32 %v2544, 8
    %2546 = vset.pattern.permute.xlu0 %v2545
    %2547 = vperm.xlu0 %2546, %v2536
    %v2548 = vpop.permute.xlu0 %2547
    %v2549 = vperm.slane %v516, 6
    %v2550 = vlaneseq
    %v2551 = vshrl.u32 %v2550, 7
    %2553 = vset.pattern.permute.xlu0 %v2551
    %2554 = vperm.xlu0 %2553, %v2549
    %v2555 = vpop.permute.xlu0 %2554
    %v2556 = vlaneseq
    %v2557 = vshrl.u32 %v2556, 7
    %v2558 = vadd.s32 %v2557, 8
    %2559 = vset.pattern.permute.xlu0 %v2558
    %2560 = vperm.xlu0 %2559, %v2549
    %v2561 = vpop.permute.xlu0 %2560
    %v2562 = vperm.slane %v539, 6
    %v2563 = vlaneseq
    %v2564 = vshrl.u32 %v2563, 7
    %2566 = vset.pattern.permute.xlu0 %v2564
    %2567 = vperm.xlu0 %2566, %v2562
    %v2568 = vpop.permute.xlu0 %2567
    %v2569 = vlaneseq
    %v2570 = vshrl.u32 %v2569, 7
    %v2571 = vadd.s32 %v2570, 8
    %2572 = vset.pattern.permute.xlu0 %v2571
    %2573 = vperm.xlu0 %2572, %v2562
    %v2574 = vpop.permute.xlu0 %2573
    %v2575 = vperm.slane %v562, 6
    %v2576 = vlaneseq
    %v2577 = vshrl.u32 %v2576, 7
    %2579 = vset.pattern.permute.xlu0 %v2577
    %2580 = vperm.xlu0 %2579, %v2575
    %v2581 = vpop.permute.xlu0 %2580
    %v2582 = vlaneseq
    %v2583 = vshrl.u32 %v2582, 7
    %v2584 = vadd.s32 %v2583, 8
    %2585 = vset.pattern.permute.xlu0 %v2584
    %2586 = vperm.xlu0 %2585, %v2575
    %v2587 = vpop.permute.xlu0 %2586
    %v2588 = vperm.slane %v585, 6
    %v2589 = vlaneseq
    %v2590 = vshrl.u32 %v2589, 7
    %2592 = vset.pattern.permute.xlu0 %v2590
    %2593 = vperm.xlu0 %2592, %v2588
    %v2594 = vpop.permute.xlu0 %2593
    %v2595 = vlaneseq
    %v2596 = vshrl.u32 %v2595, 7
    %v2597 = vadd.s32 %v2596, 8
    %2598 = vset.pattern.permute.xlu0 %v2597
    %2599 = vperm.xlu0 %2598, %v2588
    %v2600 = vpop.permute.xlu0 %2599
    %v2601 = vperm.slane %v608, 6
    %v2602 = vlaneseq
    %v2603 = vshrl.u32 %v2602, 7
    %2605 = vset.pattern.permute.xlu0 %v2603
    %2606 = vperm.xlu0 %2605, %v2601
    %v2607 = vpop.permute.xlu0 %2606
    %v2608 = vlaneseq
    %v2609 = vshrl.u32 %v2608, 7
    %v2610 = vadd.s32 %v2609, 8
    %2611 = vset.pattern.permute.xlu0 %v2610
    %2612 = vperm.xlu0 %2611, %v2601
    %v2613 = vpop.permute.xlu0 %2612
    %v2614 = vperm.slane %v631, 6
    %v2615 = vlaneseq
    %v2616 = vshrl.u32 %v2615, 7
    %2618 = vset.pattern.permute.xlu0 %v2616
    %2619 = vperm.xlu0 %2618, %v2614
    %v2620 = vpop.permute.xlu0 %2619
    %v2621 = vlaneseq
    %v2622 = vshrl.u32 %v2621, 7
    %v2623 = vadd.s32 %v2622, 8
    %2624 = vset.pattern.permute.xlu0 %v2623
    %2625 = vperm.xlu0 %2624, %v2614
    %v2626 = vpop.permute.xlu0 %2625
    %v2627 = vperm.slane %v654, 6
    %v2628 = vlaneseq
    %v2629 = vshrl.u32 %v2628, 7
    %2631 = vset.pattern.permute.xlu0 %v2629
    %2632 = vperm.xlu0 %2631, %v2627
    %v2633 = vpop.permute.xlu0 %2632
    %v2634 = vlaneseq
    %v2635 = vshrl.u32 %v2634, 7
    %v2636 = vadd.s32 %v2635, 8
    %2637 = vset.pattern.permute.xlu0 %v2636
    %2638 = vperm.xlu0 %2637, %v2627
    %v2639 = vpop.permute.xlu0 %2638
    %v2640 = vperm.slane %v677, 6
    %v2641 = vlaneseq
    %v2642 = vshrl.u32 %v2641, 7
    %2644 = vset.pattern.permute.xlu0 %v2642
    %2645 = vperm.xlu0 %2644, %v2640
    %v2646 = vpop.permute.xlu0 %2645
    %v2647 = vlaneseq
    %v2648 = vshrl.u32 %v2647, 7
    %v2649 = vadd.s32 %v2648, 8
    %2650 = vset.pattern.permute.xlu0 %v2649
    %2651 = vperm.xlu0 %2650, %v2640
    %v2652 = vpop.permute.xlu0 %2651
    %v2653 = vperm.slane %v700, 6
    %v2654 = vlaneseq
    %v2655 = vshrl.u32 %v2654, 7
    %2657 = vset.pattern.permute.xlu0 %v2655
    %2658 = vperm.xlu0 %2657, %v2653
    %v2659 = vpop.permute.xlu0 %2658
    %v2660 = vlaneseq
    %v2661 = vshrl.u32 %v2660, 7
    %v2662 = vadd.s32 %v2661, 8
    %2663 = vset.pattern.permute.xlu0 %v2662
    %2664 = vperm.xlu0 %2663, %v2653
    %v2665 = vpop.permute.xlu0 %2664
    %v2666 = vperm.slane %v723, 6
    %v2667 = vlaneseq
    %v2668 = vshrl.u32 %v2667, 7
    %2670 = vset.pattern.permute.xlu0 %v2668
    %2671 = vperm.xlu0 %2670, %v2666
    %v2672 = vpop.permute.xlu0 %2671
    %v2673 = vlaneseq
    %v2674 = vshrl.u32 %v2673, 7
    %v2675 = vadd.s32 %v2674, 8
    %2676 = vset.pattern.permute.xlu0 %v2675
    %2677 = vperm.xlu0 %2676, %v2666
    %v2678 = vpop.permute.xlu0 %2677
    %v2679 = vperm.slane %v746, 6
    %v2680 = vlaneseq
    %v2681 = vshrl.u32 %v2680, 7
    %2683 = vset.pattern.permute.xlu0 %v2681
    %2684 = vperm.xlu0 %2683, %v2679
    %v2685 = vpop.permute.xlu0 %2684
    %v2686 = vlaneseq
    %v2687 = vshrl.u32 %v2686, 7
    %v2688 = vadd.s32 %v2687, 8
    %2689 = vset.pattern.permute.xlu0 %v2688
    %2690 = vperm.xlu0 %2689, %v2679
    %v2691 = vpop.permute.xlu0 %2690
    %v2692 = vperm.slane %v769, 6
    %v2693 = vlaneseq
    %v2694 = vshrl.u32 %v2693, 7
    %2696 = vset.pattern.permute.xlu0 %v2694
    %2697 = vperm.xlu0 %2696, %v2692
    %v2698 = vpop.permute.xlu0 %2697
    %v2699 = vlaneseq
    %v2700 = vshrl.u32 %v2699, 7
    %v2701 = vadd.s32 %v2700, 8
    %2702 = vset.pattern.permute.xlu0 %v2701
    %2703 = vperm.xlu0 %2702, %v2692
    %v2704 = vpop.permute.xlu0 %2703
    %v2705 = vperm.slane %v792, 6
    %v2706 = vlaneseq
    %v2707 = vshrl.u32 %v2706, 7
    %2709 = vset.pattern.permute.xlu0 %v2707
    %2710 = vperm.xlu0 %2709, %v2705
    %v2711 = vpop.permute.xlu0 %2710
    %v2712 = vlaneseq
    %v2713 = vshrl.u32 %v2712, 7
    %v2714 = vadd.s32 %v2713, 8
    %2715 = vset.pattern.permute.xlu0 %v2714
    %2716 = vperm.xlu0 %2715, %v2705
    %v2717 = vpop.permute.xlu0 %2716
    %v2718 = vperm.slane %v815, 6
    %v2719 = vlaneseq
    %v2720 = vshrl.u32 %v2719, 7
    %2722 = vset.pattern.permute.xlu0 %v2720
    %2723 = vperm.xlu0 %2722, %v2718
    %v2724 = vpop.permute.xlu0 %2723
    %v2725 = vlaneseq
    %v2726 = vshrl.u32 %v2725, 7
    %v2727 = vadd.s32 %v2726, 8
    %2728 = vset.pattern.permute.xlu0 %v2727
    %2729 = vperm.xlu0 %2728, %v2718
    %v2730 = vpop.permute.xlu0 %2729
    %v2731 = vperm.slane %v838, 6
    %v2732 = vlaneseq
    %v2733 = vshrl.u32 %v2732, 7
    %2735 = vset.pattern.permute.xlu0 %v2733
    %2736 = vperm.xlu0 %2735, %v2731
    %v2737 = vpop.permute.xlu0 %2736
    %v2738 = vlaneseq
    %v2739 = vshrl.u32 %v2738, 7
    %v2740 = vadd.s32 %v2739, 8
    %2741 = vset.pattern.permute.xlu0 %v2740
    %2742 = vperm.xlu0 %2741, %v2731
    %v2743 = vpop.permute.xlu0 %2742
    %v2744 = vperm.slane %v425, 6
    %v2745 = vperm.slane %v428, 6
    %v2746 = vperm.slane %v431, 6
    %v2747 = vperm.slane %v434, 6
    %v2748 = vperm.slane %v437, 6
    %v2749 = vperm.slane %v440, 6
    %v2750 = vperm.slane %v443, 6
    %v2751 = vperm.slane %v446, 6
    %v2752 = vperm.slane %v449, 6
    %v2753 = vperm.slane %v452, 6
    %v2754 = vperm.slane %v455, 6
    %v2755 = vperm.slane %v458, 6
    %v2756 = vperm.slane %v461, 6
    %v2757 = vperm.slane %v464, 6
    %v2758 = vperm.slane %v467, 6
    %v2759 = vperm.slane %v470, 6
    %v2760 = vmul.f32 %v2542, %v2744
    %v2761 = vmul.f32 %v2548, %v2744
    %v2762 = vmul.f32 %v2555, %v2745
    %v2763 = vmul.f32 %v2561, %v2745
    %v2764 = vmul.f32 %v2568, %v2746
    %v2765 = vmul.f32 %v2574, %v2746
    %v2766 = vmul.f32 %v2581, %v2747
    %v2767 = vmul.f32 %v2587, %v2747
    %v2768 = vmul.f32 %v2594, %v2748
    %v2769 = vmul.f32 %v2600, %v2748
    %v2770 = vmul.f32 %v2607, %v2749
    %v2771 = vmul.f32 %v2613, %v2749
    %v2772 = vmul.f32 %v2620, %v2750
    %v2773 = vmul.f32 %v2626, %v2750
    %v2774 = vmul.f32 %v2633, %v2751
    %v2775 = vmul.f32 %v2639, %v2751
    %v2776 = vmul.f32 %v2646, %v2752
    %v2777 = vmul.f32 %v2652, %v2752
    %v2778 = vmul.f32 %v2659, %v2753
    %v2779 = vmul.f32 %v2665, %v2753
    %v2780 = vmul.f32 %v2672, %v2754
    %v2781 = vmul.f32 %v2678, %v2754
    %v2782 = vmul.f32 %v2685, %v2755
    %v2783 = vmul.f32 %v2691, %v2755
    %v2784 = vmul.f32 %v2698, %v2756
    %v2785 = vmul.f32 %v2704, %v2756
    %v2786 = vmul.f32 %v2711, %v2757
    %v2787 = vmul.f32 %v2717, %v2757
    %v2788 = vmul.f32 %v2724, %v2758
    %v2789 = vmul.f32 %v2730, %v2758
    %v2790 = vmul.f32 %v2737, %v2759
    %v2791 = vmul.f32 %v2743, %v2759
    %v2792 = vadd.f32 %v2504, %v2760
    %v2793 = vadd.f32 %v2505, %v2761
    %v2794 = vadd.f32 %v2506, %v2762
    %v2795 = vadd.f32 %v2507, %v2763
    %v2796 = vadd.f32 %v2508, %v2764
    %v2797 = vadd.f32 %v2509, %v2765
    %v2798 = vadd.f32 %v2510, %v2766
    %v2799 = vadd.f32 %v2511, %v2767
    %v2800 = vadd.f32 %v2512, %v2768
    %v2801 = vadd.f32 %v2513, %v2769
    %v2802 = vadd.f32 %v2514, %v2770
    %v2803 = vadd.f32 %v2515, %v2771
    %v2804 = vadd.f32 %v2516, %v2772
    %v2805 = vadd.f32 %v2517, %v2773
    %v2806 = vadd.f32 %v2518, %v2774
    %v2807 = vadd.f32 %v2519, %v2775
    %v2808 = vadd.f32 %v2520, %v2776
    %v2809 = vadd.f32 %v2521, %v2777
    %v2810 = vadd.f32 %v2522, %v2778
    %v2811 = vadd.f32 %v2523, %v2779
    %v2812 = vadd.f32 %v2524, %v2780
    %v2813 = vadd.f32 %v2525, %v2781
    %v2814 = vadd.f32 %v2526, %v2782
    %v2815 = vadd.f32 %v2527, %v2783
    %v2816 = vadd.f32 %v2528, %v2784
    %v2817 = vadd.f32 %v2529, %v2785
    %v2818 = vadd.f32 %v2530, %v2786
    %v2819 = vadd.f32 %v2531, %v2787
    %v2820 = vadd.f32 %v2532, %v2788
    %v2821 = vadd.f32 %v2533, %v2789
    %v2822 = vadd.f32 %v2534, %v2790
    %v2823 = vadd.f32 %v2535, %v2791
    %v2824 = vperm.slane %v493, 7
    %v2825 = vlaneseq
    %v2826 = vshrl.u32 %v2825, 7
    %2828 = vset.pattern.permute.xlu0 %v2826
    %2829 = vperm.xlu0 %2828, %v2824
    %v2830 = vpop.permute.xlu0 %2829
    %v2831 = vlaneseq
    %v2832 = vshrl.u32 %v2831, 7
    %v2833 = vadd.s32 %v2832, 8
    %2834 = vset.pattern.permute.xlu0 %v2833
    %2835 = vperm.xlu0 %2834, %v2824
    %v2836 = vpop.permute.xlu0 %2835
    %v2837 = vperm.slane %v516, 7
    %v2838 = vlaneseq
    %v2839 = vshrl.u32 %v2838, 7
    %2841 = vset.pattern.permute.xlu0 %v2839
    %2842 = vperm.xlu0 %2841, %v2837
    %v2843 = vpop.permute.xlu0 %2842
    %v2844 = vlaneseq
    %v2845 = vshrl.u32 %v2844, 7
    %v2846 = vadd.s32 %v2845, 8
    %2847 = vset.pattern.permute.xlu0 %v2846
    %2848 = vperm.xlu0 %2847, %v2837
    %v2849 = vpop.permute.xlu0 %2848
    %v2850 = vperm.slane %v539, 7
    %v2851 = vlaneseq
    %v2852 = vshrl.u32 %v2851, 7
    %2854 = vset.pattern.permute.xlu0 %v2852
    %2855 = vperm.xlu0 %2854, %v2850
    %v2856 = vpop.permute.xlu0 %2855
    %v2857 = vlaneseq
    %v2858 = vshrl.u32 %v2857, 7
    %v2859 = vadd.s32 %v2858, 8
    %2860 = vset.pattern.permute.xlu0 %v2859
    %2861 = vperm.xlu0 %2860, %v2850
    %v2862 = vpop.permute.xlu0 %2861
    %v2863 = vperm.slane %v562, 7
    %v2864 = vlaneseq
    %v2865 = vshrl.u32 %v2864, 7
    %2867 = vset.pattern.permute.xlu0 %v2865
    %2868 = vperm.xlu0 %2867, %v2863
    %v2869 = vpop.permute.xlu0 %2868
    %v2870 = vlaneseq
    %v2871 = vshrl.u32 %v2870, 7
    %v2872 = vadd.s32 %v2871, 8
    %2873 = vset.pattern.permute.xlu0 %v2872
    %2874 = vperm.xlu0 %2873, %v2863
    %v2875 = vpop.permute.xlu0 %2874
    %v2876 = vperm.slane %v585, 7
    %v2877 = vlaneseq
    %v2878 = vshrl.u32 %v2877, 7
    %2880 = vset.pattern.permute.xlu0 %v2878
    %2881 = vperm.xlu0 %2880, %v2876
    %v2882 = vpop.permute.xlu0 %2881
    %v2883 = vlaneseq
    %v2884 = vshrl.u32 %v2883, 7
    %v2885 = vadd.s32 %v2884, 8
    %2886 = vset.pattern.permute.xlu0 %v2885
    %2887 = vperm.xlu0 %2886, %v2876
    %v2888 = vpop.permute.xlu0 %2887
    %v2889 = vperm.slane %v608, 7
    %v2890 = vlaneseq
    %v2891 = vshrl.u32 %v2890, 7
    %2893 = vset.pattern.permute.xlu0 %v2891
    %2894 = vperm.xlu0 %2893, %v2889
    %v2895 = vpop.permute.xlu0 %2894
    %v2896 = vlaneseq
    %v2897 = vshrl.u32 %v2896, 7
    %v2898 = vadd.s32 %v2897, 8
    %2899 = vset.pattern.permute.xlu0 %v2898
    %2900 = vperm.xlu0 %2899, %v2889
    %v2901 = vpop.permute.xlu0 %2900
    %v2902 = vperm.slane %v631, 7
    %v2903 = vlaneseq
    %v2904 = vshrl.u32 %v2903, 7
    %2906 = vset.pattern.permute.xlu0 %v2904
    %2907 = vperm.xlu0 %2906, %v2902
    %v2908 = vpop.permute.xlu0 %2907
    %v2909 = vlaneseq
    %v2910 = vshrl.u32 %v2909, 7
    %v2911 = vadd.s32 %v2910, 8
    %2912 = vset.pattern.permute.xlu0 %v2911
    %2913 = vperm.xlu0 %2912, %v2902
    %v2914 = vpop.permute.xlu0 %2913
    %v2915 = vperm.slane %v654, 7
    %v2916 = vlaneseq
    %v2917 = vshrl.u32 %v2916, 7
    %2919 = vset.pattern.permute.xlu0 %v2917
    %2920 = vperm.xlu0 %2919, %v2915
    %v2921 = vpop.permute.xlu0 %2920
    %v2922 = vlaneseq
    %v2923 = vshrl.u32 %v2922, 7
    %v2924 = vadd.s32 %v2923, 8
    %2925 = vset.pattern.permute.xlu0 %v2924
    %2926 = vperm.xlu0 %2925, %v2915
    %v2927 = vpop.permute.xlu0 %2926
    %v2928 = vperm.slane %v677, 7
    %v2929 = vlaneseq
    %v2930 = vshrl.u32 %v2929, 7
    %2932 = vset.pattern.permute.xlu0 %v2930
    %2933 = vperm.xlu0 %2932, %v2928
    %v2934 = vpop.permute.xlu0 %2933
    %v2935 = vlaneseq
    %v2936 = vshrl.u32 %v2935, 7
    %v2937 = vadd.s32 %v2936, 8
    %2938 = vset.pattern.permute.xlu0 %v2937
    %2939 = vperm.xlu0 %2938, %v2928
    %v2940 = vpop.permute.xlu0 %2939
    %v2941 = vperm.slane %v700, 7
    %v2942 = vlaneseq
    %v2943 = vshrl.u32 %v2942, 7
    %2945 = vset.pattern.permute.xlu0 %v2943
    %2946 = vperm.xlu0 %2945, %v2941
    %v2947 = vpop.permute.xlu0 %2946
    %v2948 = vlaneseq
    %v2949 = vshrl.u32 %v2948, 7
    %v2950 = vadd.s32 %v2949, 8
    %2951 = vset.pattern.permute.xlu0 %v2950
    %2952 = vperm.xlu0 %2951, %v2941
    %v2953 = vpop.permute.xlu0 %2952
    %v2954 = vperm.slane %v723, 7
    %v2955 = vlaneseq
    %v2956 = vshrl.u32 %v2955, 7
    %2958 = vset.pattern.permute.xlu0 %v2956
    %2959 = vperm.xlu0 %2958, %v2954
    %v2960 = vpop.permute.xlu0 %2959
    %v2961 = vlaneseq
    %v2962 = vshrl.u32 %v2961, 7
    %v2963 = vadd.s32 %v2962, 8
    %2964 = vset.pattern.permute.xlu0 %v2963
    %2965 = vperm.xlu0 %2964, %v2954
    %v2966 = vpop.permute.xlu0 %2965
    %v2967 = vperm.slane %v746, 7
    %v2968 = vlaneseq
    %v2969 = vshrl.u32 %v2968, 7
    %2971 = vset.pattern.permute.xlu0 %v2969
    %2972 = vperm.xlu0 %2971, %v2967
    %v2973 = vpop.permute.xlu0 %2972
    %v2974 = vlaneseq
    %v2975 = vshrl.u32 %v2974, 7
    %v2976 = vadd.s32 %v2975, 8
    %2977 = vset.pattern.permute.xlu0 %v2976
    %2978 = vperm.xlu0 %2977, %v2967
    %v2979 = vpop.permute.xlu0 %2978
    %v2980 = vperm.slane %v769, 7
    %v2981 = vlaneseq
    %v2982 = vshrl.u32 %v2981, 7
    %2984 = vset.pattern.permute.xlu0 %v2982
    %2985 = vperm.xlu0 %2984, %v2980
    %v2986 = vpop.permute.xlu0 %2985
    %v2987 = vlaneseq
    %v2988 = vshrl.u32 %v2987, 7
    %v2989 = vadd.s32 %v2988, 8
    %2990 = vset.pattern.permute.xlu0 %v2989
    %2991 = vperm.xlu0 %2990, %v2980
    %v2992 = vpop.permute.xlu0 %2991
    %v2993 = vperm.slane %v792, 7
    %v2994 = vlaneseq
    %v2995 = vshrl.u32 %v2994, 7
    %2997 = vset.pattern.permute.xlu0 %v2995
    %2998 = vperm.xlu0 %2997, %v2993
    %v2999 = vpop.permute.xlu0 %2998
    %v3000 = vlaneseq
    %v3001 = vshrl.u32 %v3000, 7
    %v3002 = vadd.s32 %v3001, 8
    %3003 = vset.pattern.permute.xlu0 %v3002
    %3004 = vperm.xlu0 %3003, %v2993
    %v3005 = vpop.permute.xlu0 %3004
    %v3006 = vperm.slane %v815, 7
    %v3007 = vlaneseq
    %v3008 = vshrl.u32 %v3007, 7
    %3010 = vset.pattern.permute.xlu0 %v3008
    %3011 = vperm.xlu0 %3010, %v3006
    %v3012 = vpop.permute.xlu0 %3011
    %v3013 = vlaneseq
    %v3014 = vshrl.u32 %v3013, 7
    %v3015 = vadd.s32 %v3014, 8
    %3016 = vset.pattern.permute.xlu0 %v3015
    %3017 = vperm.xlu0 %3016, %v3006
    %v3018 = vpop.permute.xlu0 %3017
    %v3019 = vperm.slane %v838, 7
    %v3020 = vlaneseq
    %v3021 = vshrl.u32 %v3020, 7
    %3023 = vset.pattern.permute.xlu0 %v3021
    %3024 = vperm.xlu0 %3023, %v3019
    %v3025 = vpop.permute.xlu0 %3024
    %v3026 = vlaneseq
    %v3027 = vshrl.u32 %v3026, 7
    %v3028 = vadd.s32 %v3027, 8
    %3029 = vset.pattern.permute.xlu0 %v3028
    %3030 = vperm.xlu0 %3029, %v3019
    %v3031 = vpop.permute.xlu0 %3030
    %v3032 = vperm.slane %v425, 7
    %v3033 = vperm.slane %v428, 7
    %v3034 = vperm.slane %v431, 7
    %v3035 = vperm.slane %v434, 7
    %v3036 = vperm.slane %v437, 7
    %v3037 = vperm.slane %v440, 7
    %v3038 = vperm.slane %v443, 7
    %v3039 = vperm.slane %v446, 7
    %v3040 = vperm.slane %v449, 7
    %v3041 = vperm.slane %v452, 7
    %v3042 = vperm.slane %v455, 7
    %v3043 = vperm.slane %v458, 7
    %v3044 = vperm.slane %v461, 7
    %v3045 = vperm.slane %v464, 7
    %v3046 = vperm.slane %v467, 7
    %v3047 = vperm.slane %v470, 7
    %v3048 = vmul.f32 %v2830, %v3032
    %v3049 = vmul.f32 %v2836, %v3032
    %v3050 = vmul.f32 %v2843, %v3033
    %v3051 = vmul.f32 %v2849, %v3033
    %v3052 = vmul.f32 %v2856, %v3034
    %v3053 = vmul.f32 %v2862, %v3034
    %v3054 = vmul.f32 %v2869, %v3035
    %v3055 = vmul.f32 %v2875, %v3035
    %v3056 = vmul.f32 %v2882, %v3036
    %v3057 = vmul.f32 %v2888, %v3036
    %v3058 = vmul.f32 %v2895, %v3037
    %v3059 = vmul.f32 %v2901, %v3037
    %v3060 = vmul.f32 %v2908, %v3038
    %v3061 = vmul.f32 %v2914, %v3038
    %v3062 = vmul.f32 %v2921, %v3039
    %v3063 = vmul.f32 %v2927, %v3039
    %v3064 = vmul.f32 %v2934, %v3040
    %v3065 = vmul.f32 %v2940, %v3040
    %v3066 = vmul.f32 %v2947, %v3041
    %v3067 = vmul.f32 %v2953, %v3041
    %v3068 = vmul.f32 %v2960, %v3042
    %v3069 = vmul.f32 %v2966, %v3042
    %v3070 = vmul.f32 %v2973, %v3043
    %v3071 = vmul.f32 %v2979, %v3043
    %v3072 = vmul.f32 %v2986, %v3044
    %v3073 = vmul.f32 %v2992, %v3044
    %v3074 = vmul.f32 %v2999, %v3045
    %v3075 = vmul.f32 %v3005, %v3045
    %v3076 = vmul.f32 %v3012, %v3046
    %v3077 = vmul.f32 %v3018, %v3046
    %v3078 = vmul.f32 %v3025, %v3047
    %v3079 = vmul.f32 %v3031, %v3047
    %v3080 = vadd.f32 %v2792, %v3048
    %v3081 = vadd.f32 %v2793, %v3049
    %v3082 = vadd.f32 %v2794, %v3050
    %v3083 = vadd.f32 %v2795, %v3051
    %v3084 = vadd.f32 %v2796, %v3052
    %v3085 = vadd.f32 %v2797, %v3053
    %v3086 = vadd.f32 %v2798, %v3054
    %v3087 = vadd.f32 %v2799, %v3055
    %v3088 = vadd.f32 %v2800, %v3056
    %v3089 = vadd.f32 %v2801, %v3057
    %v3090 = vadd.f32 %v2802, %v3058
    %v3091 = vadd.f32 %v2803, %v3059
    %v3092 = vadd.f32 %v2804, %v3060
    %v3093 = vadd.f32 %v2805, %v3061
    %v3094 = vadd.f32 %v2806, %v3062
    %v3095 = vadd.f32 %v2807, %v3063
    %v3096 = vadd.f32 %v2808, %v3064
    %v3097 = vadd.f32 %v2809, %v3065
    %v3098 = vadd.f32 %v2810, %v3066
    %v3099 = vadd.f32 %v2811, %v3067
    %v3100 = vadd.f32 %v2812, %v3068
    %v3101 = vadd.f32 %v2813, %v3069
    %v3102 = vadd.f32 %v2814, %v3070
    %v3103 = vadd.f32 %v2815, %v3071
    %v3104 = vadd.f32 %v2816, %v3072
    %v3105 = vadd.f32 %v2817, %v3073
    %v3106 = vadd.f32 %v2818, %v3074
    %v3107 = vadd.f32 %v2819, %v3075
    %v3108 = vadd.f32 %v2820, %v3076
    %v3109 = vadd.f32 %v2821, %v3077
    %v3110 = vadd.f32 %v2822, %v3078
    %v3111 = vadd.f32 %v2823, %v3079
    %vm3112 = vcmask 130048
    %v3114 = vsel %vm3112, %v493, 0
    %3116 = vmatpush.msra.mxu0 0.0
    %3117 = vmatpush.msra.mxu0 0.0
    %3118 = vmatpush.msra.mxu0 0.0
    %3119 = vmatpush.msra.mxu0 0.0
    %3120 = vmatpush.msra.mxu0 0.0
    %3121 = vmatpush.msra.mxu0 0.0
    %3122 = vmatpush.msra.mxu0 0.0
    %3123 = vmatpush.msra.mxu0 0.0
    %3124 = vmatpush.msra.mxu0 0.0
    %3125 = vmatpush.msra.mxu0 0.0
    %3126 = vmatpush.msra.mxu0 0.0
    %3127 = vmatpush.msra.mxu0 0.0
    %3128 = vmatpush.msra.mxu0 0.0
    %3129 = vmatpush.msra.mxu0 0.0
    %3130 = vmatpush.msra.mxu0 %v311
    %3131 = vmatpush.msra.mxu0 %v308
    %3132 = vmatmul.f32.gmra.mxu0 %v3114
    %v3133 = vpop.f32.mrf.mxu0
    %v3134 = vadd.f32 0.0, %v3133
    %3135 = vdwg.mxu0
    %v3137 = vsel %vm3112, %v516, 0
    %3139 = vmatpush.msra.mxu0 0.0
    %3140 = vmatpush.msra.mxu0 0.0
    %3141 = vmatpush.msra.mxu0 0.0
    %3142 = vmatpush.msra.mxu0 0.0
    %3143 = vmatpush.msra.mxu0 0.0
    %3144 = vmatpush.msra.mxu0 0.0
    %3145 = vmatpush.msra.mxu0 0.0
    %3146 = vmatpush.msra.mxu0 0.0
    %3147 = vmatpush.msra.mxu0 0.0
    %3148 = vmatpush.msra.mxu0 0.0
    %3149 = vmatpush.msra.mxu0 0.0
    %3150 = vmatpush.msra.mxu0 0.0
    %3151 = vmatpush.msra.mxu0 0.0
    %3152 = vmatpush.msra.mxu0 0.0
    %3153 = vmatpush.msra.mxu0 %v317
    %3154 = vmatpush.msra.mxu0 %v314
    %3155 = vmatmul.f32.gmra.mxu0 %v3137
    %v3156 = vpop.f32.mrf.mxu0
    %v3157 = vadd.f32 0.0, %v3156
    %3158 = vdwg.mxu0
    %v3160 = vsel %vm3112, %v539, 0
    %3162 = vmatpush.msra.mxu0 0.0
    %3163 = vmatpush.msra.mxu0 0.0
    %3164 = vmatpush.msra.mxu0 0.0
    %3165 = vmatpush.msra.mxu0 0.0
    %3166 = vmatpush.msra.mxu0 0.0
    %3167 = vmatpush.msra.mxu0 0.0
    %3168 = vmatpush.msra.mxu0 0.0
    %3169 = vmatpush.msra.mxu0 0.0
    %3170 = vmatpush.msra.mxu0 0.0
    %3171 = vmatpush.msra.mxu0 0.0
    %3172 = vmatpush.msra.mxu0 0.0
    %3173 = vmatpush.msra.mxu0 0.0
    %3174 = vmatpush.msra.mxu0 0.0
    %3175 = vmatpush.msra.mxu0 0.0
    %3176 = vmatpush.msra.mxu0 %v323
    %3177 = vmatpush.msra.mxu0 %v320
    %3178 = vmatmul.f32.gmra.mxu0 %v3160
    %v3179 = vpop.f32.mrf.mxu0
    %v3180 = vadd.f32 0.0, %v3179
    %3181 = vdwg.mxu0
    %v3183 = vsel %vm3112, %v562, 0
    %3185 = vmatpush.msra.mxu0 0.0
    %3186 = vmatpush.msra.mxu0 0.0
    %3187 = vmatpush.msra.mxu0 0.0
    %3188 = vmatpush.msra.mxu0 0.0
    %3189 = vmatpush.msra.mxu0 0.0
    %3190 = vmatpush.msra.mxu0 0.0
    %3191 = vmatpush.msra.mxu0 0.0
    %3192 = vmatpush.msra.mxu0 0.0
    %3193 = vmatpush.msra.mxu0 0.0
    %3194 = vmatpush.msra.mxu0 0.0
    %3195 = vmatpush.msra.mxu0 0.0
    %3196 = vmatpush.msra.mxu0 0.0
    %3197 = vmatpush.msra.mxu0 0.0
    %3198 = vmatpush.msra.mxu0 0.0
    %3199 = vmatpush.msra.mxu0 %v329
    %3200 = vmatpush.msra.mxu0 %v326
    %3201 = vmatmul.f32.gmra.mxu0 %v3183
    %v3202 = vpop.f32.mrf.mxu0
    %v3203 = vadd.f32 0.0, %v3202
    %3204 = vdwg.mxu0
    %v3206 = vsel %vm3112, %v585, 0
    %3208 = vmatpush.msra.mxu0 0.0
    %3209 = vmatpush.msra.mxu0 0.0
    %3210 = vmatpush.msra.mxu0 0.0
    %3211 = vmatpush.msra.mxu0 0.0
    %3212 = vmatpush.msra.mxu0 0.0
    %3213 = vmatpush.msra.mxu0 0.0
    %3214 = vmatpush.msra.mxu0 0.0
    %3215 = vmatpush.msra.mxu0 0.0
    %3216 = vmatpush.msra.mxu0 0.0
    %3217 = vmatpush.msra.mxu0 0.0
    %3218 = vmatpush.msra.mxu0 0.0
    %3219 = vmatpush.msra.mxu0 0.0
    %3220 = vmatpush.msra.mxu0 0.0
    %3221 = vmatpush.msra.mxu0 0.0
    %3222 = vmatpush.msra.mxu0 %v335
    %3223 = vmatpush.msra.mxu0 %v332
    %3224 = vmatmul.f32.gmra.mxu0 %v3206
    %v3225 = vpop.f32.mrf.mxu0
    %v3226 = vadd.f32 0.0, %v3225
    %3227 = vdwg.mxu0
    %v3229 = vsel %vm3112, %v608, 0
    %3231 = vmatpush.msra.mxu0 0.0
    %3232 = vmatpush.msra.mxu0 0.0
    %3233 = vmatpush.msra.mxu0 0.0
    %3234 = vmatpush.msra.mxu0 0.0
    %3235 = vmatpush.msra.mxu0 0.0
    %3236 = vmatpush.msra.mxu0 0.0
    %3237 = vmatpush.msra.mxu0 0.0
    %3238 = vmatpush.msra.mxu0 0.0
    %3239 = vmatpush.msra.mxu0 0.0
    %3240 = vmatpush.msra.mxu0 0.0
    %3241 = vmatpush.msra.mxu0 0.0
    %3242 = vmatpush.msra.mxu0 0.0
    %3243 = vmatpush.msra.mxu0 0.0
    %3244 = vmatpush.msra.mxu0 0.0
    %3245 = vmatpush.msra.mxu0 %v341
    %3246 = vmatpush.msra.mxu0 %v338
    %3247 = vmatmul.f32.gmra.mxu0 %v3229
    %v3248 = vpop.f32.mrf.mxu0
    %v3249 = vadd.f32 0.0, %v3248
    %3250 = vdwg.mxu0
    %v3252 = vsel %vm3112, %v631, 0
    %3254 = vmatpush.msra.mxu0 0.0
    %3255 = vmatpush.msra.mxu0 0.0
    %3256 = vmatpush.msra.mxu0 0.0
    %3257 = vmatpush.msra.mxu0 0.0
    %3258 = vmatpush.msra.mxu0 0.0
    %3259 = vmatpush.msra.mxu0 0.0
    %3260 = vmatpush.msra.mxu0 0.0
    %3261 = vmatpush.msra.mxu0 0.0
    %3262 = vmatpush.msra.mxu0 0.0
    %3263 = vmatpush.msra.mxu0 0.0
    %3264 = vmatpush.msra.mxu0 0.0
    %3265 = vmatpush.msra.mxu0 0.0
    %3266 = vmatpush.msra.mxu0 0.0
    %3267 = vmatpush.msra.mxu0 0.0
    %3268 = vmatpush.msra.mxu0 %v347
    %3269 = vmatpush.msra.mxu0 %v344
    %3270 = vmatmul.f32.gmra.mxu0 %v3252
    %v3271 = vpop.f32.mrf.mxu0
    %v3272 = vadd.f32 0.0, %v3271
    %3273 = vdwg.mxu0
    %v3275 = vsel %vm3112, %v654, 0
    %3277 = vmatpush.msra.mxu0 0.0
    %3278 = vmatpush.msra.mxu0 0.0
    %3279 = vmatpush.msra.mxu0 0.0
    %3280 = vmatpush.msra.mxu0 0.0
    %3281 = vmatpush.msra.mxu0 0.0
    %3282 = vmatpush.msra.mxu0 0.0
    %3283 = vmatpush.msra.mxu0 0.0
    %3284 = vmatpush.msra.mxu0 0.0
    %3285 = vmatpush.msra.mxu0 0.0
    %3286 = vmatpush.msra.mxu0 0.0
    %3287 = vmatpush.msra.mxu0 0.0
    %3288 = vmatpush.msra.mxu0 0.0
    %3289 = vmatpush.msra.mxu0 0.0
    %3290 = vmatpush.msra.mxu0 0.0
    %3291 = vmatpush.msra.mxu0 %v353
    %3292 = vmatpush.msra.mxu0 %v350
    %3293 = vmatmul.f32.gmra.mxu0 %v3275
    %v3294 = vpop.f32.mrf.mxu0
    %v3295 = vadd.f32 0.0, %v3294
    %3296 = vdwg.mxu0
    %v3298 = vsel %vm3112, %v677, 0
    %3300 = vmatpush.msra.mxu0 0.0
    %3301 = vmatpush.msra.mxu0 0.0
    %3302 = vmatpush.msra.mxu0 0.0
    %3303 = vmatpush.msra.mxu0 0.0
    %3304 = vmatpush.msra.mxu0 0.0
    %3305 = vmatpush.msra.mxu0 0.0
    %3306 = vmatpush.msra.mxu0 0.0
    %3307 = vmatpush.msra.mxu0 0.0
    %3308 = vmatpush.msra.mxu0 0.0
    %3309 = vmatpush.msra.mxu0 0.0
    %3310 = vmatpush.msra.mxu0 0.0
    %3311 = vmatpush.msra.mxu0 0.0
    %3312 = vmatpush.msra.mxu0 0.0
    %3313 = vmatpush.msra.mxu0 0.0
    %3314 = vmatpush.msra.mxu0 %v359
    %3315 = vmatpush.msra.mxu0 %v356
    %3316 = vmatmul.f32.gmra.mxu0 %v3298
    %v3317 = vpop.f32.mrf.mxu0
    %v3318 = vadd.f32 0.0, %v3317
    %3319 = vdwg.mxu0
    %v3321 = vsel %vm3112, %v700, 0
    %3323 = vmatpush.msra.mxu0 0.0
    %3324 = vmatpush.msra.mxu0 0.0
    %3325 = vmatpush.msra.mxu0 0.0
    %3326 = vmatpush.msra.mxu0 0.0
    %3327 = vmatpush.msra.mxu0 0.0
    %3328 = vmatpush.msra.mxu0 0.0
    %3329 = vmatpush.msra.mxu0 0.0
    %3330 = vmatpush.msra.mxu0 0.0
    %3331 = vmatpush.msra.mxu0 0.0
    %3332 = vmatpush.msra.mxu0 0.0
    %3333 = vmatpush.msra.mxu0 0.0
    %3334 = vmatpush.msra.mxu0 0.0
    %3335 = vmatpush.msra.mxu0 0.0
    %3336 = vmatpush.msra.mxu0 0.0
    %3337 = vmatpush.msra.mxu0 %v365
    %3338 = vmatpush.msra.mxu0 %v362
    %3339 = vmatmul.f32.gmra.mxu0 %v3321
    %v3340 = vpop.f32.mrf.mxu0
    %v3341 = vadd.f32 0.0, %v3340
    %3342 = vdwg.mxu0
    %v3344 = vsel %vm3112, %v723, 0
    %3346 = vmatpush.msra.mxu0 0.0
    %3347 = vmatpush.msra.mxu0 0.0
    %3348 = vmatpush.msra.mxu0 0.0
    %3349 = vmatpush.msra.mxu0 0.0
    %3350 = vmatpush.msra.mxu0 0.0
    %3351 = vmatpush.msra.mxu0 0.0
    %3352 = vmatpush.msra.mxu0 0.0
    %3353 = vmatpush.msra.mxu0 0.0
    %3354 = vmatpush.msra.mxu0 0.0
    %3355 = vmatpush.msra.mxu0 0.0
    %3356 = vmatpush.msra.mxu0 0.0
    %3357 = vmatpush.msra.mxu0 0.0
    %3358 = vmatpush.msra.mxu0 0.0
    %3359 = vmatpush.msra.mxu0 0.0
    %3360 = vmatpush.msra.mxu0 %v371
    %3361 = vmatpush.msra.mxu0 %v368
    %3362 = vmatmul.f32.gmra.mxu0 %v3344
    %v3363 = vpop.f32.mrf.mxu0
    %v3364 = vadd.f32 0.0, %v3363
    %3365 = vdwg.mxu0
    %v3367 = vsel %vm3112, %v746, 0
    %3369 = vmatpush.msra.mxu0 0.0
    %3370 = vmatpush.msra.mxu0 0.0
    %3371 = vmatpush.msra.mxu0 0.0
    %3372 = vmatpush.msra.mxu0 0.0
    %3373 = vmatpush.msra.mxu0 0.0
    %3374 = vmatpush.msra.mxu0 0.0
    %3375 = vmatpush.msra.mxu0 0.0
    %3376 = vmatpush.msra.mxu0 0.0
    %3377 = vmatpush.msra.mxu0 0.0
    %3378 = vmatpush.msra.mxu0 0.0
    %3379 = vmatpush.msra.mxu0 0.0
    %3380 = vmatpush.msra.mxu0 0.0
    %3381 = vmatpush.msra.mxu0 0.0
    %3382 = vmatpush.msra.mxu0 0.0
    %3383 = vmatpush.msra.mxu0 %v377
    %3384 = vmatpush.msra.mxu0 %v374
    %3385 = vmatmul.f32.gmra.mxu0 %v3367
    %v3386 = vpop.f32.mrf.mxu0
    %v3387 = vadd.f32 0.0, %v3386
    %3388 = vdwg.mxu0
    %v3390 = vsel %vm3112, %v769, 0
    %3392 = vmatpush.msra.mxu0 0.0
    %3393 = vmatpush.msra.mxu0 0.0
    %3394 = vmatpush.msra.mxu0 0.0
    %3395 = vmatpush.msra.mxu0 0.0
    %3396 = vmatpush.msra.mxu0 0.0
    %3397 = vmatpush.msra.mxu0 0.0
    %3398 = vmatpush.msra.mxu0 0.0
    %3399 = vmatpush.msra.mxu0 0.0
    %3400 = vmatpush.msra.mxu0 0.0
    %3401 = vmatpush.msra.mxu0 0.0
    %3402 = vmatpush.msra.mxu0 0.0
    %3403 = vmatpush.msra.mxu0 0.0
    %3404 = vmatpush.msra.mxu0 0.0
    %3405 = vmatpush.msra.mxu0 0.0
    %3406 = vmatpush.msra.mxu0 %v383
    %3407 = vmatpush.msra.mxu0 %v380
    %3408 = vmatmul.f32.gmra.mxu0 %v3390
    %v3409 = vpop.f32.mrf.mxu0
    %v3410 = vadd.f32 0.0, %v3409
    %3411 = vdwg.mxu0
    %v3413 = vsel %vm3112, %v792, 0
    %3415 = vmatpush.msra.mxu0 0.0
    %3416 = vmatpush.msra.mxu0 0.0
    %3417 = vmatpush.msra.mxu0 0.0
    %3418 = vmatpush.msra.mxu0 0.0
    %3419 = vmatpush.msra.mxu0 0.0
    %3420 = vmatpush.msra.mxu0 0.0
    %3421 = vmatpush.msra.mxu0 0.0
    %3422 = vmatpush.msra.mxu0 0.0
    %3423 = vmatpush.msra.mxu0 0.0
    %3424 = vmatpush.msra.mxu0 0.0
    %3425 = vmatpush.msra.mxu0 0.0
    %3426 = vmatpush.msra.mxu0 0.0
    %3427 = vmatpush.msra.mxu0 0.0
    %3428 = vmatpush.msra.mxu0 0.0
    %3429 = vmatpush.msra.mxu0 %v389
    %3430 = vmatpush.msra.mxu0 %v386
    %3431 = vmatmul.f32.gmra.mxu0 %v3413
    %v3432 = vpop.f32.mrf.mxu0
    %v3433 = vadd.f32 0.0, %v3432
    %3434 = vdwg.mxu0
    %v3436 = vsel %vm3112, %v815, 0
    %3438 = vmatpush.msra.mxu0 0.0
    %3439 = vmatpush.msra.mxu0 0.0
    %3440 = vmatpush.msra.mxu0 0.0
    %3441 = vmatpush.msra.mxu0 0.0
    %3442 = vmatpush.msra.mxu0 0.0
    %3443 = vmatpush.msra.mxu0 0.0
    %3444 = vmatpush.msra.mxu0 0.0
    %3445 = vmatpush.msra.mxu0 0.0
    %3446 = vmatpush.msra.mxu0 0.0
    %3447 = vmatpush.msra.mxu0 0.0
    %3448 = vmatpush.msra.mxu0 0.0
    %3449 = vmatpush.msra.mxu0 0.0
    %3450 = vmatpush.msra.mxu0 0.0
    %3451 = vmatpush.msra.mxu0 0.0
    %3452 = vmatpush.msra.mxu0 %v395
    %3453 = vmatpush.msra.mxu0 %v392
    %3454 = vmatmul.f32.gmra.mxu0 %v3436
    %v3455 = vpop.f32.mrf.mxu0
    %v3456 = vadd.f32 0.0, %v3455
    %3457 = vdwg.mxu0
    %v3459 = vsel %vm3112, %v838, 0
    %3461 = vmatpush.msra.mxu0 0.0
    %3462 = vmatpush.msra.mxu0 0.0
    %3463 = vmatpush.msra.mxu0 0.0
    %3464 = vmatpush.msra.mxu0 0.0
    %3465 = vmatpush.msra.mxu0 0.0
    %3466 = vmatpush.msra.mxu0 0.0
    %3467 = vmatpush.msra.mxu0 0.0
    %3468 = vmatpush.msra.mxu0 0.0
    %3469 = vmatpush.msra.mxu0 0.0
    %3470 = vmatpush.msra.mxu0 0.0
    %3471 = vmatpush.msra.mxu0 0.0
    %3472 = vmatpush.msra.mxu0 0.0
    %3473 = vmatpush.msra.mxu0 0.0
    %3474 = vmatpush.msra.mxu0 0.0
    %3475 = vmatpush.msra.mxu0 %v401
    %3476 = vmatpush.msra.mxu0 %v398
    %3477 = vmatmul.f32.gmra.mxu0 %v3459
    %v3478 = vpop.f32.mrf.mxu0
    %v3479 = vadd.f32 0.0, %v3478
    %3480 = vdwg.mxu0
    %v3481 = vadd.f32 %v308, %v3080
    %v3482 = vadd.f32 %v311, %v3081
    %v3483 = vadd.f32 %v314, %v3082
    %v3484 = vadd.f32 %v317, %v3083
    %v3485 = vadd.f32 %v320, %v3084
    %v3486 = vadd.f32 %v323, %v3085
    %v3487 = vadd.f32 %v326, %v3086
    %v3488 = vadd.f32 %v329, %v3087
    %v3489 = vadd.f32 %v332, %v3088
    %v3490 = vadd.f32 %v335, %v3089
    %v3491 = vadd.f32 %v338, %v3090
    %v3492 = vadd.f32 %v341, %v3091
    %v3493 = vadd.f32 %v344, %v3092
    %v3494 = vadd.f32 %v347, %v3093
    %v3495 = vadd.f32 %v350, %v3094
    %v3496 = vadd.f32 %v353, %v3095
    %v3497 = vadd.f32 %v356, %v3096
    %v3498 = vadd.f32 %v359, %v3097
    %v3499 = vadd.f32 %v362, %v3098
    %v3500 = vadd.f32 %v365, %v3099
    %v3501 = vadd.f32 %v368, %v3100
    %v3502 = vadd.f32 %v371, %v3101
    %v3503 = vadd.f32 %v374, %v3102
    %v3504 = vadd.f32 %v377, %v3103
    %v3505 = vadd.f32 %v380, %v3104
    %v3506 = vadd.f32 %v383, %v3105
    %v3507 = vadd.f32 %v386, %v3106
    %v3508 = vadd.f32 %v389, %v3107
    %v3509 = vadd.f32 %v392, %v3108
    %v3510 = vadd.f32 %v395, %v3109
    %v3511 = vadd.f32 %v398, %v3110
    %v3512 = vadd.f32 %v401, %v3111
    %v3513 = vtanh.pop %v3481
    %v3514 = vtanh.pop %v3482
    %v3515 = vtanh.pop %v3483
    %v3516 = vtanh.pop %v3484
    %v3517 = vtanh.pop %v3485
    %v3518 = vtanh.pop %v3486
    %v3519 = vtanh.pop %v3487
    %v3520 = vtanh.pop %v3488
    %v3521 = vtanh.pop %v3489
    %v3522 = vtanh.pop %v3490
    %v3523 = vtanh.pop %v3491
    %v3524 = vtanh.pop %v3492
    %v3525 = vtanh.pop %v3493
    %v3526 = vtanh.pop %v3494
    %v3527 = vtanh.pop %v3495
    %v3528 = vtanh.pop %v3496
    %v3529 = vtanh.pop %v3497
    %v3530 = vtanh.pop %v3498
    %v3531 = vtanh.pop %v3499
    %v3532 = vtanh.pop %v3500
    %v3533 = vtanh.pop %v3501
    %v3534 = vtanh.pop %v3502
    %v3535 = vtanh.pop %v3503
    %v3536 = vtanh.pop %v3504
    %v3537 = vtanh.pop %v3505
    %v3538 = vtanh.pop %v3506
    %v3539 = vtanh.pop %v3507
    %v3540 = vtanh.pop %v3508
    %v3541 = vtanh.pop %v3509
    %v3542 = vtanh.pop %v3510
    %v3543 = vtanh.pop %v3511
    %v3544 = vtanh.pop %v3512
    %v3545 = vadd.f32 %v425, %v3134
    %v3546 = vadd.f32 %v428, %v3157
    %v3547 = vadd.f32 %v431, %v3180
    %v3548 = vadd.f32 %v434, %v3203
    %v3549 = vadd.f32 %v437, %v3226
    %v3550 = vadd.f32 %v440, %v3249
    %v3551 = vadd.f32 %v443, %v3272
    %v3552 = vadd.f32 %v446, %v3295
    %v3553 = vadd.f32 %v449, %v3318
    %v3554 = vadd.f32 %v452, %v3341
    %v3555 = vadd.f32 %v455, %v3364
    %v3556 = vadd.f32 %v458, %v3387
    %v3557 = vadd.f32 %v461, %v3410
    %v3558 = vadd.f32 %v464, %v3433
    %v3559 = vadd.f32 %v467, %v3456
    %v3560 = vadd.f32 %v470, %v3479
    %v3561 = vtanh.pop %v3545
    %v3562 = vtanh.pop %v3546
    %v3563 = vtanh.pop %v3547
    %v3564 = vtanh.pop %v3548
    %v3565 = vtanh.pop %v3549
    %v3566 = vtanh.pop %v3550
    %v3567 = vtanh.pop %v3551
    %v3568 = vtanh.pop %v3552
    %v3569 = vtanh.pop %v3553
    %v3570 = vtanh.pop %v3554
    %v3571 = vtanh.pop %v3555
    %v3572 = vtanh.pop %v3556
    %v3573 = vtanh.pop %v3557
    %v3574 = vtanh.pop %v3558
    %v3575 = vtanh.pop %v3559
    %v3576 = vtanh.pop %v3560
    %v3577 = vld [vmem:[%s5] sm:$0x3]
    %v3578 = vperm.slane %v3577, 0
    %v3579 = vmul.f32 %v3513, %v3578
    %v3580 = vmul.f32 %v3514, %v3578
    %v3581 = vmul.f32 %v3515, %v3578
    %v3582 = vmul.f32 %v3516, %v3578
    %v3583 = vmul.f32 %v3517, %v3578
    %v3584 = vmul.f32 %v3518, %v3578
    %v3585 = vmul.f32 %v3519, %v3578
    %v3586 = vmul.f32 %v3520, %v3578
    %v3587 = vmul.f32 %v3521, %v3578
    %v3588 = vmul.f32 %v3522, %v3578
    %v3589 = vmul.f32 %v3523, %v3578
    %v3590 = vmul.f32 %v3524, %v3578
    %v3591 = vmul.f32 %v3525, %v3578
    %v3592 = vmul.f32 %v3526, %v3578
    %v3593 = vmul.f32 %v3527, %v3578
    %v3594 = vmul.f32 %v3528, %v3578
    %v3595 = vmul.f32 %v3529, %v3578
    %v3596 = vmul.f32 %v3530, %v3578
    %v3597 = vmul.f32 %v3531, %v3578
    %v3598 = vmul.f32 %v3532, %v3578
    %v3599 = vmul.f32 %v3533, %v3578
    %v3600 = vmul.f32 %v3534, %v3578
    %v3601 = vmul.f32 %v3535, %v3578
    %v3602 = vmul.f32 %v3536, %v3578
    %v3603 = vmul.f32 %v3537, %v3578
    %v3604 = vmul.f32 %v3538, %v3578
    %v3605 = vmul.f32 %v3539, %v3578
    %v3606 = vmul.f32 %v3540, %v3578
    %v3607 = vmul.f32 %v3541, %v3578
    %v3608 = vmul.f32 %v3542, %v3578
    %v3609 = vmul.f32 %v3543, %v3578
    %v3610 = vmul.f32 %v3544, %v3578
    %v3611 = vsel %vm76, %v3579, 0.0
    %3612 = vadd.xlane.f32.xlu0 %v3611
    %v3613 = vpop.xlane.xlu0 %3612
    %v3614 = vsel %vm76, %v3580, 0.0
    %3615 = vadd.xlane.f32.xlu0 %v3614
    %v3616 = vpop.xlane.xlu0 %3615
    %v3617 = vsel %vm76, %v3581, 0.0
    %3618 = vadd.xlane.f32.xlu0 %v3617
    %v3619 = vpop.xlane.xlu0 %3618
    %v3620 = vsel %vm76, %v3582, 0.0
    %3621 = vadd.xlane.f32.xlu0 %v3620
    %v3622 = vpop.xlane.xlu0 %3621
    %v3623 = vsel %vm76, %v3583, 0.0
    %3624 = vadd.xlane.f32.xlu0 %v3623
    %v3625 = vpop.xlane.xlu0 %3624
    %v3626 = vsel %vm76, %v3584, 0.0
    %3627 = vadd.xlane.f32.xlu0 %v3626
    %v3628 = vpop.xlane.xlu0 %3627
    %v3629 = vsel %vm76, %v3585, 0.0
    %3630 = vadd.xlane.f32.xlu0 %v3629
    %v3631 = vpop.xlane.xlu0 %3630
    %v3632 = vsel %vm76, %v3586, 0.0
    %3633 = vadd.xlane.f32.xlu0 %v3632
    %v3634 = vpop.xlane.xlu0 %3633
    %v3635 = vsel %vm76, %v3587, 0.0
    %3636 = vadd.xlane.f32.xlu0 %v3635
    %v3637 = vpop.xlane.xlu0 %3636
    %v3638 = vsel %vm76, %v3588, 0.0
    %3639 = vadd.xlane.f32.xlu0 %v3638
    %v3640 = vpop.xlane.xlu0 %3639
    %v3641 = vsel %vm76, %v3589, 0.0
    %3642 = vadd.xlane.f32.xlu0 %v3641
    %v3643 = vpop.xlane.xlu0 %3642
    %v3644 = vsel %vm76, %v3590, 0.0
    %3645 = vadd.xlane.f32.xlu0 %v3644
    %v3646 = vpop.xlane.xlu0 %3645
    %v3647 = vsel %vm76, %v3591, 0.0
    %3648 = vadd.xlane.f32.xlu0 %v3647
    %v3649 = vpop.xlane.xlu0 %3648
    %v3650 = vsel %vm76, %v3592, 0.0
    %3651 = vadd.xlane.f32.xlu0 %v3650
    %v3652 = vpop.xlane.xlu0 %3651
    %v3653 = vsel %vm76, %v3593, 0.0
    %3654 = vadd.xlane.f32.xlu0 %v3653
    %v3655 = vpop.xlane.xlu0 %3654
    %v3656 = vsel %vm76, %v3594, 0.0
    %3657 = vadd.xlane.f32.xlu0 %v3656
    %v3658 = vpop.xlane.xlu0 %3657
    %v3659 = vsel %vm76, %v3595, 0.0
    %3660 = vadd.xlane.f32.xlu0 %v3659
    %v3661 = vpop.xlane.xlu0 %3660
    %v3662 = vsel %vm76, %v3596, 0.0
    %3663 = vadd.xlane.f32.xlu0 %v3662
    %v3664 = vpop.xlane.xlu0 %3663
    %v3665 = vsel %vm76, %v3597, 0.0
    %3666 = vadd.xlane.f32.xlu0 %v3665
    %v3667 = vpop.xlane.xlu0 %3666
    %v3668 = vsel %vm76, %v3598, 0.0
    %3669 = vadd.xlane.f32.xlu0 %v3668
    %v3670 = vpop.xlane.xlu0 %3669
    %v3671 = vsel %vm76, %v3599, 0.0
    %3672 = vadd.xlane.f32.xlu0 %v3671
    %v3673 = vpop.xlane.xlu0 %3672
    %v3674 = vsel %vm76, %v3600, 0.0
    %3675 = vadd.xlane.f32.xlu0 %v3674
    %v3676 = vpop.xlane.xlu0 %3675
    %v3677 = vsel %vm76, %v3601, 0.0
    %3678 = vadd.xlane.f32.xlu0 %v3677
    %v3679 = vpop.xlane.xlu0 %3678
    %v3680 = vsel %vm76, %v3602, 0.0
    %3681 = vadd.xlane.f32.xlu0 %v3680
    %v3682 = vpop.xlane.xlu0 %3681
    %v3683 = vsel %vm76, %v3603, 0.0
    %3684 = vadd.xlane.f32.xlu0 %v3683
    %v3685 = vpop.xlane.xlu0 %3684
    %v3686 = vsel %vm76, %v3604, 0.0
    %3687 = vadd.xlane.f32.xlu0 %v3686
    %v3688 = vpop.xlane.xlu0 %3687
    %v3689 = vsel %vm76, %v3605, 0.0
    %3690 = vadd.xlane.f32.xlu0 %v3689
    %v3691 = vpop.xlane.xlu0 %3690
    %v3692 = vsel %vm76, %v3606, 0.0
    %3693 = vadd.xlane.f32.xlu0 %v3692
    %v3694 = vpop.xlane.xlu0 %3693
    %v3695 = vsel %vm76, %v3607, 0.0
    %3696 = vadd.xlane.f32.xlu0 %v3695
    %v3697 = vpop.xlane.xlu0 %3696
    %v3698 = vsel %vm76, %v3608, 0.0
    %3699 = vadd.xlane.f32.xlu0 %v3698
    %v3700 = vpop.xlane.xlu0 %3699
    %v3701 = vsel %vm76, %v3609, 0.0
    %3702 = vadd.xlane.f32.xlu0 %v3701
    %v3703 = vpop.xlane.xlu0 %3702
    %v3704 = vsel %vm76, %v3610, 0.0
    %3705 = vadd.xlane.f32.xlu0 %v3704
    %v3706 = vpop.xlane.xlu0 %3705
    %v3707 = vperm.slane %v3577, 1
    %v3708 = vmul.f32 %v3561, %v3707
    %v3709 = vmul.f32 %v3562, %v3707
    %v3710 = vmul.f32 %v3563, %v3707
    %v3711 = vmul.f32 %v3564, %v3707
    %v3712 = vmul.f32 %v3565, %v3707
    %v3713 = vmul.f32 %v3566, %v3707
    %v3714 = vmul.f32 %v3567, %v3707
    %v3715 = vmul.f32 %v3568, %v3707
    %v3716 = vmul.f32 %v3569, %v3707
    %v3717 = vmul.f32 %v3570, %v3707
    %v3718 = vmul.f32 %v3571, %v3707
    %v3719 = vmul.f32 %v3572, %v3707
    %v3720 = vmul.f32 %v3573, %v3707
    %v3721 = vmul.f32 %v3574, %v3707
    %v3722 = vmul.f32 %v3575, %v3707
    %v3723 = vmul.f32 %v3576, %v3707
    %v3724 = vsel %vm76, %v3708, 0.0
    %3725 = vadd.xlane.f32.xlu0 %v3724
    %v3726 = vpop.xlane.xlu0 %3725
    %v3727 = vsel %vm76, %v3709, 0.0
    %3728 = vadd.xlane.f32.xlu0 %v3727
    %v3729 = vpop.xlane.xlu0 %3728
    %v3730 = vsel %vm76, %v3710, 0.0
    %3731 = vadd.xlane.f32.xlu0 %v3730
    %v3732 = vpop.xlane.xlu0 %3731
    %v3733 = vsel %vm76, %v3711, 0.0
    %3734 = vadd.xlane.f32.xlu0 %v3733
    %v3735 = vpop.xlane.xlu0 %3734
    %v3736 = vsel %vm76, %v3712, 0.0
    %3737 = vadd.xlane.f32.xlu0 %v3736
    %v3738 = vpop.xlane.xlu0 %3737
    %v3739 = vsel %vm76, %v3713, 0.0
    %3740 = vadd.xlane.f32.xlu0 %v3739
    %v3741 = vpop.xlane.xlu0 %3740
    %v3742 = vsel %vm76, %v3714, 0.0
    %3743 = vadd.xlane.f32.xlu0 %v3742
    %v3744 = vpop.xlane.xlu0 %3743
    %v3745 = vsel %vm76, %v3715, 0.0
    %3746 = vadd.xlane.f32.xlu0 %v3745
    %v3747 = vpop.xlane.xlu0 %3746
    %v3748 = vsel %vm76, %v3716, 0.0
    %3749 = vadd.xlane.f32.xlu0 %v3748
    %v3750 = vpop.xlane.xlu0 %3749
    %v3751 = vsel %vm76, %v3717, 0.0
    %3752 = vadd.xlane.f32.xlu0 %v3751
    %v3753 = vpop.xlane.xlu0 %3752
    %v3754 = vsel %vm76, %v3718, 0.0
    %3755 = vadd.xlane.f32.xlu0 %v3754
    %v3756 = vpop.xlane.xlu0 %3755
    %v3757 = vsel %vm76, %v3719, 0.0
    %3758 = vadd.xlane.f32.xlu0 %v3757
    %v3759 = vpop.xlane.xlu0 %3758
    %v3760 = vsel %vm76, %v3720, 0.0
    %3761 = vadd.xlane.f32.xlu0 %v3760
    %v3762 = vpop.xlane.xlu0 %3761
    %v3763 = vsel %vm76, %v3721, 0.0
    %3764 = vadd.xlane.f32.xlu0 %v3763
    %v3765 = vpop.xlane.xlu0 %3764
    %v3766 = vsel %vm76, %v3722, 0.0
    %3767 = vadd.xlane.f32.xlu0 %v3766
    %v3768 = vpop.xlane.xlu0 %3767
    %v3769 = vsel %vm76, %v3723, 0.0
    %3770 = vadd.xlane.f32.xlu0 %v3769
    %v3771 = vpop.xlane.xlu0 %3770
    %v3804 = vlaneseq
    %v3805 = vand.u32 %v3804, 127
    %v3806 = vperm.slane %v3613, %v3805
    %v3807 = vadd.s32 %v3805, 4294967288
    %v3808 = vperm.slane %v3616, %v3807
    %vm3809 = vcmask 130112
    %v3810 = vsel %vm3809, %v3808, %v3806
    %v3811 = vperm.slane %v3619, %v3805
    %v3812 = vperm.slane %v3622, %v3807
    %v3813 = vsel %vm3809, %v3812, %v3811
    %v3814 = vperm.slane %v3625, %v3805
    %v3815 = vperm.slane %v3628, %v3807
    %v3816 = vsel %vm3809, %v3815, %v3814
    %v3817 = vperm.slane %v3631, %v3805
    %v3818 = vperm.slane %v3634, %v3807
    %v3819 = vsel %vm3809, %v3818, %v3817
    %v3820 = vperm.slane %v3637, %v3805
    %v3821 = vperm.slane %v3640, %v3807
    %v3822 = vsel %vm3809, %v3821, %v3820
    %v3823 = vperm.slane %v3643, %v3805
    %v3824 = vperm.slane %v3646, %v3807
    %v3825 = vsel %vm3809, %v3824, %v3823
    %v3826 = vperm.slane %v3649, %v3805
    %v3827 = vperm.slane %v3652, %v3807
    %v3828 = vsel %vm3809, %v3827, %v3826
    %v3829 = vperm.slane %v3655, %v3805
    %v3830 = vperm.slane %v3658, %v3807
    %v3831 = vsel %vm3809, %v3830, %v3829
    %v3832 = vperm.slane %v3661, %v3805
    %v3833 = vperm.slane %v3664, %v3807
    %v3834 = vsel %vm3809, %v3833, %v3832
    %v3835 = vperm.slane %v3667, %v3805
    %v3836 = vperm.slane %v3670, %v3807
    %v3837 = vsel %vm3809, %v3836, %v3835
    %v3838 = vperm.slane %v3673, %v3805
    %v3839 = vperm.slane %v3676, %v3807
    %v3840 = vsel %vm3809, %v3839, %v3838
    %v3841 = vperm.slane %v3679, %v3805
    %v3842 = vperm.slane %v3682, %v3807
    %v3843 = vsel %vm3809, %v3842, %v3841
    %v3844 = vperm.slane %v3685, %v3805
    %v3845 = vperm.slane %v3688, %v3807
    %v3846 = vsel %vm3809, %v3845, %v3844
    %v3847 = vperm.slane %v3691, %v3805
    %v3848 = vperm.slane %v3694, %v3807
    %v3849 = vsel %vm3809, %v3848, %v3847
    %v3850 = vperm.slane %v3697, %v3805
    %v3851 = vperm.slane %v3700, %v3807
    %v3852 = vsel %vm3809, %v3851, %v3850
    %v3853 = vperm.slane %v3703, %v3805
    %v3854 = vperm.slane %v3706, %v3807
    %v3855 = vsel %vm3809, %v3854, %v3853
    %vm3856 = vcmask 1041409
    %v3857 = vsel %vm3856, %v3813, %v3810
    %vm3858 = vcmask 1042434
    %v3859 = vsel %vm3858, %v3816, %v3857
    %vm3860 = vcmask 1043459
    %v3861 = vsel %vm3860, %v3819, %v3859
    %vm3862 = vcmask 1044484
    %v3863 = vsel %vm3862, %v3822, %v3861
    %vm3864 = vcmask 1045509
    %v3865 = vsel %vm3864, %v3825, %v3863
    %vm3866 = vcmask 1046534
    %v3867 = vsel %vm3866, %v3828, %v3865
    %vm3868 = vcmask 1047559
    %v3869 = vsel %vm3868, %v3831, %v3867
    %v3870 = vsel %vm3856, %v3837, %v3834
    %v3871 = vsel %vm3858, %v3840, %v3870
    %v3872 = vsel %vm3860, %v3843, %v3871
    %v3873 = vsel %vm3862, %v3846, %v3872
    %v3874 = vsel %vm3864, %v3849, %v3873
    %v3875 = vsel %vm3866, %v3852, %v3874
    %v3876 = vsel %vm3868, %v3855, %v3875
    %v3879 = vsel %vm3112, %v3869, -inf
    %3880 = vmax.xlane.f32.xlu0 %v3879
    %v3881 = vpop.xlane.xlu0 %3880
    %v3882 = vsel %vm3112, %v3876, -inf
    %3883 = vmax.xlane.f32.xlu0 %v3882
    %v3884 = vpop.xlane.xlu0 %3883
    %v3887 = vperm.slane %v3881, 0
    %v3888 = vperm.slane %v3881, 1
    %v3889 = vperm.slane %v3881, 2
    %v3890 = vperm.slane %v3881, 3
    %v3891 = vperm.slane %v3881, 4
    %v3892 = vperm.slane %v3881, 5
    %v3893 = vperm.slane %v3881, 6
    %v3894 = vperm.slane %v3881, 7
    %v3895 = vperm.slane %v3884, 0
    %v3896 = vperm.slane %v3884, 1
    %v3897 = vperm.slane %v3884, 2
    %v3898 = vperm.slane %v3884, 3
    %v3899 = vperm.slane %v3884, 4
    %v3900 = vperm.slane %v3884, 5
    %v3901 = vperm.slane %v3884, 6
    %v3902 = vperm.slane %v3884, 7
    %v3919 = vsub.f32 %v3613, %v3887
    %v3920 = vsub.f32 %v3616, %v3887
    %v3921 = vsub.f32 %v3619, %v3888
    %v3922 = vsub.f32 %v3622, %v3888
    %v3923 = vsub.f32 %v3625, %v3889
    %v3924 = vsub.f32 %v3628, %v3889
    %v3925 = vsub.f32 %v3631, %v3890
    %v3926 = vsub.f32 %v3634, %v3890
    %v3927 = vsub.f32 %v3637, %v3891
    %v3928 = vsub.f32 %v3640, %v3891
    %v3929 = vsub.f32 %v3643, %v3892
    %v3930 = vsub.f32 %v3646, %v3892
    %v3931 = vsub.f32 %v3649, %v3893
    %v3932 = vsub.f32 %v3652, %v3893
    %v3933 = vsub.f32 %v3655, %v3894
    %v3934 = vsub.f32 %v3658, %v3894
    %v3935 = vsub.f32 %v3661, %v3895
    %v3936 = vsub.f32 %v3664, %v3895
    %v3937 = vsub.f32 %v3667, %v3896
    %v3938 = vsub.f32 %v3670, %v3896
    %v3939 = vsub.f32 %v3673, %v3897
    %v3940 = vsub.f32 %v3676, %v3897
    %v3941 = vsub.f32 %v3679, %v3898
    %v3942 = vsub.f32 %v3682, %v3898
    %v3943 = vsub.f32 %v3685, %v3899
    %v3944 = vsub.f32 %v3688, %v3899
    %v3945 = vsub.f32 %v3691, %v3900
    %v3946 = vsub.f32 %v3694, %v3900
    %v3947 = vsub.f32 %v3697, %v3901
    %v3948 = vsub.f32 %v3700, %v3901
    %v3949 = vsub.f32 %v3703, %v3902
    %v3950 = vsub.f32 %v3706, %v3902
    %v3951 = vmul.f32 %v3919, 1.442695
    %v3952 = vpow.pop %v3951
    %v3953 = vmul.f32 %v3920, 1.442695
    %v3954 = vpow.pop %v3953
    %v3955 = vmul.f32 %v3921, 1.442695
    %v3956 = vpow.pop %v3955
    %v3957 = vmul.f32 %v3922, 1.442695
    %v3958 = vpow.pop %v3957
    %v3959 = vmul.f32 %v3923, 1.442695
    %v3960 = vpow.pop %v3959
    %v3961 = vmul.f32 %v3924, 1.442695
    %v3962 = vpow.pop %v3961
    %v3963 = vmul.f32 %v3925, 1.442695
    %v3964 = vpow.pop %v3963
    %v3965 = vmul.f32 %v3926, 1.442695
    %v3966 = vpow.pop %v3965
    %v3967 = vmul.f32 %v3927, 1.442695
    %v3968 = vpow.pop %v3967
    %v3969 = vmul.f32 %v3928, 1.442695
    %v3970 = vpow.pop %v3969
    %v3971 = vmul.f32 %v3929, 1.442695
    %v3972 = vpow.pop %v3971
    %v3973 = vmul.f32 %v3930, 1.442695
    %v3974 = vpow.pop %v3973
    %v3975 = vmul.f32 %v3931, 1.442695
    %v3976 = vpow.pop %v3975
    %v3977 = vmul.f32 %v3932, 1.442695
    %v3978 = vpow.pop %v3977
    %v3979 = vmul.f32 %v3933, 1.442695
    %v3980 = vpow.pop %v3979
    %v3981 = vmul.f32 %v3934, 1.442695
    %v3982 = vpow.pop %v3981
    %v3983 = vmul.f32 %v3935, 1.442695
    %v3984 = vpow.pop %v3983
    %v3985 = vmul.f32 %v3936, 1.442695
    %v3986 = vpow.pop %v3985
    %v3987 = vmul.f32 %v3937, 1.442695
    %v3988 = vpow.pop %v3987
    %v3989 = vmul.f32 %v3938, 1.442695
    %v3990 = vpow.pop %v3989
    %v3991 = vmul.f32 %v3939, 1.442695
    %v3992 = vpow.pop %v3991
    %v3993 = vmul.f32 %v3940, 1.442695
    %v3994 = vpow.pop %v3993
    %v3995 = vmul.f32 %v3941, 1.442695
    %v3996 = vpow.pop %v3995
    %v3997 = vmul.f32 %v3942, 1.442695
    %v3998 = vpow.pop %v3997
    %v3999 = vmul.f32 %v3943, 1.442695
    %v4000 = vpow.pop %v3999
    %v4001 = vmul.f32 %v3944, 1.442695
    %v4002 = vpow.pop %v4001
    %v4003 = vmul.f32 %v3945, 1.442695
    %v4004 = vpow.pop %v4003
    %v4005 = vmul.f32 %v3946, 1.442695
    %v4006 = vpow.pop %v4005
    %v4007 = vmul.f32 %v3947, 1.442695
    %v4008 = vpow.pop %v4007
    %v4009 = vmul.f32 %v3948, 1.442695
    %v4010 = vpow.pop %v4009
    %v4011 = vmul.f32 %v3949, 1.442695
    %v4012 = vpow.pop %v4011
    %v4013 = vmul.f32 %v3950, 1.442695
    %v4014 = vpow.pop %v4013
    %4047 = vset.pattern.permute.xlu0 0
    %4048 = vperm.xlu0 %4047, %v3952
    %v4049 = vpop.permute.xlu0 %4048
    %4050 = vset.pattern.permute.xlu0 0
    %4051 = vperm.xlu0 %4050, %v3954
    %v4052 = vpop.permute.xlu0 %4051
    %4053 = vset.pattern.permute.xlu0 0
    %4054 = vperm.xlu0 %4053, %v3956
    %v4055 = vpop.permute.xlu0 %4054
    %4056 = vset.pattern.permute.xlu0 0
    %4057 = vperm.xlu0 %4056, %v3958
    %v4058 = vpop.permute.xlu0 %4057
    %4059 = vset.pattern.permute.xlu0 0
    %4060 = vperm.xlu0 %4059, %v3960
    %v4061 = vpop.permute.xlu0 %4060
    %4062 = vset.pattern.permute.xlu0 0
    %4063 = vperm.xlu0 %4062, %v3962
    %v4064 = vpop.permute.xlu0 %4063
    %4065 = vset.pattern.permute.xlu0 0
    %4066 = vperm.xlu0 %4065, %v3964
    %v4067 = vpop.permute.xlu0 %4066
    %4068 = vset.pattern.permute.xlu0 0
    %4069 = vperm.xlu0 %4068, %v3966
    %v4070 = vpop.permute.xlu0 %4069
    %4071 = vset.pattern.permute.xlu0 0
    %4072 = vperm.xlu0 %4071, %v3968
    %v4073 = vpop.permute.xlu0 %4072
    %4074 = vset.pattern.permute.xlu0 0
    %4075 = vperm.xlu0 %4074, %v3970
    %v4076 = vpop.permute.xlu0 %4075
    %4077 = vset.pattern.permute.xlu0 0
    %4078 = vperm.xlu0 %4077, %v3972
    %v4079 = vpop.permute.xlu0 %4078
    %4080 = vset.pattern.permute.xlu0 0
    %4081 = vperm.xlu0 %4080, %v3974
    %v4082 = vpop.permute.xlu0 %4081
    %4083 = vset.pattern.permute.xlu0 0
    %4084 = vperm.xlu0 %4083, %v3976
    %v4085 = vpop.permute.xlu0 %4084
    %4086 = vset.pattern.permute.xlu0 0
    %4087 = vperm.xlu0 %4086, %v3978
    %v4088 = vpop.permute.xlu0 %4087
    %4089 = vset.pattern.permute.xlu0 0
    %4090 = vperm.xlu0 %4089, %v3980
    %v4091 = vpop.permute.xlu0 %4090
    %4092 = vset.pattern.permute.xlu0 0
    %4093 = vperm.xlu0 %4092, %v3982
    %v4094 = vpop.permute.xlu0 %4093
    %4095 = vset.pattern.permute.xlu0 0
    %4096 = vperm.xlu0 %4095, %v3984
    %v4097 = vpop.permute.xlu0 %4096
    %4098 = vset.pattern.permute.xlu0 0
    %4099 = vperm.xlu0 %4098, %v3986
    %v4100 = vpop.permute.xlu0 %4099
    %4101 = vset.pattern.permute.xlu0 0
    %4102 = vperm.xlu0 %4101, %v3988
    %v4103 = vpop.permute.xlu0 %4102
    %4104 = vset.pattern.permute.xlu0 0
    %4105 = vperm.xlu0 %4104, %v3990
    %v4106 = vpop.permute.xlu0 %4105
    %4107 = vset.pattern.permute.xlu0 0
    %4108 = vperm.xlu0 %4107, %v3992
    %v4109 = vpop.permute.xlu0 %4108
    %4110 = vset.pattern.permute.xlu0 0
    %4111 = vperm.xlu0 %4110, %v3994
    %v4112 = vpop.permute.xlu0 %4111
    %4113 = vset.pattern.permute.xlu0 0
    %4114 = vperm.xlu0 %4113, %v3996
    %v4115 = vpop.permute.xlu0 %4114
    %4116 = vset.pattern.permute.xlu0 0
    %4117 = vperm.xlu0 %4116, %v3998
    %v4118 = vpop.permute.xlu0 %4117
    %4119 = vset.pattern.permute.xlu0 0
    %4120 = vperm.xlu0 %4119, %v4000
    %v4121 = vpop.permute.xlu0 %4120
    %4122 = vset.pattern.permute.xlu0 0
    %4123 = vperm.xlu0 %4122, %v4002
    %v4124 = vpop.permute.xlu0 %4123
    %4125 = vset.pattern.permute.xlu0 0
    %4126 = vperm.xlu0 %4125, %v4004
    %v4127 = vpop.permute.xlu0 %4126
    %4128 = vset.pattern.permute.xlu0 0
    %4129 = vperm.xlu0 %4128, %v4006
    %v4130 = vpop.permute.xlu0 %4129
    %4131 = vset.pattern.permute.xlu0 0
    %4132 = vperm.xlu0 %4131, %v4008
    %v4133 = vpop.permute.xlu0 %4132
    %4134 = vset.pattern.permute.xlu0 0
    %4135 = vperm.xlu0 %4134, %v4010
    %v4136 = vpop.permute.xlu0 %4135
    %4137 = vset.pattern.permute.xlu0 0
    %4138 = vperm.xlu0 %4137, %v4012
    %v4139 = vpop.permute.xlu0 %4138
    %4140 = vset.pattern.permute.xlu0 0
    %4141 = vperm.xlu0 %4140, %v4014
    %v4142 = vpop.permute.xlu0 %4141
    %v4143 = vperm.slane %v4049, %v3805
    %v4144 = vperm.slane %v4052, %v3807
    %v4145 = vsel %vm3809, %v4144, %v4143
    %v4146 = vperm.slane %v4055, %v3805
    %v4147 = vperm.slane %v4058, %v3807
    %v4148 = vsel %vm3809, %v4147, %v4146
    %v4149 = vperm.slane %v4061, %v3805
    %v4150 = vperm.slane %v4064, %v3807
    %v4151 = vsel %vm3809, %v4150, %v4149
    %v4152 = vperm.slane %v4067, %v3805
    %v4153 = vperm.slane %v4070, %v3807
    %v4154 = vsel %vm3809, %v4153, %v4152
    %v4155 = vperm.slane %v4073, %v3805
    %v4156 = vperm.slane %v4076, %v3807
    %v4157 = vsel %vm3809, %v4156, %v4155
    %v4158 = vperm.slane %v4079, %v3805
    %v4159 = vperm.slane %v4082, %v3807
    %v4160 = vsel %vm3809, %v4159, %v4158
    %v4161 = vperm.slane %v4085, %v3805
    %v4162 = vperm.slane %v4088, %v3807
    %v4163 = vsel %vm3809, %v4162, %v4161
    %v4164 = vperm.slane %v4091, %v3805
    %v4165 = vperm.slane %v4094, %v3807
    %v4166 = vsel %vm3809, %v4165, %v4164
    %v4167 = vperm.slane %v4097, %v3805
    %v4168 = vperm.slane %v4100, %v3807
    %v4169 = vsel %vm3809, %v4168, %v4167
    %v4170 = vperm.slane %v4103, %v3805
    %v4171 = vperm.slane %v4106, %v3807
    %v4172 = vsel %vm3809, %v4171, %v4170
    %v4173 = vperm.slane %v4109, %v3805
    %v4174 = vperm.slane %v4112, %v3807
    %v4175 = vsel %vm3809, %v4174, %v4173
    %v4176 = vperm.slane %v4115, %v3805
    %v4177 = vperm.slane %v4118, %v3807
    %v4178 = vsel %vm3809, %v4177, %v4176
    %v4179 = vperm.slane %v4121, %v3805
    %v4180 = vperm.slane %v4124, %v3807
    %v4181 = vsel %vm3809, %v4180, %v4179
    %v4182 = vperm.slane %v4127, %v3805
    %v4183 = vperm.slane %v4130, %v3807
    %v4184 = vsel %vm3809, %v4183, %v4182
    %v4185 = vperm.slane %v4133, %v3805
    %v4186 = vperm.slane %v4136, %v3807
    %v4187 = vsel %vm3809, %v4186, %v4185
    %v4188 = vperm.slane %v4139, %v3805
    %v4189 = vperm.slane %v4142, %v3807
    %v4190 = vsel %vm3809, %v4189, %v4188
    %v4191 = vsel %vm3856, %v4148, %v4145
    %v4192 = vsel %vm3858, %v4151, %v4191
    %v4193 = vsel %vm3860, %v4154, %v4192
    %v4194 = vsel %vm3862, %v4157, %v4193
    %v4195 = vsel %vm3864, %v4160, %v4194
    %v4196 = vsel %vm3866, %v4163, %v4195
    %v4197 = vsel %vm3868, %v4166, %v4196
    %v4198 = vsel %vm3856, %v4172, %v4169
    %v4199 = vsel %vm3858, %v4175, %v4198
    %v4200 = vsel %vm3860, %v4178, %v4199
    %v4201 = vsel %vm3862, %v4181, %v4200
    %v4202 = vsel %vm3864, %v4184, %v4201
    %v4203 = vsel %vm3866, %v4187, %v4202
    %v4204 = vsel %vm3868, %v4190, %v4203
    %v4207 = vsel %vm3112, %v4197, 0.0
    %4208 = vadd.xlane.f32.xlu0 %v4207
    %v4209 = vpop.xlane.xlu0 %4208
    %v4210 = vsel %vm3112, %v4204, 0.0
    %4211 = vadd.xlane.f32.xlu0 %v4210
    %v4212 = vpop.xlane.xlu0 %4211
    %v4213 = vrcp.pop %v4209
    %v4214 = vmul.f32 %v4209, %v4213
    %v4215 = vsub.f32 1.0, %v4214
    %v4216 = vmul.f32 %v4213, %v4215
    %v4217 = vadd.f32 %v4213, %v4216
    %vm4218 = vweird.f32 %v4209
    %vm4219 = vweird.f32 %v4213
    %vm4220 = vmor %vm4218, %vm4219
    %v4221 = vsel %vm4220, %v4213, %v4217
    %v4222 = vand.u32 2147483647, %v4209
    %vm4223 = vcmp.eq.f32.partialorder %v4222, 8.507059e+37
    %v4224 = vand.u32 %v4209, 2147483648
    %v4225 = vor.u32 1.1754944e-38, %v4224
    %v4226 = vsel %vm4223, %v4225, %v4221
    %v4227 = vrcp.pop %v4212
    %v4228 = vmul.f32 %v4212, %v4227
    %v4229 = vsub.f32 1.0, %v4228
    %v4230 = vmul.f32 %v4227, %v4229
    %v4231 = vadd.f32 %v4227, %v4230
    %vm4232 = vweird.f32 %v4212
    %vm4233 = vweird.f32 %v4227
    %vm4234 = vmor %vm4232, %vm4233
    %v4235 = vsel %vm4234, %v4227, %v4231
    %v4236 = vand.u32 2147483647, %v4212
    %vm4237 = vcmp.eq.f32.partialorder %v4236, 8.507059e+37
    %v4238 = vand.u32 %v4212, 2147483648
    %v4239 = vor.u32 1.1754944e-38, %v4238
    %v4240 = vsel %vm4237, %v4239, %v4235
    %v4243 = vperm.slane %v4226, 0
    %v4244 = vperm.slane %v4226, 1
    %v4245 = vperm.slane %v4226, 2
    %v4246 = vperm.slane %v4226, 3
    %v4247 = vperm.slane %v4226, 4
    %v4248 = vperm.slane %v4226, 5
    %v4249 = vperm.slane %v4226, 6
    %v4250 = vperm.slane %v4226, 7
    %v4251 = vperm.slane %v4240, 0
    %v4252 = vperm.slane %v4240, 1
    %v4253 = vperm.slane %v4240, 2
    %v4254 = vperm.slane %v4240, 3
    %v4255 = vperm.slane %v4240, 4
    %v4256 = vperm.slane %v4240, 5
    %v4257 = vperm.slane %v4240, 6
    %v4258 = vperm.slane %v4240, 7
    %v4275 = vmul.f32 %v3952, %v4243
    %v4276 = vmul.f32 %v3954, %v4243
    %v4277 = vmul.f32 %v3956, %v4244
    %v4278 = vmul.f32 %v3958, %v4244
    %v4279 = vmul.f32 %v3960, %v4245
    %v4280 = vmul.f32 %v3962, %v4245
    %v4281 = vmul.f32 %v3964, %v4246
    %v4282 = vmul.f32 %v3966, %v4246
    %v4283 = vmul.f32 %v3968, %v4247
    %v4284 = vmul.f32 %v3970, %v4247
    %v4285 = vmul.f32 %v3972, %v4248
    %v4286 = vmul.f32 %v3974, %v4248
    %v4287 = vmul.f32 %v3976, %v4249
    %v4288 = vmul.f32 %v3978, %v4249
    %v4289 = vmul.f32 %v3980, %v4250
    %v4290 = vmul.f32 %v3982, %v4250
    %v4291 = vmul.f32 %v3984, %v4251
    %v4292 = vmul.f32 %v3986, %v4251
    %v4293 = vmul.f32 %v3988, %v4252
    %v4294 = vmul.f32 %v3990, %v4252
    %v4295 = vmul.f32 %v3992, %v4253
    %v4296 = vmul.f32 %v3994, %v4253
    %v4297 = vmul.f32 %v3996, %v4254
    %v4298 = vmul.f32 %v3998, %v4254
    %v4299 = vmul.f32 %v4000, %v4255
    %v4300 = vmul.f32 %v4002, %v4255
    %v4301 = vmul.f32 %v4004, %v4256
    %v4302 = vmul.f32 %v4006, %v4256
    %v4303 = vmul.f32 %v4008, %v4257
    %v4304 = vmul.f32 %v4010, %v4257
    %v4305 = vmul.f32 %v4012, %v4258
    %v4306 = vmul.f32 %v4014, %v4258
    %v4323 = vperm.slane %v3726, %v3805
    %v4324 = vperm.slane %v3729, %v3805
    %v4325 = vperm.slane %v3732, %v3805
    %v4326 = vperm.slane %v3735, %v3805
    %v4327 = vperm.slane %v3738, %v3805
    %v4328 = vperm.slane %v3741, %v3805
    %v4329 = vperm.slane %v3744, %v3805
    %v4330 = vperm.slane %v3747, %v3805
    %v4331 = vperm.slane %v3750, %v3805
    %v4332 = vperm.slane %v3753, %v3805
    %v4333 = vperm.slane %v3756, %v3805
    %v4334 = vperm.slane %v3759, %v3805
    %v4335 = vperm.slane %v3762, %v3805
    %v4336 = vperm.slane %v3765, %v3805
    %v4337 = vperm.slane %v3768, %v3805
    %v4338 = vperm.slane %v3771, %v3805
    %v4339 = vsel %vm3856, %v4324, %v4323
    %v4340 = vsel %vm3858, %v4325, %v4339
    %v4341 = vsel %vm3860, %v4326, %v4340
    %v4342 = vsel %vm3862, %v4327, %v4341
    %v4343 = vsel %vm3864, %v4328, %v4342
    %v4344 = vsel %vm3866, %v4329, %v4343
    %v4345 = vsel %vm3868, %v4330, %v4344
    %v4346 = vsel %vm3856, %v4332, %v4331
    %v4347 = vsel %vm3858, %v4333, %v4346
    %v4348 = vsel %vm3860, %v4334, %v4347
    %v4349 = vsel %vm3862, %v4335, %v4348
    %v4350 = vsel %vm3864, %v4336, %v4349
    %v4351 = vsel %vm3866, %v4337, %v4350
    %v4352 = vsel %vm3868, %v4338, %v4351
    %vm4355 = vcmask 64512
    %v4356 = vsel %vm4355, %v4345, -inf
    %4357 = vmax.xlane.f32.xlu0 %v4356
    %v4358 = vpop.xlane.xlu0 %4357
    %v4359 = vsel %vm4355, %v4352, -inf
    %4360 = vmax.xlane.f32.xlu0 %v4359
    %v4361 = vpop.xlane.xlu0 %4360
    %v4364 = vperm.slane %v4358, 0
    %v4365 = vperm.slane %v4358, 1
    %v4366 = vperm.slane %v4358, 2
    %v4367 = vperm.slane %v4358, 3
    %v4368 = vperm.slane %v4358, 4
    %v4369 = vperm.slane %v4358, 5
    %v4370 = vperm.slane %v4358, 6
    %v4371 = vperm.slane %v4358, 7
    %v4372 = vperm.slane %v4361, 0
    %v4373 = vperm.slane %v4361, 1
    %v4374 = vperm.slane %v4361, 2
    %v4375 = vperm.slane %v4361, 3
    %v4376 = vperm.slane %v4361, 4
    %v4377 = vperm.slane %v4361, 5
    %v4378 = vperm.slane %v4361, 6
    %v4379 = vperm.slane %v4361, 7
    %v4396 = vsub.f32 %v3726, %v4364
    %v4397 = vsub.f32 %v3729, %v4365
    %v4398 = vsub.f32 %v3732, %v4366
    %v4399 = vsub.f32 %v3735, %v4367
    %v4400 = vsub.f32 %v3738, %v4368
    %v4401 = vsub.f32 %v3741, %v4369
    %v4402 = vsub.f32 %v3744, %v4370
    %v4403 = vsub.f32 %v3747, %v4371
    %v4404 = vsub.f32 %v3750, %v4372
    %v4405 = vsub.f32 %v3753, %v4373
    %v4406 = vsub.f32 %v3756, %v4374
    %v4407 = vsub.f32 %v3759, %v4375
    %v4408 = vsub.f32 %v3762, %v4376
    %v4409 = vsub.f32 %v3765, %v4377
    %v4410 = vsub.f32 %v3768, %v4378
    %v4411 = vsub.f32 %v3771, %v4379
    %v4412 = vmul.f32 %v4396, 1.442695
    %v4413 = vpow.pop %v4412
    %v4414 = vmul.f32 %v4397, 1.442695
    %v4415 = vpow.pop %v4414
    %v4416 = vmul.f32 %v4398, 1.442695
    %v4417 = vpow.pop %v4416
    %v4418 = vmul.f32 %v4399, 1.442695
    %v4419 = vpow.pop %v4418
    %v4420 = vmul.f32 %v4400, 1.442695
    %v4421 = vpow.pop %v4420
    %v4422 = vmul.f32 %v4401, 1.442695
    %v4423 = vpow.pop %v4422
    %v4424 = vmul.f32 %v4402, 1.442695
    %v4425 = vpow.pop %v4424
    %v4426 = vmul.f32 %v4403, 1.442695
    %v4427 = vpow.pop %v4426
    %v4428 = vmul.f32 %v4404, 1.442695
    %v4429 = vpow.pop %v4428
    %v4430 = vmul.f32 %v4405, 1.442695
    %v4431 = vpow.pop %v4430
    %v4432 = vmul.f32 %v4406, 1.442695
    %v4433 = vpow.pop %v4432
    %v4434 = vmul.f32 %v4407, 1.442695
    %v4435 = vpow.pop %v4434
    %v4436 = vmul.f32 %v4408, 1.442695
    %v4437 = vpow.pop %v4436
    %v4438 = vmul.f32 %v4409, 1.442695
    %v4439 = vpow.pop %v4438
    %v4440 = vmul.f32 %v4410, 1.442695
    %v4441 = vpow.pop %v4440
    %v4442 = vmul.f32 %v4411, 1.442695
    %v4443 = vpow.pop %v4442
    %4460 = vset.pattern.permute.xlu0 0
    %4461 = vperm.xlu0 %4460, %v4413
    %v4462 = vpop.permute.xlu0 %4461
    %4463 = vset.pattern.permute.xlu0 0
    %4464 = vperm.xlu0 %4463, %v4415
    %v4465 = vpop.permute.xlu0 %4464
    %4466 = vset.pattern.permute.xlu0 0
    %4467 = vperm.xlu0 %4466, %v4417
    %v4468 = vpop.permute.xlu0 %4467
    %4469 = vset.pattern.permute.xlu0 0
    %4470 = vperm.xlu0 %4469, %v4419
    %v4471 = vpop.permute.xlu0 %4470
    %4472 = vset.pattern.permute.xlu0 0
    %4473 = vperm.xlu0 %4472, %v4421
    %v4474 = vpop.permute.xlu0 %4473
    %4475 = vset.pattern.permute.xlu0 0
    %4476 = vperm.xlu0 %4475, %v4423
    %v4477 = vpop.permute.xlu0 %4476
    %4478 = vset.pattern.permute.xlu0 0
    %4479 = vperm.xlu0 %4478, %v4425
    %v4480 = vpop.permute.xlu0 %4479
    %4481 = vset.pattern.permute.xlu0 0
    %4482 = vperm.xlu0 %4481, %v4427
    %v4483 = vpop.permute.xlu0 %4482
    %4484 = vset.pattern.permute.xlu0 0
    %4485 = vperm.xlu0 %4484, %v4429
    %v4486 = vpop.permute.xlu0 %4485
    %4487 = vset.pattern.permute.xlu0 0
    %4488 = vperm.xlu0 %4487, %v4431
    %v4489 = vpop.permute.xlu0 %4488
    %4490 = vset.pattern.permute.xlu0 0
    %4491 = vperm.xlu0 %4490, %v4433
    %v4492 = vpop.permute.xlu0 %4491
    %4493 = vset.pattern.permute.xlu0 0
    %4494 = vperm.xlu0 %4493, %v4435
    %v4495 = vpop.permute.xlu0 %4494
    %4496 = vset.pattern.permute.xlu0 0
    %4497 = vperm.xlu0 %4496, %v4437
    %v4498 = vpop.permute.xlu0 %4497
    %4499 = vset.pattern.permute.xlu0 0
    %4500 = vperm.xlu0 %4499, %v4439
    %v4501 = vpop.permute.xlu0 %4500
    %4502 = vset.pattern.permute.xlu0 0
    %4503 = vperm.xlu0 %4502, %v4441
    %v4504 = vpop.permute.xlu0 %4503
    %4505 = vset.pattern.permute.xlu0 0
    %4506 = vperm.xlu0 %4505, %v4443
    %v4507 = vpop.permute.xlu0 %4506
    %v4508 = vperm.slane %v4462, %v3805
    %v4509 = vperm.slane %v4465, %v3805
    %v4510 = vperm.slane %v4468, %v3805
    %v4511 = vperm.slane %v4471, %v3805
    %v4512 = vperm.slane %v4474, %v3805
    %v4513 = vperm.slane %v4477, %v3805
    %v4514 = vperm.slane %v4480, %v3805
    %v4515 = vperm.slane %v4483, %v3805
    %v4516 = vperm.slane %v4486, %v3805
    %v4517 = vperm.slane %v4489, %v3805
    %v4518 = vperm.slane %v4492, %v3805
    %v4519 = vperm.slane %v4495, %v3805
    %v4520 = vperm.slane %v4498, %v3805
    %v4521 = vperm.slane %v4501, %v3805
    %v4522 = vperm.slane %v4504, %v3805
    %v4523 = vperm.slane %v4507, %v3805
    %v4524 = vsel %vm3856, %v4509, %v4508
    %v4525 = vsel %vm3858, %v4510, %v4524
    %v4526 = vsel %vm3860, %v4511, %v4525
    %v4527 = vsel %vm3862, %v4512, %v4526
    %v4528 = vsel %vm3864, %v4513, %v4527
    %v4529 = vsel %vm3866, %v4514, %v4528
    %v4530 = vsel %vm3868, %v4515, %v4529
    %v4531 = vsel %vm3856, %v4517, %v4516
    %v4532 = vsel %vm3858, %v4518, %v4531
    %v4533 = vsel %vm3860, %v4519, %v4532
    %v4534 = vsel %vm3862, %v4520, %v4533
    %v4535 = vsel %vm3864, %v4521, %v4534
    %v4536 = vsel %vm3866, %v4522, %v4535
    %v4537 = vsel %vm3868, %v4523, %v4536
    %v4540 = vsel %vm4355, %v4530, 0.0
    %4541 = vadd.xlane.f32.xlu0 %v4540
    %v4542 = vpop.xlane.xlu0 %4541
    %v4543 = vsel %vm4355, %v4537, 0.0
    %4544 = vadd.xlane.f32.xlu0 %v4543
    %v4545 = vpop.xlane.xlu0 %4544
    %v4546 = vrcp.pop %v4542
    %v4547 = vmul.f32 %v4542, %v4546
    %v4548 = vsub.f32 1.0, %v4547
    %v4549 = vmul.f32 %v4546, %v4548
    %v4550 = vadd.f32 %v4546, %v4549
    %vm4551 = vweird.f32 %v4542
    %vm4552 = vweird.f32 %v4546
    %vm4553 = vmor %vm4551, %vm4552
    %v4554 = vsel %vm4553, %v4546, %v4550
    %v4555 = vand.u32 2147483647, %v4542
    %vm4556 = vcmp.eq.f32.partialorder %v4555, 8.507059e+37
    %v4557 = vand.u32 %v4542, 2147483648
    %v4558 = vor.u32 1.1754944e-38, %v4557
    %v4559 = vsel %vm4556, %v4558, %v4554
    %v4560 = vrcp.pop %v4545
    %v4561 = vmul.f32 %v4545, %v4560
    %v4562 = vsub.f32 1.0, %v4561
    %v4563 = vmul.f32 %v4560, %v4562
    %v4564 = vadd.f32 %v4560, %v4563
    %vm4565 = vweird.f32 %v4545
    %vm4566 = vweird.f32 %v4560
    %vm4567 = vmor %vm4565, %vm4566
    %v4568 = vsel %vm4567, %v4560, %v4564
    %v4569 = vand.u32 2147483647, %v4545
    %vm4570 = vcmp.eq.f32.partialorder %v4569, 8.507059e+37
    %v4571 = vand.u32 %v4545, 2147483648
    %v4572 = vor.u32 1.1754944e-38, %v4571
    %v4573 = vsel %vm4570, %v4572, %v4568
    %v4576 = vperm.slane %v4559, 0
    %v4577 = vperm.slane %v4559, 1
    %v4578 = vperm.slane %v4559, 2
    %v4579 = vperm.slane %v4559, 3
    %v4580 = vperm.slane %v4559, 4
    %v4581 = vperm.slane %v4559, 5
    %v4582 = vperm.slane %v4559, 6
    %v4583 = vperm.slane %v4559, 7
    %v4584 = vperm.slane %v4573, 0
    %v4585 = vperm.slane %v4573, 1
    %v4586 = vperm.slane %v4573, 2
    %v4587 = vperm.slane %v4573, 3
    %v4588 = vperm.slane %v4573, 4
    %v4589 = vperm.slane %v4573, 5
    %v4590 = vperm.slane %v4573, 6
    %v4591 = vperm.slane %v4573, 7
    %v4608 = vmul.f32 %v4413, %v4576
    %v4609 = vmul.f32 %v4415, %v4577
    %v4610 = vmul.f32 %v4417, %v4578
    %v4611 = vmul.f32 %v4419, %v4579
    %v4612 = vmul.f32 %v4421, %v4580
    %v4613 = vmul.f32 %v4423, %v4581
    %v4614 = vmul.f32 %v4425, %v4582
    %v4615 = vmul.f32 %v4427, %v4583
    %v4616 = vmul.f32 %v4429, %v4584
    %v4617 = vmul.f32 %v4431, %v4585
    %v4618 = vmul.f32 %v4433, %v4586
    %v4619 = vmul.f32 %v4435, %v4587
    %v4620 = vmul.f32 %v4437, %v4588
    %v4621 = vmul.f32 %v4439, %v4589
    %v4622 = vmul.f32 %v4441, %v4590
    %v4623 = vmul.f32 %v4443, %v4591
    %4625 = vset.pattern.permute.xlu0 0
    %4626 = vperm.xlu0 %4625, %v4275
    %v4627 = vpop.permute.xlu0 %4626
    %4630 = vset.pattern.permute.xlu0 0
    %4631 = vperm.xlu0 %4630, %v4276
    %v4632 = vpop.permute.xlu0 %4631
    %4635 = vset.pattern.permute.xlu0 0
    %4636 = vperm.xlu0 %4635, %v4277
    %v4637 = vpop.permute.xlu0 %4636
    %4640 = vset.pattern.permute.xlu0 0
    %4641 = vperm.xlu0 %4640, %v4278
    %v4642 = vpop.permute.xlu0 %4641
    %4645 = vset.pattern.permute.xlu0 0
    %4646 = vperm.xlu0 %4645, %v4279
    %v4647 = vpop.permute.xlu0 %4646
    %4650 = vset.pattern.permute.xlu0 0
    %4651 = vperm.xlu0 %4650, %v4280
    %v4652 = vpop.permute.xlu0 %4651
    %4655 = vset.pattern.permute.xlu0 0
    %4656 = vperm.xlu0 %4655, %v4281
    %v4657 = vpop.permute.xlu0 %4656
    %4660 = vset.pattern.permute.xlu0 0
    %4661 = vperm.xlu0 %4660, %v4282
    %v4662 = vpop.permute.xlu0 %4661
    %4665 = vset.pattern.permute.xlu0 0
    %4666 = vperm.xlu0 %4665, %v4283
    %v4667 = vpop.permute.xlu0 %4666
    %4670 = vset.pattern.permute.xlu0 0
    %4671 = vperm.xlu0 %4670, %v4284
    %v4672 = vpop.permute.xlu0 %4671
    %4675 = vset.pattern.permute.xlu0 0
    %4676 = vperm.xlu0 %4675, %v4285
    %v4677 = vpop.permute.xlu0 %4676
    %4680 = vset.pattern.permute.xlu0 0
    %4681 = vperm.xlu0 %4680, %v4286
    %v4682 = vpop.permute.xlu0 %4681
    %4685 = vset.pattern.permute.xlu0 0
    %4686 = vperm.xlu0 %4685, %v4287
    %v4687 = vpop.permute.xlu0 %4686
    %4690 = vset.pattern.permute.xlu0 0
    %4691 = vperm.xlu0 %4690, %v4288
    %v4692 = vpop.permute.xlu0 %4691
    %4695 = vset.pattern.permute.xlu0 0
    %4696 = vperm.xlu0 %4695, %v4289
    %v4697 = vpop.permute.xlu0 %4696
    %4700 = vset.pattern.permute.xlu0 0
    %4701 = vperm.xlu0 %4700, %v4290
    %v4702 = vpop.permute.xlu0 %4701
    %4705 = vset.pattern.permute.xlu0 0
    %4706 = vperm.xlu0 %4705, %v4291
    %v4707 = vpop.permute.xlu0 %4706
    %4710 = vset.pattern.permute.xlu0 0
    %4711 = vperm.xlu0 %4710, %v4292
    %v4712 = vpop.permute.xlu0 %4711
    %4715 = vset.pattern.permute.xlu0 0
    %4716 = vperm.xlu0 %4715, %v4293
    %v4717 = vpop.permute.xlu0 %4716
    %4720 = vset.pattern.permute.xlu0 0
    %4721 = vperm.xlu0 %4720, %v4294
    %v4722 = vpop.permute.xlu0 %4721
    %4725 = vset.pattern.permute.xlu0 0
    %4726 = vperm.xlu0 %4725, %v4295
    %v4727 = vpop.permute.xlu0 %4726
    %4730 = vset.pattern.permute.xlu0 0
    %4731 = vperm.xlu0 %4730, %v4296
    %v4732 = vpop.permute.xlu0 %4731
    %4735 = vset.pattern.permute.xlu0 0
    %4736 = vperm.xlu0 %4735, %v4297
    %v4737 = vpop.permute.xlu0 %4736
    %4740 = vset.pattern.permute.xlu0 0
    %4741 = vperm.xlu0 %4740, %v4298
    %v4742 = vpop.permute.xlu0 %4741
    %4745 = vset.pattern.permute.xlu0 0
    %4746 = vperm.xlu0 %4745, %v4299
    %v4747 = vpop.permute.xlu0 %4746
    %4750 = vset.pattern.permute.xlu0 0
    %4751 = vperm.xlu0 %4750, %v4300
    %v4752 = vpop.permute.xlu0 %4751
    %4755 = vset.pattern.permute.xlu0 0
    %4756 = vperm.xlu0 %4755, %v4301
    %v4757 = vpop.permute.xlu0 %4756
    %4760 = vset.pattern.permute.xlu0 0
    %4761 = vperm.xlu0 %4760, %v4302
    %v4762 = vpop.permute.xlu0 %4761
    %4765 = vset.pattern.permute.xlu0 0
    %4766 = vperm.xlu0 %4765, %v4303
    %v4767 = vpop.permute.xlu0 %4766
    %4770 = vset.pattern.permute.xlu0 0
    %4771 = vperm.xlu0 %4770, %v4304
    %v4772 = vpop.permute.xlu0 %4771
    %4775 = vset.pattern.permute.xlu0 0
    %4776 = vperm.xlu0 %4775, %v4305
    %v4777 = vpop.permute.xlu0 %4776
    %4780 = vset.pattern.permute.xlu0 0
    %4781 = vperm.xlu0 %4780, %v4306
    %v4782 = vpop.permute.xlu0 %4781
    %v4784 = vmul.f32 %v24, %v4627
    %v4785 = vmul.f32 %v25, %v4632
    %v4786 = vmul.f32 %v26, %v4637
    %v4787 = vmul.f32 %v27, %v4642
    %v4788 = vmul.f32 %v28, %v4647
    %v4789 = vmul.f32 %v29, %v4652
    %v4790 = vmul.f32 %v30, %v4657
    %v4791 = vmul.f32 %v31, %v4662
    %v4792 = vmul.f32 %v32, %v4667
    %v4793 = vmul.f32 %v33, %v4672
    %v4794 = vmul.f32 %v34, %v4677
    %v4795 = vmul.f32 %v35, %v4682
    %v4796 = vmul.f32 %v36, %v4687
    %v4797 = vmul.f32 %v37, %v4692
    %v4798 = vmul.f32 %v38, %v4697
    %v4799 = vmul.f32 %v39, %v4702
    %v4800 = vmul.f32 %v40, %v4707
    %v4801 = vmul.f32 %v41, %v4712
    %v4802 = vmul.f32 %v42, %v4717
    %v4803 = vmul.f32 %v43, %v4722
    %v4804 = vmul.f32 %v44, %v4727
    %v4805 = vmul.f32 %v45, %v4732
    %v4806 = vmul.f32 %v46, %v4737
    %v4807 = vmul.f32 %v47, %v4742
    %v4808 = vmul.f32 %v48, %v4747
    %v4809 = vmul.f32 %v49, %v4752
    %v4810 = vmul.f32 %v50, %v4757
    %v4811 = vmul.f32 %v51, %v4762
    %v4812 = vmul.f32 %v52, %v4767
    %v4813 = vmul.f32 %v53, %v4772
    %v4814 = vmul.f32 %v54, %v4777
    %v4815 = vmul.f32 %v55, %v4782
    %v4816 = vsel %vm76, %v4784, 0.0
    %v4817 = vsel %vm76, %v4785, 0.0
    %v4818 = vadd.f32 %v4816, %v4817
    %v4819 = vrot.slane %v4818, 4
    %v4820 = vadd.f32 %v4818, %v4819
    %v4821 = vrot.slane %v4820, 2
    %v4822 = vadd.f32 %v4820, %v4821
    %v4823 = vrot.slane %v4822, 1
    %v4824 = vadd.f32 %v4822, %v4823
    %v4825 = vsel %vm76, %v4786, 0.0
    %v4826 = vsel %vm76, %v4787, 0.0
    %v4827 = vadd.f32 %v4825, %v4826
    %v4828 = vrot.slane %v4827, 4
    %v4829 = vadd.f32 %v4827, %v4828
    %v4830 = vrot.slane %v4829, 2
    %v4831 = vadd.f32 %v4829, %v4830
    %v4832 = vrot.slane %v4831, 1
    %v4833 = vadd.f32 %v4831, %v4832
    %v4834 = vsel %vm76, %v4788, 0.0
    %v4835 = vsel %vm76, %v4789, 0.0
    %v4836 = vadd.f32 %v4834, %v4835
    %v4837 = vrot.slane %v4836, 4
    %v4838 = vadd.f32 %v4836, %v4837
    %v4839 = vrot.slane %v4838, 2
    %v4840 = vadd.f32 %v4838, %v4839
    %v4841 = vrot.slane %v4840, 1
    %v4842 = vadd.f32 %v4840, %v4841
    %v4843 = vsel %vm76, %v4790, 0.0
    %v4844 = vsel %vm76, %v4791, 0.0
    %v4845 = vadd.f32 %v4843, %v4844
    %v4846 = vrot.slane %v4845, 4
    %v4847 = vadd.f32 %v4845, %v4846
    %v4848 = vrot.slane %v4847, 2
    %v4849 = vadd.f32 %v4847, %v4848
    %v4850 = vrot.slane %v4849, 1
    %v4851 = vadd.f32 %v4849, %v4850
    %v4852 = vsel %vm76, %v4792, 0.0
    %v4853 = vsel %vm76, %v4793, 0.0
    %v4854 = vadd.f32 %v4852, %v4853
    %v4855 = vrot.slane %v4854, 4
    %v4856 = vadd.f32 %v4854, %v4855
    %v4857 = vrot.slane %v4856, 2
    %v4858 = vadd.f32 %v4856, %v4857
    %v4859 = vrot.slane %v4858, 1
    %v4860 = vadd.f32 %v4858, %v4859
    %v4861 = vsel %vm76, %v4794, 0.0
    %v4862 = vsel %vm76, %v4795, 0.0
    %v4863 = vadd.f32 %v4861, %v4862
    %v4864 = vrot.slane %v4863, 4
    %v4865 = vadd.f32 %v4863, %v4864
    %v4866 = vrot.slane %v4865, 2
    %v4867 = vadd.f32 %v4865, %v4866
    %v4868 = vrot.slane %v4867, 1
    %v4869 = vadd.f32 %v4867, %v4868
    %v4870 = vsel %vm76, %v4796, 0.0
    %v4871 = vsel %vm76, %v4797, 0.0
    %v4872 = vadd.f32 %v4870, %v4871
    %v4873 = vrot.slane %v4872, 4
    %v4874 = vadd.f32 %v4872, %v4873
    %v4875 = vrot.slane %v4874, 2
    %v4876 = vadd.f32 %v4874, %v4875
    %v4877 = vrot.slane %v4876, 1
    %v4878 = vadd.f32 %v4876, %v4877
    %v4879 = vsel %vm76, %v4798, 0.0
    %v4880 = vsel %vm76, %v4799, 0.0
    %v4881 = vadd.f32 %v4879, %v4880
    %v4882 = vrot.slane %v4881, 4
    %v4883 = vadd.f32 %v4881, %v4882
    %v4884 = vrot.slane %v4883, 2
    %v4885 = vadd.f32 %v4883, %v4884
    %v4886 = vrot.slane %v4885, 1
    %v4887 = vadd.f32 %v4885, %v4886
    %v4888 = vsel %vm76, %v4800, 0.0
    %v4889 = vsel %vm76, %v4801, 0.0
    %v4890 = vadd.f32 %v4888, %v4889
    %v4891 = vrot.slane %v4890, 4
    %v4892 = vadd.f32 %v4890, %v4891
    %v4893 = vrot.slane %v4892, 2
    %v4894 = vadd.f32 %v4892, %v4893
    %v4895 = vrot.slane %v4894, 1
    %v4896 = vadd.f32 %v4894, %v4895
    %v4897 = vsel %vm76, %v4802, 0.0
    %v4898 = vsel %vm76, %v4803, 0.0
    %v4899 = vadd.f32 %v4897, %v4898
    %v4900 = vrot.slane %v4899, 4
    %v4901 = vadd.f32 %v4899, %v4900
    %v4902 = vrot.slane %v4901, 2
    %v4903 = vadd.f32 %v4901, %v4902
    %v4904 = vrot.slane %v4903, 1
    %v4905 = vadd.f32 %v4903, %v4904
    %v4906 = vsel %vm76, %v4804, 0.0
    %v4907 = vsel %vm76, %v4805, 0.0
    %v4908 = vadd.f32 %v4906, %v4907
    %v4909 = vrot.slane %v4908, 4
    %v4910 = vadd.f32 %v4908, %v4909
    %v4911 = vrot.slane %v4910, 2
    %v4912 = vadd.f32 %v4910, %v4911
    %v4913 = vrot.slane %v4912, 1
    %v4914 = vadd.f32 %v4912, %v4913
    %v4915 = vsel %vm76, %v4806, 0.0
    %v4916 = vsel %vm76, %v4807, 0.0
    %v4917 = vadd.f32 %v4915, %v4916
    %v4918 = vrot.slane %v4917, 4
    %v4919 = vadd.f32 %v4917, %v4918
    %v4920 = vrot.slane %v4919, 2
    %v4921 = vadd.f32 %v4919, %v4920
    %v4922 = vrot.slane %v4921, 1
    %v4923 = vadd.f32 %v4921, %v4922
    %v4924 = vsel %vm76, %v4808, 0.0
    %v4925 = vsel %vm76, %v4809, 0.0
    %v4926 = vadd.f32 %v4924, %v4925
    %v4927 = vrot.slane %v4926, 4
    %v4928 = vadd.f32 %v4926, %v4927
    %v4929 = vrot.slane %v4928, 2
    %v4930 = vadd.f32 %v4928, %v4929
    %v4931 = vrot.slane %v4930, 1
    %v4932 = vadd.f32 %v4930, %v4931
    %v4933 = vsel %vm76, %v4810, 0.0
    %v4934 = vsel %vm76, %v4811, 0.0
    %v4935 = vadd.f32 %v4933, %v4934
    %v4936 = vrot.slane %v4935, 4
    %v4937 = vadd.f32 %v4935, %v4936
    %v4938 = vrot.slane %v4937, 2
    %v4939 = vadd.f32 %v4937, %v4938
    %v4940 = vrot.slane %v4939, 1
    %v4941 = vadd.f32 %v4939, %v4940
    %v4942 = vsel %vm76, %v4812, 0.0
    %v4943 = vsel %vm76, %v4813, 0.0
    %v4944 = vadd.f32 %v4942, %v4943
    %v4945 = vrot.slane %v4944, 4
    %v4946 = vadd.f32 %v4944, %v4945
    %v4947 = vrot.slane %v4946, 2
    %v4948 = vadd.f32 %v4946, %v4947
    %v4949 = vrot.slane %v4948, 1
    %v4950 = vadd.f32 %v4948, %v4949
    %v4951 = vsel %vm76, %v4814, 0.0
    %v4952 = vsel %vm76, %v4815, 0.0
    %v4953 = vadd.f32 %v4951, %v4952
    %v4954 = vrot.slane %v4953, 4
    %v4955 = vadd.f32 %v4953, %v4954
    %v4956 = vrot.slane %v4955, 2
    %v4957 = vadd.f32 %v4955, %v4956
    %v4958 = vrot.slane %v4957, 1
    %v4959 = vadd.f32 %v4957, %v4958
    %4961 = vset.pattern.permute.xlu0 0
    %4962 = vperm.xlu0 %4961, %v4608
    %v4963 = vpop.permute.xlu0 %4962
    %4966 = vset.pattern.permute.xlu0 0
    %4967 = vperm.xlu0 %4966, %v4609
    %v4968 = vpop.permute.xlu0 %4967
    %4971 = vset.pattern.permute.xlu0 0
    %4972 = vperm.xlu0 %4971, %v4610
    %v4973 = vpop.permute.xlu0 %4972
    %4976 = vset.pattern.permute.xlu0 0
    %4977 = vperm.xlu0 %4976, %v4611
    %v4978 = vpop.permute.xlu0 %4977
    %4981 = vset.pattern.permute.xlu0 0
    %4982 = vperm.xlu0 %4981, %v4612
    %v4983 = vpop.permute.xlu0 %4982
    %4986 = vset.pattern.permute.xlu0 0
    %4987 = vperm.xlu0 %4986, %v4613
    %v4988 = vpop.permute.xlu0 %4987
    %4991 = vset.pattern.permute.xlu0 0
    %4992 = vperm.xlu0 %4991, %v4614
    %v4993 = vpop.permute.xlu0 %4992
    %4996 = vset.pattern.permute.xlu0 0
    %4997 = vperm.xlu0 %4996, %v4615
    %v4998 = vpop.permute.xlu0 %4997
    %5001 = vset.pattern.permute.xlu0 0
    %5002 = vperm.xlu0 %5001, %v4616
    %v5003 = vpop.permute.xlu0 %5002
    %5006 = vset.pattern.permute.xlu0 0
    %5007 = vperm.xlu0 %5006, %v4617
    %v5008 = vpop.permute.xlu0 %5007
    %5011 = vset.pattern.permute.xlu0 0
    %5012 = vperm.xlu0 %5011, %v4618
    %v5013 = vpop.permute.xlu0 %5012
    %5016 = vset.pattern.permute.xlu0 0
    %5017 = vperm.xlu0 %5016, %v4619
    %v5018 = vpop.permute.xlu0 %5017
    %5021 = vset.pattern.permute.xlu0 0
    %5022 = vperm.xlu0 %5021, %v4620
    %v5023 = vpop.permute.xlu0 %5022
    %5026 = vset.pattern.permute.xlu0 0
    %5027 = vperm.xlu0 %5026, %v4621
    %v5028 = vpop.permute.xlu0 %5027
    %5031 = vset.pattern.permute.xlu0 0
    %5032 = vperm.xlu0 %5031, %v4622
    %v5033 = vpop.permute.xlu0 %5032
    %5036 = vset.pattern.permute.xlu0 0
    %5037 = vperm.xlu0 %5036, %v4623
    %v5038 = vpop.permute.xlu0 %5037
    %v5040 = vmul.f32 %v56, %v4963
    %v5041 = vmul.f32 %v57, %v4968
    %v5042 = vmul.f32 %v58, %v4973
    %v5043 = vmul.f32 %v59, %v4978
    %v5044 = vmul.f32 %v60, %v4983
    %v5045 = vmul.f32 %v61, %v4988
    %v5046 = vmul.f32 %v62, %v4993
    %v5047 = vmul.f32 %v63, %v4998
    %v5048 = vmul.f32 %v64, %v5003
    %v5049 = vmul.f32 %v65, %v5008
    %v5050 = vmul.f32 %v66, %v5013
    %v5051 = vmul.f32 %v67, %v5018
    %v5052 = vmul.f32 %v68, %v5023
    %v5053 = vmul.f32 %v69, %v5028
    %v5054 = vmul.f32 %v70, %v5033
    %v5055 = vmul.f32 %v71, %v5038
    %v5056 = vsel %vm76, %v5040, 0.0
    %v5057 = vrot.slane %v5056, 4
    %v5058 = vadd.f32 %v5056, %v5057
    %v5059 = vrot.slane %v5058, 2
    %v5060 = vadd.f32 %v5058, %v5059
    %v5061 = vrot.slane %v5060, 1
    %v5062 = vadd.f32 %v5060, %v5061
    %v5063 = vsel %vm76, %v5041, 0.0
    %v5064 = vrot.slane %v5063, 4
    %v5065 = vadd.f32 %v5063, %v5064
    %v5066 = vrot.slane %v5065, 2
    %v5067 = vadd.f32 %v5065, %v5066
    %v5068 = vrot.slane %v5067, 1
    %v5069 = vadd.f32 %v5067, %v5068
    %v5070 = vsel %vm76, %v5042, 0.0
    %v5071 = vrot.slane %v5070, 4
    %v5072 = vadd.f32 %v5070, %v5071
    %v5073 = vrot.slane %v5072, 2
    %v5074 = vadd.f32 %v5072, %v5073
    %v5075 = vrot.slane %v5074, 1
    %v5076 = vadd.f32 %v5074, %v5075
    %v5077 = vsel %vm76, %v5043, 0.0
    %v5078 = vrot.slane %v5077, 4
    %v5079 = vadd.f32 %v5077, %v5078
    %v5080 = vrot.slane %v5079, 2
    %v5081 = vadd.f32 %v5079, %v5080
    %v5082 = vrot.slane %v5081, 1
    %v5083 = vadd.f32 %v5081, %v5082
    %v5084 = vsel %vm76, %v5044, 0.0
    %v5085 = vrot.slane %v5084, 4
    %v5086 = vadd.f32 %v5084, %v5085
    %v5087 = vrot.slane %v5086, 2
    %v5088 = vadd.f32 %v5086, %v5087
    %v5089 = vrot.slane %v5088, 1
    %v5090 = vadd.f32 %v5088, %v5089
    %v5091 = vsel %vm76, %v5045, 0.0
    %v5092 = vrot.slane %v5091, 4
    %v5093 = vadd.f32 %v5091, %v5092
    %v5094 = vrot.slane %v5093, 2
    %v5095 = vadd.f32 %v5093, %v5094
    %v5096 = vrot.slane %v5095, 1
    %v5097 = vadd.f32 %v5095, %v5096
    %v5098 = vsel %vm76, %v5046, 0.0
    %v5099 = vrot.slane %v5098, 4
    %v5100 = vadd.f32 %v5098, %v5099
    %v5101 = vrot.slane %v5100, 2
    %v5102 = vadd.f32 %v5100, %v5101
    %v5103 = vrot.slane %v5102, 1
    %v5104 = vadd.f32 %v5102, %v5103
    %v5105 = vsel %vm76, %v5047, 0.0
    %v5106 = vrot.slane %v5105, 4
    %v5107 = vadd.f32 %v5105, %v5106
    %v5108 = vrot.slane %v5107, 2
    %v5109 = vadd.f32 %v5107, %v5108
    %v5110 = vrot.slane %v5109, 1
    %v5111 = vadd.f32 %v5109, %v5110
    %v5112 = vsel %vm76, %v5048, 0.0
    %v5113 = vrot.slane %v5112, 4
    %v5114 = vadd.f32 %v5112, %v5113
    %v5115 = vrot.slane %v5114, 2
    %v5116 = vadd.f32 %v5114, %v5115
    %v5117 = vrot.slane %v5116, 1
    %v5118 = vadd.f32 %v5116, %v5117
    %v5119 = vsel %vm76, %v5049, 0.0
    %v5120 = vrot.slane %v5119, 4
    %v5121 = vadd.f32 %v5119, %v5120
    %v5122 = vrot.slane %v5121, 2
    %v5123 = vadd.f32 %v5121, %v5122
    %v5124 = vrot.slane %v5123, 1
    %v5125 = vadd.f32 %v5123, %v5124
    %v5126 = vsel %vm76, %v5050, 0.0
    %v5127 = vrot.slane %v5126, 4
    %v5128 = vadd.f32 %v5126, %v5127
    %v5129 = vrot.slane %v5128, 2
    %v5130 = vadd.f32 %v5128, %v5129
    %v5131 = vrot.slane %v5130, 1
    %v5132 = vadd.f32 %v5130, %v5131
    %v5133 = vsel %vm76, %v5051, 0.0
    %v5134 = vrot.slane %v5133, 4
    %v5135 = vadd.f32 %v5133, %v5134
    %v5136 = vrot.slane %v5135, 2
    %v5137 = vadd.f32 %v5135, %v5136
    %v5138 = vrot.slane %v5137, 1
    %v5139 = vadd.f32 %v5137, %v5138
    %v5140 = vsel %vm76, %v5052, 0.0
    %v5141 = vrot.slane %v5140, 4
    %v5142 = vadd.f32 %v5140, %v5141
    %v5143 = vrot.slane %v5142, 2
    %v5144 = vadd.f32 %v5142, %v5143
    %v5145 = vrot.slane %v5144, 1
    %v5146 = vadd.f32 %v5144, %v5145
    %v5147 = vsel %vm76, %v5053, 0.0
    %v5148 = vrot.slane %v5147, 4
    %v5149 = vadd.f32 %v5147, %v5148
    %v5150 = vrot.slane %v5149, 2
    %v5151 = vadd.f32 %v5149, %v5150
    %v5152 = vrot.slane %v5151, 1
    %v5153 = vadd.f32 %v5151, %v5152
    %v5154 = vsel %vm76, %v5054, 0.0
    %v5155 = vrot.slane %v5154, 4
    %v5156 = vadd.f32 %v5154, %v5155
    %v5157 = vrot.slane %v5156, 2
    %v5158 = vadd.f32 %v5156, %v5157
    %v5159 = vrot.slane %v5158, 1
    %v5160 = vadd.f32 %v5158, %v5159
    %v5161 = vsel %vm76, %v5055, 0.0
    %v5162 = vrot.slane %v5161, 4
    %v5163 = vadd.f32 %v5161, %v5162
    %v5164 = vrot.slane %v5163, 2
    %v5165 = vadd.f32 %v5163, %v5164
    %v5166 = vrot.slane %v5165, 1
    %v5167 = vadd.f32 %v5165, %v5166
    %v5168 = vperm.slane %v4627, %v3805
    %v5169 = vperm.slane %v4632, %v3807
    %v5170 = vsel %vm3809, %v5169, %v5168
    %v5171 = vperm.slane %v4637, %v3805
    %v5172 = vperm.slane %v4642, %v3807
    %v5173 = vsel %vm3809, %v5172, %v5171
    %v5174 = vperm.slane %v4647, %v3805
    %v5175 = vperm.slane %v4652, %v3807
    %v5176 = vsel %vm3809, %v5175, %v5174
    %v5177 = vperm.slane %v4657, %v3805
    %v5178 = vperm.slane %v4662, %v3807
    %v5179 = vsel %vm3809, %v5178, %v5177
    %v5180 = vperm.slane %v4667, %v3805
    %v5181 = vperm.slane %v4672, %v3807
    %v5182 = vsel %vm3809, %v5181, %v5180
    %v5183 = vperm.slane %v4677, %v3805
    %v5184 = vperm.slane %v4682, %v3807
    %v5185 = vsel %vm3809, %v5184, %v5183
    %v5186 = vperm.slane %v4687, %v3805
    %v5187 = vperm.slane %v4692, %v3807
    %v5188 = vsel %vm3809, %v5187, %v5186
    %v5189 = vperm.slane %v4697, %v3805
    %v5190 = vperm.slane %v4702, %v3807
    %v5191 = vsel %vm3809, %v5190, %v5189
    %v5192 = vperm.slane %v4707, %v3805
    %v5193 = vperm.slane %v4712, %v3807
    %v5194 = vsel %vm3809, %v5193, %v5192
    %v5195 = vperm.slane %v4717, %v3805
    %v5196 = vperm.slane %v4722, %v3807
    %v5197 = vsel %vm3809, %v5196, %v5195
    %v5198 = vperm.slane %v4727, %v3805
    %v5199 = vperm.slane %v4732, %v3807
    %v5200 = vsel %vm3809, %v5199, %v5198
    %v5201 = vperm.slane %v4737, %v3805
    %v5202 = vperm.slane %v4742, %v3807
    %v5203 = vsel %vm3809, %v5202, %v5201
    %v5204 = vperm.slane %v4747, %v3805
    %v5205 = vperm.slane %v4752, %v3807
    %v5206 = vsel %vm3809, %v5205, %v5204
    %v5207 = vperm.slane %v4757, %v3805
    %v5208 = vperm.slane %v4762, %v3807
    %v5209 = vsel %vm3809, %v5208, %v5207
    %v5210 = vperm.slane %v4767, %v3805
    %v5211 = vperm.slane %v4772, %v3807
    %v5212 = vsel %vm3809, %v5211, %v5210
    %v5213 = vperm.slane %v4777, %v3805
    %v5214 = vperm.slane %v4782, %v3807
    %v5215 = vsel %vm3809, %v5214, %v5213
    %v5216 = vsel %vm3856, %v5173, %v5170
    %v5217 = vsel %vm3858, %v5176, %v5216
    %v5218 = vsel %vm3860, %v5179, %v5217
    %v5219 = vsel %vm3862, %v5182, %v5218
    %v5220 = vsel %vm3864, %v5185, %v5219
    %v5221 = vsel %vm3866, %v5188, %v5220
    %v5222 = vsel %vm3868, %v5191, %v5221
    %v5223 = vsel %vm3856, %v5197, %v5194
    %v5224 = vsel %vm3858, %v5200, %v5223
    %v5225 = vsel %vm3860, %v5203, %v5224
    %v5226 = vsel %vm3862, %v5206, %v5225
    %v5227 = vsel %vm3864, %v5209, %v5226
    %v5228 = vsel %vm3866, %v5212, %v5227
    %v5229 = vsel %vm3868, %v5215, %v5228
    %5232 = vst.msk [vmem:[#allocation2] sm:$0xff] %vm3112, %v5222
    %5233 = vst.msk [vmem:[#allocation2 + $0x8] sm:$0xff] %vm3112, %v5229
    %v5234 = vadd.s32 %v3805, 4294967280
    %v5235 = vperm.slane %v4963, %v5234
    %v5236 = vperm.slane %v4968, %v5234
    %v5237 = vperm.slane %v4973, %v5234
    %v5238 = vperm.slane %v4978, %v5234
    %v5239 = vperm.slane %v4983, %v5234
    %v5240 = vperm.slane %v4988, %v5234
    %v5241 = vperm.slane %v4993, %v5234
    %v5242 = vperm.slane %v4998, %v5234
    %v5243 = vperm.slane %v5003, %v5234
    %v5244 = vperm.slane %v5008, %v5234
    %v5245 = vperm.slane %v5013, %v5234
    %v5246 = vperm.slane %v5018, %v5234
    %v5247 = vperm.slane %v5023, %v5234
    %v5248 = vperm.slane %v5028, %v5234
    %v5249 = vperm.slane %v5033, %v5234
    %v5250 = vperm.slane %v5038, %v5234
    %v5251 = vsel %vm3856, %v5236, %v5235
    %v5252 = vsel %vm3858, %v5237, %v5251
    %v5253 = vsel %vm3860, %v5238, %v5252
    %v5254 = vsel %vm3862, %v5239, %v5253
    %v5255 = vsel %vm3864, %v5240, %v5254
    %v5256 = vsel %vm3866, %v5241, %v5255
    %v5257 = vsel %vm3868, %v5242, %v5256
    %v5258 = vsel %vm3856, %v5244, %v5243
    %v5259 = vsel %vm3858, %v5245, %v5258
    %v5260 = vsel %vm3860, %v5246, %v5259
    %v5261 = vsel %vm3862, %v5247, %v5260
    %v5262 = vsel %vm3864, %v5248, %v5261
    %v5263 = vsel %vm3866, %v5249, %v5262
    %v5264 = vsel %vm3868, %v5250, %v5263
    %vm5267 = vcmask 195712
    %5268 = vst.msk [vmem:[#allocation2] sm:$0xff] %vm5267, %v5257
    %5269 = vst.msk [vmem:[#allocation2 + $0x8] sm:$0xff] %vm5267, %v5264
    %v5286 = vsel %vm3856, %v4833, %v4824
    %v5287 = vsel %vm3858, %v4842, %v5286
    %v5288 = vsel %vm3860, %v4851, %v5287
    %v5289 = vsel %vm3862, %v4860, %v5288
    %v5290 = vsel %vm3864, %v4869, %v5289
    %v5291 = vsel %vm3866, %v4878, %v5290
    %v5292 = vsel %vm3868, %v4887, %v5291
    %v5293 = vsel %vm3856, %v4905, %v4896
    %v5294 = vsel %vm3858, %v4914, %v5293
    %v5295 = vsel %vm3860, %v4923, %v5294
    %v5296 = vsel %vm3862, %v4932, %v5295
    %v5297 = vsel %vm3864, %v4941, %v5296
    %v5298 = vsel %vm3866, %v4950, %v5297
    %v5299 = vsel %vm3868, %v4959, %v5298
    %5300 = vrot.lane.b32.xlu0 %v5292, 24
    %v5301 = vpop.permute.xlu0 %5300
    %5302 = vrot.lane.b32.xlu0 %v5299, 24
    %v5303 = vpop.permute.xlu0 %5302
    %vm5306 = vcmask 457920
    %5307 = vst.msk [vmem:[#allocation2] sm:$0xff] %vm5306, %v5301
    %5308 = vst.msk [vmem:[#allocation2 + $0x8] sm:$0xff] %vm5306, %v5303
    %v5325 = vsel %vm3856, %v5069, %v5062
    %v5326 = vsel %vm3858, %v5076, %v5325
    %v5327 = vsel %vm3860, %v5083, %v5326
    %v5328 = vsel %vm3862, %v5090, %v5327
    %v5329 = vsel %vm3864, %v5097, %v5328
    %v5330 = vsel %vm3866, %v5104, %v5329
    %v5331 = vsel %vm3868, %v5111, %v5330
    %v5332 = vsel %vm3856, %v5125, %v5118
    %v5333 = vsel %vm3858, %v5132, %v5332
    %v5334 = vsel %vm3860, %v5139, %v5333
    %v5335 = vsel %vm3862, %v5146, %v5334
    %v5336 = vsel %vm3864, %v5153, %v5335
    %v5337 = vsel %vm3866, %v5160, %v5336
    %v5338 = vsel %vm3868, %v5167, %v5337
    %5339 = vrot.lane.b32.xlu0 %v5331, 56
    %v5340 = vpop.permute.xlu0 %5339
    %5341 = vrot.lane.b32.xlu0 %v5338, 56
    %v5342 = vpop.permute.xlu0 %5341
    %vm5345 = vcmask 720320
    %5346 = vst.msk [vmem:[#allocation2] sm:$0xff] %vm5345, %v5340
    %5347 = vst.msk [vmem:[#allocation2 + $0x8] sm:$0xff] %vm5345, %v5342
    %vm5348 = vcmask 1048256
    %5349 = vst.msk [vmem:[#allocation2] sm:$0xff] %vm5348, 0.0
    %5350 = vst.msk [vmem:[#allocation2 + $0x8] sm:$0xff] %vm5348, 0.0
    // Predicated region
    $region26: #{tpu_custom_call.1} parent=1 // pred_check
      _
    $region27: #{tpu_custom_call.1} parent=1 // pred_check_branch
      %5352 = sbr.rel (0) target = $region29
    $region28: #{tpu_custom_call.1} parent=1 // pred_region
      %5354 = vsyncadd [#allocation3], 0
      %s5355 = sshll.u32 [#allocation2], 4
      %s5356 = int_to_ptr.vmem [resolvable:$true] %s5355
      %s5357 = sshll.u32 %s6, 4
      %s5358 = int_to_ptr.hbm [resolvable:$true] %s5357
      %5363 = dma.vmem_to_hbm [thread:$0]  %s5356, 256, %s5358, [#allocation3], 128, 128, 8
    $region29: #{tpu_custom_call.1} parent=1 // pred_fallthru
      _
    // Predicated region
    $region30: #{tpu_custom_call.1} parent=1 // pred_check
      _
    $region31: #{tpu_custom_call.1} parent=1 // pred_check_branch
      %5365 = sbr.rel (0) target = $region33
    $region32: #{tpu_custom_call.1} parent=1 // pred_region
      %5367 = dma.done [#allocation3], 256
    $region33: #{tpu_custom_call.1} parent=1 // pred_fallthru
      _
    %5368 = vsyncpa [#allocation3], 1

</llo_original>
